<compile_context>
chip_gen: v7x
topology: tpu7x:2x2x1
jax: 0.10.0
libtpu: 0.0.40
codegen_flags: <defaults>
</compile_context>

<pallas_src>
import jax
import jax.numpy as jnp
from jax.experimental import pallas as pl
from jax.experimental.pallas import tpu as pltpu

IN_DIM = 16          # raw feature dim fed to the (stubbed) pretrained model
ACT_DIM = 30         # final_conv_acts feature dim (fixed by nn.Linear(30, 1024))
HIDDEN = 1024        # out1 width
NUM_CLUSTERS = 10    # out2 width
ROW_TILE = 512       # rows per grid step (multiple of 256 -> fills MXU M dim)
C_PAD = 128          # lane-dense padded output width


def _fused_kernel(x_ref, wpre_ref, w1_ref, b1_ref, w2_ref, b2_ref, o_ref):
    # x_ref:    (ROW_TILE, 16)    bf16
    # wpre_ref: (16, 30)          bf16
    # w1_ref:   (30, 1024)        bf16     b1_ref: (1, 1024) f32
    # w2_ref:   (1024, C_PAD)     bf16     b2_ref: (1, C_PAD) f32
    # o_ref:    (ROW_TILE, C_PAD) f32
    # Backbone stub: final_conv_acts = features @ w_pre  (fused, stays in VMEM).
    acts = jnp.dot(x_ref[...], wpre_ref[...], preferred_element_type=jnp.float32)
    # out1 + ReLU (bias add / ReLU in f32 on the VPU; bf16 operands to the MXU).
    h = jnp.dot(acts.astype(jnp.bfloat16), w1_ref[...],
                preferred_element_type=jnp.float32)
    h = jnp.maximum(h + b1_ref[...], 0.0)
    # Dropout(p=0.1): identity in eval mode.
    out = jnp.dot(h.astype(jnp.bfloat16), w2_ref[...],
                  preferred_element_type=jnp.float32)
    o_ref[...] = (out + b2_ref[...]).astype(o_ref.dtype)


def xsigra_forward(params, features, img_feat, edge_index, batch_index,
                   *, row_tile=ROW_TILE):
    """Fused forward: (stubbed backbone projection) -> Linear -> ReLU -> Linear."""
    del img_feat, edge_index, batch_index  # consumed only by the real (external) backbone
    n, in_dim = features.shape
    assert in_dim == IN_DIM
    c = params["w2"].shape[1]

    # Pad rows up to the tile and output columns up to a lane-dense multiple of 128.
    n_pad = int(pl.cdiv(n, row_tile)) * row_tile
    c_pad = max(C_PAD, int(pl.cdiv(c, 128)) * 128)

    x = features.astype(jnp.bfloat16)
    if n_pad != n:
        x = jnp.pad(x, ((0, n_pad - n), (0, 0)))

    w_pre = params["w_pre"].astype(jnp.bfloat16)
    w1 = params["w1"].astype(jnp.bfloat16)
    b1 = params["b1"].reshape(1, HIDDEN).astype(jnp.float32)
    w2 = jnp.pad(params["w2"], ((0, 0), (0, c_pad - c))).astype(jnp.bfloat16)
    b2 = jnp.pad(params["b2"], ((0, c_pad - c),)).reshape(1, c_pad).astype(jnp.float32)

    grid = (n_pad // row_tile,)

    flops = 2 * n_pad * (IN_DIM * ACT_DIM + ACT_DIM * HIDDEN + HIDDEN * c_pad)
    bytes_accessed = (
        x.size * 2 + w_pre.size * 2 + w1.size * 2 + w2.size * 2
        + b1.size * 4 + b2.size * 4 + n_pad * c_pad * 4
    )

    out_pad = pl.pallas_call(
        _fused_kernel,
        out_shape=jax.ShapeDtypeStruct((n_pad, c_pad), jnp.float32),
        grid_spec=pltpu.PrefetchScalarGridSpec(
            num_scalar_prefetch=0,
            grid=grid,
            in_specs=[
                pl.BlockSpec((row_tile, IN_DIM), lambda i: (i, 0)),
                pl.BlockSpec((IN_DIM, ACT_DIM), lambda i: (0, 0)),
                pl.BlockSpec((ACT_DIM, HIDDEN), lambda i: (0, 0)),
                pl.BlockSpec((1, HIDDEN), lambda i: (0, 0)),
                pl.BlockSpec((HIDDEN, c_pad), lambda i: (0, 0)),
                pl.BlockSpec((1, c_pad), lambda i: (0, 0)),
            ],
            out_specs=pl.BlockSpec((row_tile, c_pad), lambda i: (i, 0)),
        ),
        compiler_params=pltpu.CompilerParams(
            dimension_semantics=("parallel",),
        ),
        cost_estimate=pl.CostEstimate(
            flops=flops, transcendentals=0, bytes_accessed=bytes_accessed
        ),
    )(x, w_pre, w1, b1, w2, b2)

    # Strip row padding and the zero-padded logit columns.
    return out_pad[:n, :c]


def init_params(key):
    k0, k1, k2, k3, k4 = jax.random.split(key, 5)
    # PyTorch-style uniform(-1/sqrt(fan_in), 1/sqrt(fan_in)) init, deterministic.
    lim1 = 1.0 / (ACT_DIM ** 0.5)
    lim2 = 1.0 / (HIDDEN ** 0.5)
    return {
        "w_pre": jax.random.normal(k0, (IN_DIM, ACT_DIM), jnp.float32) * 0.1,
        "w1": jax.random.uniform(k1, (ACT_DIM, HIDDEN), jnp.float32, -lim1, lim1),
        "b1": jax.random.uniform(k2, (HIDDEN,), jnp.float32, -lim1, lim1),
        "w2": jax.random.uniform(k3, (HIDDEN, NUM_CLUSTERS), jnp.float32, -lim2, lim2),
        "b2": jax.random.uniform(k4, (NUM_CLUSTERS,), jnp.float32, -lim2, lim2),
    }


if __name__ == "__main__":
    root = jax.random.PRNGKey(0)
    kp, kf, ki, ke = jax.random.split(root, 4)
    params = init_params(kp)

    n_nodes = 64
    features = jax.random.normal(kf, (n_nodes, IN_DIM), jnp.float32)
    img_feat = jax.random.normal(ki, (n_nodes, IN_DIM), jnp.float32)
    edge_index = jax.random.randint(ke, (2, 128), 0, n_nodes, jnp.int32)
    batch_index = jnp.zeros((n_nodes,), jnp.int32)

    out = xsigra_forward(params, features, img_feat, edge_index, batch_index)
    out = jax.block_until_ready(out)
    assert out.shape == (n_nodes, NUM_CLUSTERS)

    # Reference in plain JAX with the same bf16-operand / f32-accumulate casts
    # (eval-mode dropout = identity).
    acts = jnp.dot(features.astype(jnp.bfloat16),
                   params["w_pre"].astype(jnp.bfloat16),
                   preferred_element_type=jnp.float32)
    h = jnp.dot(acts.astype(jnp.bfloat16),
                params["w1"].astype(jnp.bfloat16),
                preferred_element_type=jnp.float32)
    h = jnp.maximum(h + params["b1"], 0.0)
    ref = jnp.dot(h.astype(jnp.bfloat16),
                  params["w2"].astype(jnp.bfloat16),
                  preferred_element_type=jnp.float32) + params["b2"]

    assert jnp.allclose(out, ref, atol=1e-2, rtol=1e-2), (
        float(jnp.max(jnp.abs(out - ref))))

    print("KERNEL_OK")
</pallas_src>

<mosaic_0001>
module attributes {stable_mosaic.version = 11 : i64} {
  func.func @_fused_kernel(%arg0: i32, %arg1: memref<512x16xbf16, #tpu.memory_space<vmem>>, %arg2: memref<16x30xbf16, #tpu.memory_space<vmem>>, %arg3: memref<30x1024xbf16, #tpu.memory_space<vmem>>, %arg4: memref<1x1024xf32, #tpu.memory_space<vmem>>, %arg5: memref<1024x128xbf16, #tpu.memory_space<vmem>>, %arg6: memref<1x128xf32, #tpu.memory_space<vmem>>, %arg7: memref<512x128xf32, #tpu.memory_space<vmem>>) attributes {dimension_semantics = [#tpu.dimension_semantics<parallel>], iteration_bounds = array<i64: 1>, scalar_prefetch = 0 : i64, scratch_operands = 0 : i64, tpu.core_type = #tpu.core_type<tc>, window_params = [{transform_indices = @transform_0, window_bounds = array<i64: 512, 16>}, {pipeline_mode = #tpu.pipeline_mode<synchronous>, transform_indices = @transform_1, window_bounds = array<i64: 16, 30>}, {pipeline_mode = #tpu.pipeline_mode<synchronous>, transform_indices = @transform_2, window_bounds = array<i64: 30, 1024>}, {pipeline_mode = #tpu.pipeline_mode<synchronous>, transform_indices = @transform_3, window_bounds = array<i64: 1, 1024>}, {pipeline_mode = #tpu.pipeline_mode<synchronous>, transform_indices = @transform_4, window_bounds = array<i64: 1024, 128>}, {pipeline_mode = #tpu.pipeline_mode<synchronous>, transform_indices = @transform_5, window_bounds = array<i64: 1, 128>}, {transform_indices = @transform_6, window_bounds = array<i64: 512, 128>}]} {
    %c0 = arith.constant 0 : index
    %c0_0 = arith.constant 0 : index
    %0 = vector.load %arg1[%c0, %c0_0] : memref<512x16xbf16, #tpu.memory_space<vmem>>, vector<512x16xbf16>
    %c0_1 = arith.constant 0 : index
    %c0_2 = arith.constant 0 : index
    %1 = vector.load %arg2[%c0_1, %c0_2] : memref<16x30xbf16, #tpu.memory_space<vmem>>, vector<16x30xbf16>
    %cst = arith.constant dense<0.000000e+00> : vector<512x30xf32>
    %2 = tpu.matmul %0, %1, %cst {dimension_numbers = #tpu.dot_dimension_numbers<[1], [0], [0], [1], [0, 0, 1, 1], [], []>} : vector<512x16xbf16>, vector<16x30xbf16>, vector<512x30xf32> -> vector<512x30xf32>
    %3 = arith.truncf %2 : vector<512x30xf32> to vector<512x30xbf16>
    %c0_3 = arith.constant 0 : index
    %c0_4 = arith.constant 0 : index
    %4 = vector.load %arg3[%c0_3, %c0_4] : memref<30x1024xbf16, #tpu.memory_space<vmem>>, vector<30x1024xbf16>
    %cst_5 = arith.constant dense<0.000000e+00> : vector<512x1024xf32>
    %5 = tpu.matmul %3, %4, %cst_5 {dimension_numbers = #tpu.dot_dimension_numbers<[1], [0], [0], [1], [0, 0, 1, 1], [], []>} : vector<512x30xbf16>, vector<30x1024xbf16>, vector<512x1024xf32> -> vector<512x1024xf32>
    %c0_6 = arith.constant 0 : index
    %c0_7 = arith.constant 0 : index
    %6 = vector.load %arg4[%c0_6, %c0_7] : memref<1x1024xf32, #tpu.memory_space<vmem>>, vector<1x1024xf32>
    %7 = vector.broadcast %6 : vector<1x1024xf32> to vector<512x1024xf32>
    %8 = arith.addf %5, %7 : vector<512x1024xf32>
    %cst_8 = arith.constant 0.000000e+00 : f32
    %9 = vector.broadcast %cst_8 : f32 to vector<512x1024xf32>
    %10 = arith.maximumf %8, %9 : vector<512x1024xf32>
    %11 = arith.truncf %10 : vector<512x1024xf32> to vector<512x1024xbf16>
    %c0_9 = arith.constant 0 : index
    %c0_10 = arith.constant 0 : index
    %12 = vector.load %arg5[%c0_9, %c0_10] : memref<1024x128xbf16, #tpu.memory_space<vmem>>, vector<1024x128xbf16>
    %cst_11 = arith.constant dense<0.000000e+00> : vector<512x128xf32>
    %13 = tpu.matmul %11, %12, %cst_11 {dimension_numbers = #tpu.dot_dimension_numbers<[1], [0], [0], [1], [0, 0, 1, 1], [], []>} : vector<512x1024xbf16>, vector<1024x128xbf16>, vector<512x128xf32> -> vector<512x128xf32>
    %c0_12 = arith.constant 0 : index
    %c0_13 = arith.constant 0 : index
    %14 = vector.load %arg6[%c0_12, %c0_13] : memref<1x128xf32, #tpu.memory_space<vmem>>, vector<1x128xf32>
    %15 = vector.broadcast %14 : vector<1x128xf32> to vector<512x128xf32>
    %16 = arith.addf %13, %15 : vector<512x128xf32>
    %c0_14 = arith.constant 0 : index
    %c0_15 = arith.constant 0 : index
    %17 = vector.load %arg7[%c0_14, %c0_15] : memref<512x128xf32, #tpu.memory_space<vmem>>, vector<512x128xf32>
    tpu.vector_store %arg7[%c0_14, %c0_15], %16 {strides = array<i32>} : memref<512x128xf32, #tpu.memory_space<vmem>>, vector<512x128xf32>,
    return
  }
  func.func @transform_0(%arg0: i32) -> (i32, i32) {
    %c0_i32 = arith.constant 0 : i32
    %c0_i32_0 = arith.constant 0 : i32
    return %arg0, %c0_i32 : i32, i32
  }
  func.func @transform_1(%arg0: i32) -> (i32, i32) {
    %c0_i32 = arith.constant 0 : i32
    %c0_i32_0 = arith.constant 0 : i32
    %c0_i32_1 = arith.constant 0 : i32
    return %c0_i32, %c0_i32_0 : i32, i32
  }
  func.func @transform_2(%arg0: i32) -> (i32, i32) {
    %c0_i32 = arith.constant 0 : i32
    %c0_i32_0 = arith.constant 0 : i32
    %c0_i32_1 = arith.constant 0 : i32
    return %c0_i32, %c0_i32_0 : i32, i32
  }
  func.func @transform_3(%arg0: i32) -> (i32, i32) {
    %c0_i32 = arith.constant 0 : i32
    %c0_i32_0 = arith.constant 0 : i32
    %c0_i32_1 = arith.constant 0 : i32
    return %c0_i32, %c0_i32_0 : i32, i32
  }
  func.func @transform_4(%arg0: i32) -> (i32, i32) {
    %c0_i32 = arith.constant 0 : i32
    %c0_i32_0 = arith.constant 0 : i32
    %c0_i32_1 = arith.constant 0 : i32
    return %c0_i32, %c0_i32_0 : i32, i32
  }
  func.func @transform_5(%arg0: i32) -> (i32, i32) {
    %c0_i32 = arith.constant 0 : i32
    %c0_i32_0 = arith.constant 0 : i32
    %c0_i32_1 = arith.constant 0 : i32
    return %c0_i32, %c0_i32_0 : i32, i32
  }
  func.func @transform_6(%arg0: i32) -> (i32, i32) {
    %c0_i32 = arith.constant 0 : i32
    %c0_i32_0 = arith.constant 0 : i32
    return %arg0, %c0_i32 : i32, i32
  }
}

</mosaic_0001>

<llo_original>
// kernel: tpu_custom_call.1
$region0: #{tpu_custom_call.1}
  #allocation0 [shape = 'u32[]', space=smem, size = 0x4, offset = 0x4, fixed_abs, tag = 'smem constant byte address 0x4 - core index']
  #allocation1 [shape = 'u32[144,128]{1,0:T(1,128)}', space=vmem, size = 0x12000, scoped, tag = 'internal scratch']
  %s0 = inlined_call_operand.vmem [shape: bf16[512,16], index: 0, kind: input, shape index: {}]
  %s1 = inlined_call_operand.vmem [shape: bf16[16,30], index: 1, kind: input, shape index: {}]
  %s2 = inlined_call_operand.vmem [shape: bf16[30,1024], index: 2, kind: input, shape index: {}]
  %s3 = inlined_call_operand.vmem [shape: f32[1,1024], index: 3, kind: input, shape index: {}]
  %s4 = inlined_call_operand.hbm [shape: bf16[1024,128], index: 4, kind: input, shape index: {}]
  %s5 = inlined_call_operand.vmem [shape: f32[1,128], index: 5, kind: input, shape index: {}]
  %s6 = inlined_call_operand.hbm [shape: f32[512,128], index: 6, kind: output, shape index: {}]
  %s7 = sld [smem:[#allocation0]]
  $region38: #{tpu_custom_call.1} parent=0
    _
  %s9 = ssub.s32 1, %s7
  %s10 = scalar_select 0, %s9, %s7
  $region1: #{tpu_custom_call.1} parent=0
    #allocation2 [shape = 'u8[262144]{0}', space=vmem, size = 0x40000, scoped, tag = 'input window, operand 4, single buffered']
    #allocation3 [shape = 's32[1]{0}', space=sflag, size = 0x4, scoped, tag = 'scoped memory for tpu_custom_call.1']
    #allocation4 [shape = 's32[1]{0}', space=sflag, size = 0x4, scoped, tag = 'scoped memory for tpu_custom_call.1']
    #allocation5 [shape = 'u8[262144]{0}', space=vmem, size = 0x40000, scoped, tag = 'output window, operand 0, single buffered']
    %11 = vsyncpa [#allocation3], 0
    %12 = vsyncpa [#allocation4], 0
    // Predicated region
    $region2: #{tpu_custom_call.1} parent=1 // pred_check
      _
    $region3: #{tpu_custom_call.1} parent=1 // pred_check_branch
      %14 = sbr.rel (0) target = $region5
    $region4: #{tpu_custom_call.1} parent=1 // pred_region
      _
    $region5: #{tpu_custom_call.1} parent=1 // pred_fallthru
      _
    // Predicated region
    $region6: #{tpu_custom_call.1} parent=1 // pred_check
      _
    $region7: #{tpu_custom_call.1} parent=1 // pred_check_branch
      %16 = sbr.rel (0) target = $region9
    $region8: #{tpu_custom_call.1} parent=1 // pred_region
      _
    $region9: #{tpu_custom_call.1} parent=1 // pred_fallthru
      _
    // Predicated region
    $region10: #{tpu_custom_call.1} parent=1 // pred_check
      _
    $region11: #{tpu_custom_call.1} parent=1 // pred_check_branch
      %18 = sbr.rel (0) target = $region13
    $region12: #{tpu_custom_call.1} parent=1 // pred_region
      _
    $region13: #{tpu_custom_call.1} parent=1 // pred_fallthru
      _
    // Predicated region
    $region14: #{tpu_custom_call.1} parent=1 // pred_check
      _
    $region15: #{tpu_custom_call.1} parent=1 // pred_check_branch
      %20 = sbr.rel (0) target = $region17
    $region16: #{tpu_custom_call.1} parent=1 // pred_region
      _
    $region17: #{tpu_custom_call.1} parent=1 // pred_fallthru
      _
    // Predicated region
    $region18: #{tpu_custom_call.1} parent=1 // pred_check
      _
    $region19: #{tpu_custom_call.1} parent=1 // pred_check_branch
      %22 = sbr.rel (0) target = $region21
    $region20: #{tpu_custom_call.1} parent=1 // pred_region
      %s24 = ssub.s32 8192, 8192
      %25 = vsyncadd [#allocation3], %s24
      %s26 = sshll.u32 [#allocation2], 4
      %s27 = int_to_ptr.vmem [resolvable:$true] %s26
      %32 = dma.hbm_to_vmem [thread:$0]  %s4, 8192, %s27, [#allocation3], 64, 64, 4
    $region21: #{tpu_custom_call.1} parent=1 // pred_fallthru
      _
    // Predicated region
    $region22: #{tpu_custom_call.1} parent=1 // pred_check
      _
    $region23: #{tpu_custom_call.1} parent=1 // pred_check_branch
      %34 = sbr.rel (0) target = $region25
    $region24: #{tpu_custom_call.1} parent=1 // pred_region
      _
    $region25: #{tpu_custom_call.1} parent=1 // pred_fallthru
      _
    // Predicated region
    $region26: #{tpu_custom_call.1} parent=1 // pred_check
      _
    $region27: #{tpu_custom_call.1} parent=1 // pred_check_branch
      %36 = sbr.rel (0) target = $region29
    $region28: #{tpu_custom_call.1} parent=1 // pred_region
      %37 = dma.done [#allocation3], 8192
    $region29: #{tpu_custom_call.1} parent=1 // pred_fallthru
      _
    %v39 = vld [vmem:[%s0] sm:$0xf]
    %v40 = vld [vmem:[%s0 + $0x4] sm:$0xf]
    %v41 = vld [vmem:[%s0 + $0x8] sm:$0xf]
    %v42 = vld [vmem:[%s0 + $0xc] sm:$0xf]
    %v43 = vld [vmem:[%s0 + $0x10] sm:$0xf]
    %v44 = vld [vmem:[%s0 + $0x14] sm:$0xf]
    %v45 = vld [vmem:[%s0 + $0x18] sm:$0xf]
    %v46 = vld [vmem:[%s0 + $0x1c] sm:$0xf]
    %v47 = vld [vmem:[%s0 + $0x20] sm:$0xf]
    %v48 = vld [vmem:[%s0 + $0x24] sm:$0xf]
    %v49 = vld [vmem:[%s0 + $0x28] sm:$0xf]
    %v50 = vld [vmem:[%s0 + $0x2c] sm:$0xf]
    %v51 = vld [vmem:[%s0 + $0x30] sm:$0xf]
    %v52 = vld [vmem:[%s0 + $0x34] sm:$0xf]
    %v53 = vld [vmem:[%s0 + $0x38] sm:$0xf]
    %v54 = vld [vmem:[%s0 + $0x3c] sm:$0xf]
    %v55 = vld [vmem:[%s0 + $0x40] sm:$0xf]
    %v56 = vld [vmem:[%s0 + $0x44] sm:$0xf]
    %v57 = vld [vmem:[%s0 + $0x48] sm:$0xf]
    %v58 = vld [vmem:[%s0 + $0x4c] sm:$0xf]
    %v59 = vld [vmem:[%s0 + $0x50] sm:$0xf]
    %v60 = vld [vmem:[%s0 + $0x54] sm:$0xf]
    %v61 = vld [vmem:[%s0 + $0x58] sm:$0xf]
    %v62 = vld [vmem:[%s0 + $0x5c] sm:$0xf]
    %v63 = vld [vmem:[%s0 + $0x60] sm:$0xf]
    %v64 = vld [vmem:[%s0 + $0x64] sm:$0xf]
    %v65 = vld [vmem:[%s0 + $0x68] sm:$0xf]
    %v66 = vld [vmem:[%s0 + $0x6c] sm:$0xf]
    %v67 = vld [vmem:[%s0 + $0x70] sm:$0xf]
    %v68 = vld [vmem:[%s0 + $0x74] sm:$0xf]
    %v69 = vld [vmem:[%s0 + $0x78] sm:$0xf]
    %v70 = vld [vmem:[%s0 + $0x7c] sm:$0xf]
    %v71 = vld [vmem:[%s0 + $0x80] sm:$0xf]
    %v72 = vld [vmem:[%s0 + $0x84] sm:$0xf]
    %v73 = vld [vmem:[%s0 + $0x88] sm:$0xf]
    %v74 = vld [vmem:[%s0 + $0x8c] sm:$0xf]
    %v75 = vld [vmem:[%s0 + $0x90] sm:$0xf]
    %v76 = vld [vmem:[%s0 + $0x94] sm:$0xf]
    %v77 = vld [vmem:[%s0 + $0x98] sm:$0xf]
    %v78 = vld [vmem:[%s0 + $0x9c] sm:$0xf]
    %v79 = vld [vmem:[%s0 + $0xa0] sm:$0xf]
    %v80 = vld [vmem:[%s0 + $0xa4] sm:$0xf]
    %v81 = vld [vmem:[%s0 + $0xa8] sm:$0xf]
    %v82 = vld [vmem:[%s0 + $0xac] sm:$0xf]
    %v83 = vld [vmem:[%s0 + $0xb0] sm:$0xf]
    %v84 = vld [vmem:[%s0 + $0xb4] sm:$0xf]
    %v85 = vld [vmem:[%s0 + $0xb8] sm:$0xf]
    %v86 = vld [vmem:[%s0 + $0xbc] sm:$0xf]
    %v87 = vld [vmem:[%s0 + $0xc0] sm:$0xf]
    %v88 = vld [vmem:[%s0 + $0xc4] sm:$0xf]
    %v89 = vld [vmem:[%s0 + $0xc8] sm:$0xf]
    %v90 = vld [vmem:[%s0 + $0xcc] sm:$0xf]
    %v91 = vld [vmem:[%s0 + $0xd0] sm:$0xf]
    %v92 = vld [vmem:[%s0 + $0xd4] sm:$0xf]
    %v93 = vld [vmem:[%s0 + $0xd8] sm:$0xf]
    %v94 = vld [vmem:[%s0 + $0xdc] sm:$0xf]
    %v95 = vld [vmem:[%s0 + $0xe0] sm:$0xf]
    %v96 = vld [vmem:[%s0 + $0xe4] sm:$0xf]
    %v97 = vld [vmem:[%s0 + $0xe8] sm:$0xf]
    %v98 = vld [vmem:[%s0 + $0xec] sm:$0xf]
    %v99 = vld [vmem:[%s0 + $0xf0] sm:$0xf]
    %v100 = vld [vmem:[%s0 + $0xf4] sm:$0xf]
    %v101 = vld [vmem:[%s0 + $0xf8] sm:$0xf]
    %v102 = vld [vmem:[%s0 + $0xfc] sm:$0xf]
    %v103 = vld [vmem:[%s1] sm:$0xf]
    %v104 = vld [vmem:[%s1 + $0x4] sm:$0xf]
    %v169 = vunpack.c.l.b16 %v39
    %v170 = vunpack.c.l.b16 %v40
    %v171 = vunpack.c.l.b16 %v41
    %v172 = vunpack.c.l.b16 %v42
    %v173 = vunpack.c.l.b16 %v43
    %v174 = vunpack.c.l.b16 %v44
    %v175 = vunpack.c.l.b16 %v45
    %v176 = vunpack.c.l.b16 %v46
    %v177 = vunpack.c.l.b16 %v47
    %v178 = vunpack.c.l.b16 %v48
    %v179 = vunpack.c.l.b16 %v49
    %v180 = vunpack.c.l.b16 %v50
    %v181 = vunpack.c.l.b16 %v51
    %v182 = vunpack.c.l.b16 %v52
    %v183 = vunpack.c.l.b16 %v53
    %v184 = vunpack.c.l.b16 %v54
    %v185 = vunpack.c.l.b16 %v55
    %v186 = vunpack.c.l.b16 %v56
    %v187 = vunpack.c.l.b16 %v57
    %v188 = vunpack.c.l.b16 %v58
    %v189 = vunpack.c.l.b16 %v59
    %v190 = vunpack.c.l.b16 %v60
    %v191 = vunpack.c.l.b16 %v61
    %v192 = vunpack.c.l.b16 %v62
    %v193 = vunpack.c.l.b16 %v63
    %v194 = vunpack.c.l.b16 %v64
    %v195 = vunpack.c.l.b16 %v65
    %v196 = vunpack.c.l.b16 %v66
    %v197 = vunpack.c.l.b16 %v67
    %v198 = vunpack.c.l.b16 %v68
    %v199 = vunpack.c.l.b16 %v69
    %v200 = vunpack.c.l.b16 %v70
    %v201 = vunpack.c.l.b16 %v71
    %v202 = vunpack.c.l.b16 %v72
    %v203 = vunpack.c.l.b16 %v73
    %v204 = vunpack.c.l.b16 %v74
    %v205 = vunpack.c.l.b16 %v75
    %v206 = vunpack.c.l.b16 %v76
    %v207 = vunpack.c.l.b16 %v77
    %v208 = vunpack.c.l.b16 %v78
    %v209 = vunpack.c.l.b16 %v79
    %v210 = vunpack.c.l.b16 %v80
    %v211 = vunpack.c.l.b16 %v81
    %v212 = vunpack.c.l.b16 %v82
    %v213 = vunpack.c.l.b16 %v83
    %v214 = vunpack.c.l.b16 %v84
    %v215 = vunpack.c.l.b16 %v85
    %v216 = vunpack.c.l.b16 %v86
    %v217 = vunpack.c.l.b16 %v87
    %v218 = vunpack.c.l.b16 %v88
    %v219 = vunpack.c.l.b16 %v89
    %v220 = vunpack.c.l.b16 %v90
    %v221 = vunpack.c.l.b16 %v91
    %v222 = vunpack.c.l.b16 %v92
    %v223 = vunpack.c.l.b16 %v93
    %v224 = vunpack.c.l.b16 %v94
    %v225 = vunpack.c.l.b16 %v95
    %v226 = vunpack.c.l.b16 %v96
    %v227 = vunpack.c.l.b16 %v97
    %v228 = vunpack.c.l.b16 %v98
    %v229 = vunpack.c.l.b16 %v99
    %v230 = vunpack.c.l.b16 %v100
    %v231 = vunpack.c.l.b16 %v101
    %v232 = vunpack.c.l.b16 %v102
    %v233 = vpack.c.b16 %v170, %v169
    %v234 = vpack.c.b16 %v172, %v171
    %v235 = vpack.c.b16 %v174, %v173
    %v236 = vpack.c.b16 %v176, %v175
    %v237 = vpack.c.b16 %v178, %v177
    %v238 = vpack.c.b16 %v180, %v179
    %v239 = vpack.c.b16 %v182, %v181
    %v240 = vpack.c.b16 %v184, %v183
    %v241 = vpack.c.b16 %v186, %v185
    %v242 = vpack.c.b16 %v188, %v187
    %v243 = vpack.c.b16 %v190, %v189
    %v244 = vpack.c.b16 %v192, %v191
    %v245 = vpack.c.b16 %v194, %v193
    %v246 = vpack.c.b16 %v196, %v195
    %v247 = vpack.c.b16 %v198, %v197
    %v248 = vpack.c.b16 %v200, %v199
    %v249 = vpack.c.b16 %v202, %v201
    %v250 = vpack.c.b16 %v204, %v203
    %v251 = vpack.c.b16 %v206, %v205
    %v252 = vpack.c.b16 %v208, %v207
    %v253 = vpack.c.b16 %v210, %v209
    %v254 = vpack.c.b16 %v212, %v211
    %v255 = vpack.c.b16 %v214, %v213
    %v256 = vpack.c.b16 %v216, %v215
    %v257 = vpack.c.b16 %v218, %v217
    %v258 = vpack.c.b16 %v220, %v219
    %v259 = vpack.c.b16 %v222, %v221
    %v260 = vpack.c.b16 %v224, %v223
    %v261 = vpack.c.b16 %v226, %v225
    %v262 = vpack.c.b16 %v228, %v227
    %v263 = vpack.c.b16 %v230, %v229
    %v264 = vpack.c.b16 %v232, %v231
    %v267 = vunpack.c.l.b16 %v103
    %v268 = vunpack.c.l.b16 %v104
    %v269 = vpack.c.b16 %v268, %v267
    %vm271 = vcmask 130048
    %v273 = vsel %vm271, %v233, 0
    %v276 = vsel %vm271, %v234, 0
    %v279 = vsel %vm271, %v235, 0
    %v282 = vsel %vm271, %v236, 0
    %v285 = vsel %vm271, %v237, 0
    %v288 = vsel %vm271, %v238, 0
    %v291 = vsel %vm271, %v239, 0
    %v294 = vsel %vm271, %v240, 0
    %v297 = vsel %vm271, %v241, 0
    %v300 = vsel %vm271, %v242, 0
    %v303 = vsel %vm271, %v243, 0
    %v306 = vsel %vm271, %v244, 0
    %v309 = vsel %vm271, %v245, 0
    %v312 = vsel %vm271, %v246, 0
    %v315 = vsel %vm271, %v247, 0
    %v318 = vsel %vm271, %v248, 0
    %v321 = vsel %vm271, %v249, 0
    %v324 = vsel %vm271, %v250, 0
    %v327 = vsel %vm271, %v251, 0
    %v330 = vsel %vm271, %v252, 0
    %v333 = vsel %vm271, %v253, 0
    %v336 = vsel %vm271, %v254, 0
    %v339 = vsel %vm271, %v255, 0
    %v342 = vsel %vm271, %v256, 0
    %v345 = vsel %vm271, %v257, 0
    %v348 = vsel %vm271, %v258, 0
    %v351 = vsel %vm271, %v259, 0
    %v354 = vsel %vm271, %v260, 0
    %v357 = vsel %vm271, %v261, 0
    %v360 = vsel %vm271, %v262, 0
    %v363 = vsel %vm271, %v263, 0
    %v366 = vsel %vm271, %v264, 0
    %368 = vmatprep.subr.bf16.mxu0 0
    %369 = vmatpush1.bf16.msra.mxu0 %v269
    %370 = vmatprep.subr.bf16.mxu0 0
    %371 = vmatpush1.bf16.msra.mxu0 0
    %372 = vmatprep.subr.bf16.mxu0 0
    %373 = vmatpush1.bf16.msra.mxu0 0
    %374 = vmatprep.subr.bf16.mxu0 0
    %375 = vmatpush1.bf16.msra.mxu0 0
    %376 = vmatprep.subr.bf16.mxu0 0
    %377 = vmatpush1.bf16.msra.mxu0 0
    %378 = vmatprep.subr.bf16.mxu0 0
    %379 = vmatpush1.bf16.msra.mxu0 0
    %380 = vmatprep.subr.bf16.mxu0 0
    %381 = vmatpush1.bf16.msra.mxu0 0
    %382 = vmatprep.subr.bf16.mxu0 0
    %383 = vmatpush1.bf16.msra.mxu0 0
    %384 = vmatprep.subr.bf16.mxu0 0
    %385 = vmatpush1.bf16.msra.mxu0 0
    %386 = vmatprep.subr.bf16.mxu0 0
    %387 = vmatpush1.bf16.msra.mxu0 0
    %388 = vmatprep.subr.bf16.mxu0 0
    %389 = vmatpush1.bf16.msra.mxu0 0
    %390 = vmatprep.subr.bf16.mxu0 0
    %391 = vmatpush1.bf16.msra.mxu0 0
    %392 = vmatprep.subr.bf16.mxu0 0
    %393 = vmatpush1.bf16.msra.mxu0 0
    %394 = vmatprep.subr.bf16.mxu0 0
    %395 = vmatpush1.bf16.msra.mxu0 0
    %396 = vmatprep.subr.bf16.mxu0 0
    %397 = vmatpush1.bf16.msra.mxu0 0
    %398 = vmatprep.subr.bf16.mxu0 0
    %399 = vmatpush1.bf16.msra.mxu0 0
    %400 = vmatprep.mubr.bf16.mxu0 0
    %401 = vmatmul.mubr.bf16.gmra.mrb[0].mxu0 %v273
    %v402 = vpop.f32.mrb[0].mxu0
    %v403 = vadd.f32 0.0, %v402
    %v404 = vpop.f32.mrb[0].mxu0
    %v405 = vpop.f32.mrb[0].mxu0
    %v406 = vadd.f32 0.0, %v405
    %v407 = vpop.f32.mrb[0].mxu0
    %408 = vmatprep.mubr.bf16.mxu0 0
    %409 = vmatmul.mubr.bf16.gmra.mrb[0].mxu0 %v276
    %v410 = vpop.f32.mrb[0].mxu0
    %v411 = vadd.f32 0.0, %v410
    %v412 = vpop.f32.mrb[0].mxu0
    %v413 = vpop.f32.mrb[0].mxu0
    %v414 = vadd.f32 0.0, %v413
    %v415 = vpop.f32.mrb[0].mxu0
    %416 = vmatprep.mubr.bf16.mxu0 0
    %417 = vmatmul.mubr.bf16.gmra.mrb[0].mxu0 %v279
    %v418 = vpop.f32.mrb[0].mxu0
    %v419 = vadd.f32 0.0, %v418
    %v420 = vpop.f32.mrb[0].mxu0
    %v421 = vpop.f32.mrb[0].mxu0
    %v422 = vadd.f32 0.0, %v421
    %v423 = vpop.f32.mrb[0].mxu0
    %424 = vmatprep.mubr.bf16.mxu0 0
    %425 = vmatmul.mubr.bf16.gmra.mrb[0].mxu0 %v282
    %v426 = vpop.f32.mrb[0].mxu0
    %v427 = vadd.f32 0.0, %v426
    %v428 = vpop.f32.mrb[0].mxu0
    %v429 = vpop.f32.mrb[0].mxu0
    %v430 = vadd.f32 0.0, %v429
    %v431 = vpop.f32.mrb[0].mxu0
    %432 = vmatprep.mubr.bf16.mxu0 0
    %433 = vmatmul.mubr.bf16.gmra.mrb[0].mxu0 %v285
    %v434 = vpop.f32.mrb[0].mxu0
    %v435 = vadd.f32 0.0, %v434
    %v436 = vpop.f32.mrb[0].mxu0
    %v437 = vpop.f32.mrb[0].mxu0
    %v438 = vadd.f32 0.0, %v437
    %v439 = vpop.f32.mrb[0].mxu0
    %440 = vmatprep.mubr.bf16.mxu0 0
    %441 = vmatmul.mubr.bf16.gmra.mrb[0].mxu0 %v288
    %v442 = vpop.f32.mrb[0].mxu0
    %v443 = vadd.f32 0.0, %v442
    %v444 = vpop.f32.mrb[0].mxu0
    %v445 = vpop.f32.mrb[0].mxu0
    %v446 = vadd.f32 0.0, %v445
    %v447 = vpop.f32.mrb[0].mxu0
    %448 = vmatprep.mubr.bf16.mxu0 0
    %449 = vmatmul.mubr.bf16.gmra.mrb[0].mxu0 %v291
    %v450 = vpop.f32.mrb[0].mxu0
    %v451 = vadd.f32 0.0, %v450
    %v452 = vpop.f32.mrb[0].mxu0
    %v453 = vpop.f32.mrb[0].mxu0
    %v454 = vadd.f32 0.0, %v453
    %v455 = vpop.f32.mrb[0].mxu0
    %456 = vmatprep.mubr.bf16.mxu0 0
    %457 = vmatmul.mubr.bf16.gmra.mrb[0].mxu0 %v294
    %v458 = vpop.f32.mrb[0].mxu0
    %v459 = vadd.f32 0.0, %v458
    %v460 = vpop.f32.mrb[0].mxu0
    %v461 = vpop.f32.mrb[0].mxu0
    %v462 = vadd.f32 0.0, %v461
    %v463 = vpop.f32.mrb[0].mxu0
    %464 = vmatprep.mubr.bf16.mxu0 0
    %465 = vmatmul.mubr.bf16.gmra.mrb[0].mxu0 %v297
    %v466 = vpop.f32.mrb[0].mxu0
    %v467 = vadd.f32 0.0, %v466
    %v468 = vpop.f32.mrb[0].mxu0
    %v469 = vpop.f32.mrb[0].mxu0
    %v470 = vadd.f32 0.0, %v469
    %v471 = vpop.f32.mrb[0].mxu0
    %472 = vmatprep.mubr.bf16.mxu0 0
    %473 = vmatmul.mubr.bf16.gmra.mrb[0].mxu0 %v300
    %v474 = vpop.f32.mrb[0].mxu0
    %v475 = vadd.f32 0.0, %v474
    %v476 = vpop.f32.mrb[0].mxu0
    %v477 = vpop.f32.mrb[0].mxu0
    %v478 = vadd.f32 0.0, %v477
    %v479 = vpop.f32.mrb[0].mxu0
    %480 = vmatprep.mubr.bf16.mxu0 0
    %481 = vmatmul.mubr.bf16.gmra.mrb[0].mxu0 %v303
    %v482 = vpop.f32.mrb[0].mxu0
    %v483 = vadd.f32 0.0, %v482
    %v484 = vpop.f32.mrb[0].mxu0
    %v485 = vpop.f32.mrb[0].mxu0
    %v486 = vadd.f32 0.0, %v485
    %v487 = vpop.f32.mrb[0].mxu0
    %488 = vmatprep.mubr.bf16.mxu0 0
    %489 = vmatmul.mubr.bf16.gmra.mrb[0].mxu0 %v306
    %v490 = vpop.f32.mrb[0].mxu0
    %v491 = vadd.f32 0.0, %v490
    %v492 = vpop.f32.mrb[0].mxu0
    %v493 = vpop.f32.mrb[0].mxu0
    %v494 = vadd.f32 0.0, %v493
    %v495 = vpop.f32.mrb[0].mxu0
    %496 = vmatprep.mubr.bf16.mxu0 0
    %497 = vmatmul.mubr.bf16.gmra.mrb[0].mxu0 %v309
    %v498 = vpop.f32.mrb[0].mxu0
    %v499 = vadd.f32 0.0, %v498
    %v500 = vpop.f32.mrb[0].mxu0
    %v501 = vpop.f32.mrb[0].mxu0
    %v502 = vadd.f32 0.0, %v501
    %v503 = vpop.f32.mrb[0].mxu0
    %504 = vmatprep.mubr.bf16.mxu0 0
    %505 = vmatmul.mubr.bf16.gmra.mrb[0].mxu0 %v312
    %v506 = vpop.f32.mrb[0].mxu0
    %v507 = vadd.f32 0.0, %v506
    %v508 = vpop.f32.mrb[0].mxu0
    %v509 = vpop.f32.mrb[0].mxu0
    %v510 = vadd.f32 0.0, %v509
    %v511 = vpop.f32.mrb[0].mxu0
    %512 = vmatprep.mubr.bf16.mxu0 0
    %513 = vmatmul.mubr.bf16.gmra.mrb[0].mxu0 %v315
    %v514 = vpop.f32.mrb[0].mxu0
    %v515 = vadd.f32 0.0, %v514
    %v516 = vpop.f32.mrb[0].mxu0
    %v517 = vpop.f32.mrb[0].mxu0
    %v518 = vadd.f32 0.0, %v517
    %v519 = vpop.f32.mrb[0].mxu0
    %520 = vmatprep.mubr.bf16.mxu0 0
    %521 = vmatmul.mubr.bf16.gmra.mrb[0].mxu0 %v318
    %v522 = vpop.f32.mrb[0].mxu0
    %v523 = vadd.f32 0.0, %v522
    %v524 = vpop.f32.mrb[0].mxu0
    %v525 = vpop.f32.mrb[0].mxu0
    %v526 = vadd.f32 0.0, %v525
    %v527 = vpop.f32.mrb[0].mxu0
    %528 = vmatprep.mubr.bf16.mxu0 0
    %529 = vmatmul.mubr.bf16.gmra.mrb[0].mxu0 %v321
    %v530 = vpop.f32.mrb[0].mxu0
    %v531 = vadd.f32 0.0, %v530
    %v532 = vpop.f32.mrb[0].mxu0
    %v533 = vpop.f32.mrb[0].mxu0
    %v534 = vadd.f32 0.0, %v533
    %v535 = vpop.f32.mrb[0].mxu0
    %536 = vmatprep.mubr.bf16.mxu0 0
    %537 = vmatmul.mubr.bf16.gmra.mrb[0].mxu0 %v324
    %v538 = vpop.f32.mrb[0].mxu0
    %v539 = vadd.f32 0.0, %v538
    %v540 = vpop.f32.mrb[0].mxu0
    %v541 = vpop.f32.mrb[0].mxu0
    %v542 = vadd.f32 0.0, %v541
    %v543 = vpop.f32.mrb[0].mxu0
    %544 = vmatprep.mubr.bf16.mxu0 0
    %545 = vmatmul.mubr.bf16.gmra.mrb[0].mxu0 %v327
    %v546 = vpop.f32.mrb[0].mxu0
    %v547 = vadd.f32 0.0, %v546
    %v548 = vpop.f32.mrb[0].mxu0
    %v549 = vpop.f32.mrb[0].mxu0
    %v550 = vadd.f32 0.0, %v549
    %v551 = vpop.f32.mrb[0].mxu0
    %552 = vmatprep.mubr.bf16.mxu0 0
    %553 = vmatmul.mubr.bf16.gmra.mrb[0].mxu0 %v330
    %v554 = vpop.f32.mrb[0].mxu0
    %v555 = vadd.f32 0.0, %v554
    %v556 = vpop.f32.mrb[0].mxu0
    %v557 = vpop.f32.mrb[0].mxu0
    %v558 = vadd.f32 0.0, %v557
    %v559 = vpop.f32.mrb[0].mxu0
    %560 = vmatprep.mubr.bf16.mxu0 0
    %561 = vmatmul.mubr.bf16.gmra.mrb[0].mxu0 %v333
    %v562 = vpop.f32.mrb[0].mxu0
    %v563 = vadd.f32 0.0, %v562
    %v564 = vpop.f32.mrb[0].mxu0
    %v565 = vpop.f32.mrb[0].mxu0
    %v566 = vadd.f32 0.0, %v565
    %v567 = vpop.f32.mrb[0].mxu0
    %568 = vmatprep.mubr.bf16.mxu0 0
    %569 = vmatmul.mubr.bf16.gmra.mrb[0].mxu0 %v336
    %v570 = vpop.f32.mrb[0].mxu0
    %v571 = vadd.f32 0.0, %v570
    %v572 = vpop.f32.mrb[0].mxu0
    %v573 = vpop.f32.mrb[0].mxu0
    %v574 = vadd.f32 0.0, %v573
    %v575 = vpop.f32.mrb[0].mxu0
    %576 = vmatprep.mubr.bf16.mxu0 0
    %577 = vmatmul.mubr.bf16.gmra.mrb[0].mxu0 %v339
    %v578 = vpop.f32.mrb[0].mxu0
    %v579 = vadd.f32 0.0, %v578
    %v580 = vpop.f32.mrb[0].mxu0
    %v581 = vpop.f32.mrb[0].mxu0
    %v582 = vadd.f32 0.0, %v581
    %v583 = vpop.f32.mrb[0].mxu0
    %584 = vmatprep.mubr.bf16.mxu0 0
    %585 = vmatmul.mubr.bf16.gmra.mrb[0].mxu0 %v342
    %v586 = vpop.f32.mrb[0].mxu0
    %v587 = vadd.f32 0.0, %v586
    %v588 = vpop.f32.mrb[0].mxu0
    %v589 = vpop.f32.mrb[0].mxu0
    %v590 = vadd.f32 0.0, %v589
    %v591 = vpop.f32.mrb[0].mxu0
    %592 = vmatprep.mubr.bf16.mxu0 0
    %593 = vmatmul.mubr.bf16.gmra.mrb[0].mxu0 %v345
    %v594 = vpop.f32.mrb[0].mxu0
    %v595 = vadd.f32 0.0, %v594
    %v596 = vpop.f32.mrb[0].mxu0
    %v597 = vpop.f32.mrb[0].mxu0
    %v598 = vadd.f32 0.0, %v597
    %v599 = vpop.f32.mrb[0].mxu0
    %600 = vmatprep.mubr.bf16.mxu0 0
    %601 = vmatmul.mubr.bf16.gmra.mrb[0].mxu0 %v348
    %v602 = vpop.f32.mrb[0].mxu0
    %v603 = vadd.f32 0.0, %v602
    %v604 = vpop.f32.mrb[0].mxu0
    %v605 = vpop.f32.mrb[0].mxu0
    %v606 = vadd.f32 0.0, %v605
    %v607 = vpop.f32.mrb[0].mxu0
    %608 = vmatprep.mubr.bf16.mxu0 0
    %609 = vmatmul.mubr.bf16.gmra.mrb[0].mxu0 %v351
    %v610 = vpop.f32.mrb[0].mxu0
    %v611 = vadd.f32 0.0, %v610
    %v612 = vpop.f32.mrb[0].mxu0
    %v613 = vpop.f32.mrb[0].mxu0
    %v614 = vadd.f32 0.0, %v613
    %v615 = vpop.f32.mrb[0].mxu0
    %616 = vmatprep.mubr.bf16.mxu0 0
    %617 = vmatmul.mubr.bf16.gmra.mrb[0].mxu0 %v354
    %v618 = vpop.f32.mrb[0].mxu0
    %v619 = vadd.f32 0.0, %v618
    %v620 = vpop.f32.mrb[0].mxu0
    %v621 = vpop.f32.mrb[0].mxu0
    %v622 = vadd.f32 0.0, %v621
    %v623 = vpop.f32.mrb[0].mxu0
    %624 = vmatprep.mubr.bf16.mxu0 0
    %625 = vmatmul.mubr.bf16.gmra.mrb[0].mxu0 %v357
    %v626 = vpop.f32.mrb[0].mxu0
    %v627 = vadd.f32 0.0, %v626
    %v628 = vpop.f32.mrb[0].mxu0
    %v629 = vpop.f32.mrb[0].mxu0
    %v630 = vadd.f32 0.0, %v629
    %v631 = vpop.f32.mrb[0].mxu0
    %632 = vmatprep.mubr.bf16.mxu0 0
    %633 = vmatmul.mubr.bf16.gmra.mrb[0].mxu0 %v360
    %v634 = vpop.f32.mrb[0].mxu0
    %v635 = vadd.f32 0.0, %v634
    %v636 = vpop.f32.mrb[0].mxu0
    %v637 = vpop.f32.mrb[0].mxu0
    %v638 = vadd.f32 0.0, %v637
    %v639 = vpop.f32.mrb[0].mxu0
    %640 = vmatprep.mubr.bf16.mxu0 0
    %641 = vmatmul.mubr.bf16.gmra.mrb[0].mxu0 %v363
    %v642 = vpop.f32.mrb[0].mxu0
    %v643 = vadd.f32 0.0, %v642
    %v644 = vpop.f32.mrb[0].mxu0
    %v645 = vpop.f32.mrb[0].mxu0
    %v646 = vadd.f32 0.0, %v645
    %v647 = vpop.f32.mrb[0].mxu0
    %648 = vmatprep.mubr.bf16.mxu0 0
    %649 = vmatmul.mubr.bf16.gmra.mrb[0].mxu0 %v366
    %v650 = vpop.f32.mrb[0].mxu0
    %v651 = vadd.f32 0.0, %v650
    %v652 = vpop.f32.mrb[0].mxu0
    %v653 = vpop.f32.mrb[0].mxu0
    %v654 = vadd.f32 0.0, %v653
    %v655 = vpop.f32.mrb[0].mxu0
    %656 = vdwg.mxu0
    %v657 = vpack.c.bf16 %v406, %v403
    %v658 = vpack.c.bf16 %v414, %v411
    %v659 = vpack.c.bf16 %v422, %v419
    %v660 = vpack.c.bf16 %v430, %v427
    %v661 = vpack.c.bf16 %v438, %v435
    %v662 = vpack.c.bf16 %v446, %v443
    %v663 = vpack.c.bf16 %v454, %v451
    %v664 = vpack.c.bf16 %v462, %v459
    %v665 = vpack.c.bf16 %v470, %v467
    %v666 = vpack.c.bf16 %v478, %v475
    %v667 = vpack.c.bf16 %v486, %v483
    %v668 = vpack.c.bf16 %v494, %v491
    %v669 = vpack.c.bf16 %v502, %v499
    %v670 = vpack.c.bf16 %v510, %v507
    %v671 = vpack.c.bf16 %v518, %v515
    %v672 = vpack.c.bf16 %v526, %v523
    %v673 = vpack.c.bf16 %v534, %v531
    %v674 = vpack.c.bf16 %v542, %v539
    %v675 = vpack.c.bf16 %v550, %v547
    %v676 = vpack.c.bf16 %v558, %v555
    %v677 = vpack.c.bf16 %v566, %v563
    %v678 = vpack.c.bf16 %v574, %v571
    %v679 = vpack.c.bf16 %v582, %v579
    %v680 = vpack.c.bf16 %v590, %v587
    %v681 = vpack.c.bf16 %v598, %v595
    %v682 = vpack.c.bf16 %v606, %v603
    %v683 = vpack.c.bf16 %v614, %v611
    %v684 = vpack.c.bf16 %v622, %v619
    %v685 = vpack.c.bf16 %v630, %v627
    %v686 = vpack.c.bf16 %v638, %v635
    %v687 = vpack.c.bf16 %v646, %v643
    %v688 = vpack.c.bf16 %v654, %v651
    %v689 = vld [vmem:[%s2] sm:$0xff]
    %v690 = vld [vmem:[%s2 + $0x8] sm:$0xff]
    %v691 = vld [vmem:[%s2 + $0x10] sm:$0xff]
    %v692 = vld [vmem:[%s2 + $0x18] sm:$0xff]
    %v693 = vld [vmem:[%s2 + $0x20] sm:$0xff]
    %v694 = vld [vmem:[%s2 + $0x28] sm:$0xff]
    %v695 = vld [vmem:[%s2 + $0x30] sm:$0xff]
    %v696 = vld [vmem:[%s2 + $0x38] sm:$0xff]
    %v697 = vld [vmem:[%s2 + $0x40] sm:$0xff]
    %v698 = vld [vmem:[%s2 + $0x48] sm:$0xff]
    %v699 = vld [vmem:[%s2 + $0x50] sm:$0xff]
    %v700 = vld [vmem:[%s2 + $0x58] sm:$0xff]
    %v701 = vld [vmem:[%s2 + $0x60] sm:$0x77]
    %v702 = vld [vmem:[%s2 + $0x68] sm:$0x77]
    %v703 = vld [vmem:[%s2 + $0x70] sm:$0x77]
    %v704 = vld [vmem:[%s2 + $0x78] sm:$0x77]
    %v705 = vld [vmem:[%s3] sm:$0xff]
    %v707 = vlaneseq
    %v708 = vshrl.u32 %v707, 7
    %v709 = vsub.s32 0, %v708
    %v710 = vrot.slane %v705, %v709
    %v711 = vlaneseq
    %v712 = vshrl.u32 %v711, 7
    %v713 = vsub.s32 1, %v712
    %v714 = vrot.slane %v705, %v713
    %v715 = vlaneseq
    %v716 = vshrl.u32 %v715, 7
    %v717 = vsub.s32 2, %v716
    %v718 = vrot.slane %v705, %v717
    %v719 = vlaneseq
    %v720 = vshrl.u32 %v719, 7
    %v721 = vsub.s32 3, %v720
    %v722 = vrot.slane %v705, %v721
    %v723 = vlaneseq
    %v724 = vshrl.u32 %v723, 7
    %v725 = vsub.s32 4, %v724
    %v726 = vrot.slane %v705, %v725
    %v727 = vlaneseq
    %v728 = vshrl.u32 %v727, 7
    %v729 = vsub.s32 5, %v728
    %v730 = vrot.slane %v705, %v729
    %v731 = vlaneseq
    %v732 = vshrl.u32 %v731, 7
    %v733 = vsub.s32 6, %v732
    %v734 = vrot.slane %v705, %v733
    %v735 = vlaneseq
    %v736 = vshrl.u32 %v735, 7
    %v737 = vsub.s32 7, %v736
    %v738 = vrot.slane %v705, %v737
    %v763 = vunpack.c.l.b16 %v689
    %v764 = vunpack.c.h.b16 %v689
    %v765 = vunpack.c.l.b16 %v690
    %v766 = vunpack.c.h.b16 %v690
    %v767 = vunpack.c.l.b16 %v691
    %v768 = vunpack.c.h.b16 %v691
    %v769 = vunpack.c.l.b16 %v692
    %v770 = vunpack.c.h.b16 %v692
    %v771 = vunpack.c.l.b16 %v693
    %v772 = vunpack.c.h.b16 %v693
    %v773 = vunpack.c.l.b16 %v694
    %v774 = vunpack.c.h.b16 %v694
    %v775 = vunpack.c.l.b16 %v695
    %v776 = vunpack.c.h.b16 %v695
    %v777 = vunpack.c.l.b16 %v696
    %v778 = vunpack.c.h.b16 %v696
    %v779 = vunpack.c.l.b16 %v697
    %v780 = vunpack.c.h.b16 %v697
    %v781 = vunpack.c.l.b16 %v698
    %v782 = vunpack.c.h.b16 %v698
    %v783 = vunpack.c.l.b16 %v699
    %v784 = vunpack.c.h.b16 %v699
    %v785 = vunpack.c.l.b16 %v700
    %v786 = vunpack.c.h.b16 %v700
    %v787 = vunpack.c.l.b16 %v701
    %v788 = vunpack.c.h.b16 %v701
    %v789 = vunpack.c.l.b16 %v702
    %v790 = vunpack.c.h.b16 %v702
    %v791 = vunpack.c.l.b16 %v703
    %v792 = vunpack.c.h.b16 %v703
    %v793 = vunpack.c.l.b16 %v704
    %v794 = vunpack.c.h.b16 %v704
    %v795 = vpack.c.b16 %v771, %v763
    %v796 = vpack.c.b16 %v772, %v764
    %v797 = vpack.c.b16 %v773, %v765
    %v798 = vpack.c.b16 %v774, %v766
    %v799 = vpack.c.b16 %v775, %v767
    %v800 = vpack.c.b16 %v776, %v768
    %v801 = vpack.c.b16 %v777, %v769
    %v802 = vpack.c.b16 %v778, %v770
    %v803 = vpack.c.b16 %v787, %v779
    %v804 = vpack.c.b16 %v788, %v780
    %v805 = vpack.c.b16 %v789, %v781
    %v806 = vpack.c.b16 %v790, %v782
    %v807 = vpack.c.b16 %v791, %v783
    %v808 = vpack.c.b16 %v792, %v784
    %v809 = vpack.c.b16 %v793, %v785
    %v810 = vpack.c.b16 %v794, %v786
    %vm819 = vcmask 244736
    %v821 = vsel %vm819, %v657, 0
    %v824 = vsel %vm819, %v658, 0
    %v827 = vsel %vm819, %v659, 0
    %v830 = vsel %vm819, %v660, 0
    %v833 = vsel %vm819, %v661, 0
    %v836 = vsel %vm819, %v662, 0
    %v839 = vsel %vm819, %v663, 0
    %v842 = vsel %vm819, %v664, 0
    %v845 = vsel %vm819, %v665, 0
    %v848 = vsel %vm819, %v666, 0
    %v851 = vsel %vm819, %v667, 0
    %v854 = vsel %vm819, %v668, 0
    %v857 = vsel %vm819, %v669, 0
    %v860 = vsel %vm819, %v670, 0
    %v863 = vsel %vm819, %v671, 0
    %v866 = vsel %vm819, %v672, 0
    %v869 = vsel %vm819, %v673, 0
    %v872 = vsel %vm819, %v674, 0
    %v875 = vsel %vm819, %v675, 0
    %v878 = vsel %vm819, %v676, 0
    %v881 = vsel %vm819, %v677, 0
    %v884 = vsel %vm819, %v678, 0
    %v887 = vsel %vm819, %v679, 0
    %v890 = vsel %vm819, %v680, 0
    %v893 = vsel %vm819, %v681, 0
    %v896 = vsel %vm819, %v682, 0
    %v899 = vsel %vm819, %v683, 0
    %v902 = vsel %vm819, %v684, 0
    %v905 = vsel %vm819, %v685, 0
    %v908 = vsel %vm819, %v686, 0
    %v911 = vsel %vm819, %v687, 0
    %v914 = vsel %vm819, %v688, 0
    %vm916 = vcmask 1046528
    %v918 = vsel %vm916, %v803, 0
    %v921 = vsel %vm916, %v804, 0
    %v924 = vsel %vm916, %v805, 0
    %v927 = vsel %vm916, %v806, 0
    %v930 = vsel %vm916, %v807, 0
    %v933 = vsel %vm916, %v808, 0
    %v936 = vsel %vm916, %v809, 0
    %v939 = vsel %vm916, %v810, 0
    %941 = vmatprep.subr.bf16.mxu0 %v796
    %942 = vmatpush1.bf16.msra.mxu0 %v795
    %943 = vmatprep.subr.bf16.mxu0 %v921
    %944 = vmatpush1.bf16.msra.mxu0 %v918
    %945 = vmatprep.subr.bf16.mxu0 0
    %946 = vmatpush1.bf16.msra.mxu0 0
    %947 = vmatprep.subr.bf16.mxu0 0
    %948 = vmatpush1.bf16.msra.mxu0 0
    %949 = vmatprep.subr.bf16.mxu0 0
    %950 = vmatpush1.bf16.msra.mxu0 0
    %951 = vmatprep.subr.bf16.mxu0 0
    %952 = vmatpush1.bf16.msra.mxu0 0
    %953 = vmatprep.subr.bf16.mxu0 0
    %954 = vmatpush1.bf16.msra.mxu0 0
    %955 = vmatprep.subr.bf16.mxu0 0
    %956 = vmatpush1.bf16.msra.mxu0 0
    %957 = vmatprep.subr.bf16.mxu0 0
    %958 = vmatpush1.bf16.msra.mxu0 0
    %959 = vmatprep.subr.bf16.mxu0 0
    %960 = vmatpush1.bf16.msra.mxu0 0
    %961 = vmatprep.subr.bf16.mxu0 0
    %962 = vmatpush1.bf16.msra.mxu0 0
    %963 = vmatprep.subr.bf16.mxu0 0
    %964 = vmatpush1.bf16.msra.mxu0 0
    %965 = vmatprep.subr.bf16.mxu0 0
    %966 = vmatpush1.bf16.msra.mxu0 0
    %967 = vmatprep.subr.bf16.mxu0 0
    %968 = vmatpush1.bf16.msra.mxu0 0
    %969 = vmatprep.subr.bf16.mxu0 0
    %970 = vmatpush1.bf16.msra.mxu0 0
    %971 = vmatprep.subr.bf16.mxu0 0
    %972 = vmatpush1.bf16.msra.mxu0 0
    %973 = vmatprep.mubr.bf16.mxu0 0
    %974 = vmatmul.mubr.bf16.gmra.mrb[0].mxu0 %v821
    %v975 = vpop.f32.mrb[0].mxu0
    %v976 = vadd.f32 %v710, %v975
    %v977 = vpop.f32.mrb[0].mxu0
    %v978 = vadd.f32 %v714, %v977
    %v979 = vpop.f32.mrb[0].mxu0
    %v980 = vadd.f32 %v710, %v979
    %v981 = vpop.f32.mrb[0].mxu0
    %v982 = vadd.f32 %v714, %v981
    %983 = vmatprep.mubr.bf16.mxu0 0
    %984 = vmatmul.mubr.bf16.gmra.mrb[0].mxu0 %v824
    %v985 = vpop.f32.mrb[0].mxu0
    %v986 = vadd.f32 %v710, %v985
    %v987 = vpop.f32.mrb[0].mxu0
    %v988 = vadd.f32 %v714, %v987
    %v989 = vpop.f32.mrb[0].mxu0
    %v990 = vadd.f32 %v710, %v989
    %v991 = vpop.f32.mrb[0].mxu0
    %v992 = vadd.f32 %v714, %v991
    %993 = vmatprep.mubr.bf16.mxu0 0
    %994 = vmatmul.mubr.bf16.gmra.mrb[0].mxu0 %v827
    %v995 = vpop.f32.mrb[0].mxu0
    %v996 = vadd.f32 %v710, %v995
    %v997 = vpop.f32.mrb[0].mxu0
    %v998 = vadd.f32 %v714, %v997
    %v999 = vpop.f32.mrb[0].mxu0
    %v1000 = vadd.f32 %v710, %v999
    %v1001 = vpop.f32.mrb[0].mxu0
    %v1002 = vadd.f32 %v714, %v1001
    %1003 = vmatprep.mubr.bf16.mxu0 0
    %1004 = vmatmul.mubr.bf16.gmra.mrb[0].mxu0 %v830
    %v1005 = vpop.f32.mrb[0].mxu0
    %v1006 = vadd.f32 %v710, %v1005
    %v1007 = vpop.f32.mrb[0].mxu0
    %v1008 = vadd.f32 %v714, %v1007
    %v1009 = vpop.f32.mrb[0].mxu0
    %v1010 = vadd.f32 %v710, %v1009
    %v1011 = vpop.f32.mrb[0].mxu0
    %v1012 = vadd.f32 %v714, %v1011
    %1013 = vmatprep.mubr.bf16.mxu0 0
    %1014 = vmatmul.mubr.bf16.gmra.mrb[0].mxu0 %v833
    %v1015 = vpop.f32.mrb[0].mxu0
    %v1016 = vadd.f32 %v710, %v1015
    %v1017 = vpop.f32.mrb[0].mxu0
    %v1018 = vadd.f32 %v714, %v1017
    %v1019 = vpop.f32.mrb[0].mxu0
    %v1020 = vadd.f32 %v710, %v1019
    %v1021 = vpop.f32.mrb[0].mxu0
    %v1022 = vadd.f32 %v714, %v1021
    %1023 = vmatprep.mubr.bf16.mxu0 0
    %1024 = vmatmul.mubr.bf16.gmra.mrb[0].mxu0 %v836
    %v1025 = vpop.f32.mrb[0].mxu0
    %v1026 = vadd.f32 %v710, %v1025
    %v1027 = vpop.f32.mrb[0].mxu0
    %v1028 = vadd.f32 %v714, %v1027
    %v1029 = vpop.f32.mrb[0].mxu0
    %v1030 = vadd.f32 %v710, %v1029
    %v1031 = vpop.f32.mrb[0].mxu0
    %v1032 = vadd.f32 %v714, %v1031
    %1033 = vmatprep.mubr.bf16.mxu0 0
    %1034 = vmatmul.mubr.bf16.gmra.mrb[0].mxu0 %v839
    %v1035 = vpop.f32.mrb[0].mxu0
    %v1036 = vadd.f32 %v710, %v1035
    %v1037 = vpop.f32.mrb[0].mxu0
    %v1038 = vadd.f32 %v714, %v1037
    %v1039 = vpop.f32.mrb[0].mxu0
    %v1040 = vadd.f32 %v710, %v1039
    %v1041 = vpop.f32.mrb[0].mxu0
    %v1042 = vadd.f32 %v714, %v1041
    %1043 = vmatprep.mubr.bf16.mxu0 0
    %1044 = vmatmul.mubr.bf16.gmra.mrb[0].mxu0 %v842
    %v1045 = vpop.f32.mrb[0].mxu0
    %v1046 = vadd.f32 %v710, %v1045
    %v1047 = vpop.f32.mrb[0].mxu0
    %v1048 = vadd.f32 %v714, %v1047
    %v1049 = vpop.f32.mrb[0].mxu0
    %v1050 = vadd.f32 %v710, %v1049
    %v1051 = vpop.f32.mrb[0].mxu0
    %v1052 = vadd.f32 %v714, %v1051
    %1053 = vmatprep.mubr.bf16.mxu0 0
    %1054 = vmatmul.mubr.bf16.gmra.mrb[0].mxu0 %v845
    %v1055 = vpop.f32.mrb[0].mxu0
    %v1056 = vadd.f32 %v710, %v1055
    %v1057 = vpop.f32.mrb[0].mxu0
    %v1058 = vadd.f32 %v714, %v1057
    %v1059 = vpop.f32.mrb[0].mxu0
    %v1060 = vadd.f32 %v710, %v1059
    %v1061 = vpop.f32.mrb[0].mxu0
    %v1062 = vadd.f32 %v714, %v1061
    %1063 = vmatprep.mubr.bf16.mxu0 0
    %1064 = vmatmul.mubr.bf16.gmra.mrb[0].mxu0 %v848
    %v1065 = vpop.f32.mrb[0].mxu0
    %v1066 = vadd.f32 %v710, %v1065
    %v1067 = vpop.f32.mrb[0].mxu0
    %v1068 = vadd.f32 %v714, %v1067
    %v1069 = vpop.f32.mrb[0].mxu0
    %v1070 = vadd.f32 %v710, %v1069
    %v1071 = vpop.f32.mrb[0].mxu0
    %v1072 = vadd.f32 %v714, %v1071
    %1073 = vmatprep.mubr.bf16.mxu0 0
    %1074 = vmatmul.mubr.bf16.gmra.mrb[0].mxu0 %v851
    %v1075 = vpop.f32.mrb[0].mxu0
    %v1076 = vadd.f32 %v710, %v1075
    %v1077 = vpop.f32.mrb[0].mxu0
    %v1078 = vadd.f32 %v714, %v1077
    %v1079 = vpop.f32.mrb[0].mxu0
    %v1080 = vadd.f32 %v710, %v1079
    %v1081 = vpop.f32.mrb[0].mxu0
    %v1082 = vadd.f32 %v714, %v1081
    %1083 = vmatprep.mubr.bf16.mxu0 0
    %1084 = vmatmul.mubr.bf16.gmra.mrb[0].mxu0 %v854
    %v1085 = vpop.f32.mrb[0].mxu0
    %v1086 = vadd.f32 %v710, %v1085
    %v1087 = vpop.f32.mrb[0].mxu0
    %v1088 = vadd.f32 %v714, %v1087
    %v1089 = vpop.f32.mrb[0].mxu0
    %v1090 = vadd.f32 %v710, %v1089
    %v1091 = vpop.f32.mrb[0].mxu0
    %v1092 = vadd.f32 %v714, %v1091
    %1093 = vmatprep.mubr.bf16.mxu0 0
    %1094 = vmatmul.mubr.bf16.gmra.mrb[0].mxu0 %v857
    %v1095 = vpop.f32.mrb[0].mxu0
    %v1096 = vadd.f32 %v710, %v1095
    %v1097 = vpop.f32.mrb[0].mxu0
    %v1098 = vadd.f32 %v714, %v1097
    %v1099 = vpop.f32.mrb[0].mxu0
    %v1100 = vadd.f32 %v710, %v1099
    %v1101 = vpop.f32.mrb[0].mxu0
    %v1102 = vadd.f32 %v714, %v1101
    %1103 = vmatprep.mubr.bf16.mxu0 0
    %1104 = vmatmul.mubr.bf16.gmra.mrb[0].mxu0 %v860
    %v1105 = vpop.f32.mrb[0].mxu0
    %v1106 = vadd.f32 %v710, %v1105
    %v1107 = vpop.f32.mrb[0].mxu0
    %v1108 = vadd.f32 %v714, %v1107
    %v1109 = vpop.f32.mrb[0].mxu0
    %v1110 = vadd.f32 %v710, %v1109
    %v1111 = vpop.f32.mrb[0].mxu0
    %v1112 = vadd.f32 %v714, %v1111
    %1113 = vmatprep.mubr.bf16.mxu0 0
    %1114 = vmatmul.mubr.bf16.gmra.mrb[0].mxu0 %v863
    %v1115 = vpop.f32.mrb[0].mxu0
    %v1116 = vadd.f32 %v710, %v1115
    %v1117 = vpop.f32.mrb[0].mxu0
    %v1118 = vadd.f32 %v714, %v1117
    %v1119 = vpop.f32.mrb[0].mxu0
    %v1120 = vadd.f32 %v710, %v1119
    %v1121 = vpop.f32.mrb[0].mxu0
    %v1122 = vadd.f32 %v714, %v1121
    %1123 = vmatprep.mubr.bf16.mxu0 0
    %1124 = vmatmul.mubr.bf16.gmra.mrb[0].mxu0 %v866
    %v1125 = vpop.f32.mrb[0].mxu0
    %v1126 = vadd.f32 %v710, %v1125
    %v1127 = vpop.f32.mrb[0].mxu0
    %v1128 = vadd.f32 %v714, %v1127
    %v1129 = vpop.f32.mrb[0].mxu0
    %v1130 = vadd.f32 %v710, %v1129
    %v1131 = vpop.f32.mrb[0].mxu0
    %v1132 = vadd.f32 %v714, %v1131
    %1133 = vmatprep.mubr.bf16.mxu0 0
    %1134 = vmatmul.mubr.bf16.gmra.mrb[0].mxu0 %v869
    %v1135 = vpop.f32.mrb[0].mxu0
    %v1136 = vadd.f32 %v710, %v1135
    %v1137 = vpop.f32.mrb[0].mxu0
    %v1138 = vadd.f32 %v714, %v1137
    %v1139 = vpop.f32.mrb[0].mxu0
    %v1140 = vadd.f32 %v710, %v1139
    %v1141 = vpop.f32.mrb[0].mxu0
    %v1142 = vadd.f32 %v714, %v1141
    %1143 = vmatprep.mubr.bf16.mxu0 0
    %1144 = vmatmul.mubr.bf16.gmra.mrb[0].mxu0 %v872
    %v1145 = vpop.f32.mrb[0].mxu0
    %v1146 = vadd.f32 %v710, %v1145
    %v1147 = vpop.f32.mrb[0].mxu0
    %v1148 = vadd.f32 %v714, %v1147
    %v1149 = vpop.f32.mrb[0].mxu0
    %v1150 = vadd.f32 %v710, %v1149
    %v1151 = vpop.f32.mrb[0].mxu0
    %v1152 = vadd.f32 %v714, %v1151
    %1153 = vmatprep.mubr.bf16.mxu0 0
    %1154 = vmatmul.mubr.bf16.gmra.mrb[0].mxu0 %v875
    %v1155 = vpop.f32.mrb[0].mxu0
    %v1156 = vadd.f32 %v710, %v1155
    %v1157 = vpop.f32.mrb[0].mxu0
    %v1158 = vadd.f32 %v714, %v1157
    %v1159 = vpop.f32.mrb[0].mxu0
    %v1160 = vadd.f32 %v710, %v1159
    %v1161 = vpop.f32.mrb[0].mxu0
    %v1162 = vadd.f32 %v714, %v1161
    %1163 = vmatprep.mubr.bf16.mxu0 0
    %1164 = vmatmul.mubr.bf16.gmra.mrb[0].mxu0 %v878
    %v1165 = vpop.f32.mrb[0].mxu0
    %v1166 = vadd.f32 %v710, %v1165
    %v1167 = vpop.f32.mrb[0].mxu0
    %v1168 = vadd.f32 %v714, %v1167
    %v1169 = vpop.f32.mrb[0].mxu0
    %v1170 = vadd.f32 %v710, %v1169
    %v1171 = vpop.f32.mrb[0].mxu0
    %v1172 = vadd.f32 %v714, %v1171
    %1173 = vmatprep.mubr.bf16.mxu0 0
    %1174 = vmatmul.mubr.bf16.gmra.mrb[0].mxu0 %v881
    %v1175 = vpop.f32.mrb[0].mxu0
    %v1176 = vadd.f32 %v710, %v1175
    %v1177 = vpop.f32.mrb[0].mxu0
    %v1178 = vadd.f32 %v714, %v1177
    %v1179 = vpop.f32.mrb[0].mxu0
    %v1180 = vadd.f32 %v710, %v1179
    %v1181 = vpop.f32.mrb[0].mxu0
    %v1182 = vadd.f32 %v714, %v1181
    %1183 = vmatprep.mubr.bf16.mxu0 0
    %1184 = vmatmul.mubr.bf16.gmra.mrb[0].mxu0 %v884
    %v1185 = vpop.f32.mrb[0].mxu0
    %v1186 = vadd.f32 %v710, %v1185
    %v1187 = vpop.f32.mrb[0].mxu0
    %v1188 = vadd.f32 %v714, %v1187
    %v1189 = vpop.f32.mrb[0].mxu0
    %v1190 = vadd.f32 %v710, %v1189
    %v1191 = vpop.f32.mrb[0].mxu0
    %v1192 = vadd.f32 %v714, %v1191
    %1193 = vmatprep.mubr.bf16.mxu0 0
    %1194 = vmatmul.mubr.bf16.gmra.mrb[0].mxu0 %v887
    %v1195 = vpop.f32.mrb[0].mxu0
    %v1196 = vadd.f32 %v710, %v1195
    %v1197 = vpop.f32.mrb[0].mxu0
    %v1198 = vadd.f32 %v714, %v1197
    %v1199 = vpop.f32.mrb[0].mxu0
    %v1200 = vadd.f32 %v710, %v1199
    %v1201 = vpop.f32.mrb[0].mxu0
    %v1202 = vadd.f32 %v714, %v1201
    %1203 = vmatprep.mubr.bf16.mxu0 0
    %1204 = vmatmul.mubr.bf16.gmra.mrb[0].mxu0 %v890
    %v1205 = vpop.f32.mrb[0].mxu0
    %v1206 = vadd.f32 %v710, %v1205
    %v1207 = vpop.f32.mrb[0].mxu0
    %v1208 = vadd.f32 %v714, %v1207
    %v1209 = vpop.f32.mrb[0].mxu0
    %v1210 = vadd.f32 %v710, %v1209
    %v1211 = vpop.f32.mrb[0].mxu0
    %v1212 = vadd.f32 %v714, %v1211
    %1213 = vmatprep.mubr.bf16.mxu0 0
    %1214 = vmatmul.mubr.bf16.gmra.mrb[0].mxu0 %v893
    %v1215 = vpop.f32.mrb[0].mxu0
    %v1216 = vadd.f32 %v710, %v1215
    %v1217 = vpop.f32.mrb[0].mxu0
    %v1218 = vadd.f32 %v714, %v1217
    %v1219 = vpop.f32.mrb[0].mxu0
    %v1220 = vadd.f32 %v710, %v1219
    %v1221 = vpop.f32.mrb[0].mxu0
    %v1222 = vadd.f32 %v714, %v1221
    %1223 = vmatprep.mubr.bf16.mxu0 0
    %1224 = vmatmul.mubr.bf16.gmra.mrb[0].mxu0 %v896
    %v1225 = vpop.f32.mrb[0].mxu0
    %v1226 = vadd.f32 %v710, %v1225
    %v1227 = vpop.f32.mrb[0].mxu0
    %v1228 = vadd.f32 %v714, %v1227
    %v1229 = vpop.f32.mrb[0].mxu0
    %v1230 = vadd.f32 %v710, %v1229
    %v1231 = vpop.f32.mrb[0].mxu0
    %v1232 = vadd.f32 %v714, %v1231
    %1233 = vmatprep.mubr.bf16.mxu0 0
    %1234 = vmatmul.mubr.bf16.gmra.mrb[0].mxu0 %v899
    %v1235 = vpop.f32.mrb[0].mxu0
    %v1236 = vadd.f32 %v710, %v1235
    %v1237 = vpop.f32.mrb[0].mxu0
    %v1238 = vadd.f32 %v714, %v1237
    %v1239 = vpop.f32.mrb[0].mxu0
    %v1240 = vadd.f32 %v710, %v1239
    %v1241 = vpop.f32.mrb[0].mxu0
    %v1242 = vadd.f32 %v714, %v1241
    %1243 = vmatprep.mubr.bf16.mxu0 0
    %1244 = vmatmul.mubr.bf16.gmra.mrb[0].mxu0 %v902
    %v1245 = vpop.f32.mrb[0].mxu0
    %v1246 = vadd.f32 %v710, %v1245
    %v1247 = vpop.f32.mrb[0].mxu0
    %v1248 = vadd.f32 %v714, %v1247
    %v1249 = vpop.f32.mrb[0].mxu0
    %v1250 = vadd.f32 %v710, %v1249
    %v1251 = vpop.f32.mrb[0].mxu0
    %v1252 = vadd.f32 %v714, %v1251
    %1253 = vmatprep.mubr.bf16.mxu0 0
    %1254 = vmatmul.mubr.bf16.gmra.mrb[0].mxu0 %v905
    %v1255 = vpop.f32.mrb[0].mxu0
    %v1256 = vadd.f32 %v710, %v1255
    %v1257 = vpop.f32.mrb[0].mxu0
    %v1258 = vadd.f32 %v714, %v1257
    %v1259 = vpop.f32.mrb[0].mxu0
    %v1260 = vadd.f32 %v710, %v1259
    %v1261 = vpop.f32.mrb[0].mxu0
    %v1262 = vadd.f32 %v714, %v1261
    %1263 = vmatprep.mubr.bf16.mxu0 0
    %1264 = vmatmul.mubr.bf16.gmra.mrb[0].mxu0 %v908
    %v1265 = vpop.f32.mrb[0].mxu0
    %v1266 = vadd.f32 %v710, %v1265
    %v1267 = vpop.f32.mrb[0].mxu0
    %v1268 = vadd.f32 %v714, %v1267
    %v1269 = vpop.f32.mrb[0].mxu0
    %v1270 = vadd.f32 %v710, %v1269
    %v1271 = vpop.f32.mrb[0].mxu0
    %v1272 = vadd.f32 %v714, %v1271
    %1273 = vmatprep.mubr.bf16.mxu0 0
    %1274 = vmatmul.mubr.bf16.gmra.mrb[0].mxu0 %v911
    %v1275 = vpop.f32.mrb[0].mxu0
    %v1276 = vadd.f32 %v710, %v1275
    %v1277 = vpop.f32.mrb[0].mxu0
    %v1278 = vadd.f32 %v714, %v1277
    %v1279 = vpop.f32.mrb[0].mxu0
    %v1280 = vadd.f32 %v710, %v1279
    %v1281 = vpop.f32.mrb[0].mxu0
    %v1282 = vadd.f32 %v714, %v1281
    %1283 = vmatprep.mubr.bf16.mxu0 0
    %1284 = vmatmul.mubr.bf16.gmra.mrb[0].mxu0 %v914
    %v1285 = vpop.f32.mrb[0].mxu0
    %v1286 = vadd.f32 %v710, %v1285
    %v1287 = vpop.f32.mrb[0].mxu0
    %v1288 = vadd.f32 %v714, %v1287
    %v1289 = vpop.f32.mrb[0].mxu0
    %v1290 = vadd.f32 %v710, %v1289
    %v1291 = vpop.f32.mrb[0].mxu0
    %v1292 = vadd.f32 %v714, %v1291
    %1293 = vdwg.mxu0
    %1294 = vmatprep.subr.bf16.mxu0 %v798
    %1295 = vmatpush1.bf16.msra.mxu0 %v797
    %1296 = vmatprep.subr.bf16.mxu0 %v927
    %1297 = vmatpush1.bf16.msra.mxu0 %v924
    %1298 = vmatprep.subr.bf16.mxu0 0
    %1299 = vmatpush1.bf16.msra.mxu0 0
    %1300 = vmatprep.subr.bf16.mxu0 0
    %1301 = vmatpush1.bf16.msra.mxu0 0
    %1302 = vmatprep.subr.bf16.mxu0 0
    %1303 = vmatpush1.bf16.msra.mxu0 0
    %1304 = vmatprep.subr.bf16.mxu0 0
    %1305 = vmatpush1.bf16.msra.mxu0 0
    %1306 = vmatprep.subr.bf16.mxu0 0
    %1307 = vmatpush1.bf16.msra.mxu0 0
    %1308 = vmatprep.subr.bf16.mxu0 0
    %1309 = vmatpush1.bf16.msra.mxu0 0
    %1310 = vmatprep.subr.bf16.mxu0 0
    %1311 = vmatpush1.bf16.msra.mxu0 0
    %1312 = vmatprep.subr.bf16.mxu0 0
    %1313 = vmatpush1.bf16.msra.mxu0 0
    %1314 = vmatprep.subr.bf16.mxu0 0
    %1315 = vmatpush1.bf16.msra.mxu0 0
    %1316 = vmatprep.subr.bf16.mxu0 0
    %1317 = vmatpush1.bf16.msra.mxu0 0
    %1318 = vmatprep.subr.bf16.mxu0 0
    %1319 = vmatpush1.bf16.msra.mxu0 0
    %1320 = vmatprep.subr.bf16.mxu0 0
    %1321 = vmatpush1.bf16.msra.mxu0 0
    %1322 = vmatprep.subr.bf16.mxu0 0
    %1323 = vmatpush1.bf16.msra.mxu0 0
    %1324 = vmatprep.subr.bf16.mxu0 0
    %1325 = vmatpush1.bf16.msra.mxu0 0
    %1326 = vmatprep.mubr.bf16.mxu0 0
    %1327 = vmatmul.mubr.bf16.gmra.mrb[0].mxu0 %v821
    %v1328 = vpop.f32.mrb[0].mxu0
    %v1329 = vadd.f32 %v718, %v1328
    %v1330 = vpop.f32.mrb[0].mxu0
    %v1331 = vadd.f32 %v722, %v1330
    %v1332 = vpop.f32.mrb[0].mxu0
    %v1333 = vadd.f32 %v718, %v1332
    %v1334 = vpop.f32.mrb[0].mxu0
    %v1335 = vadd.f32 %v722, %v1334
    %1336 = vmatprep.mubr.bf16.mxu0 0
    %1337 = vmatmul.mubr.bf16.gmra.mrb[0].mxu0 %v824
    %v1338 = vpop.f32.mrb[0].mxu0
    %v1339 = vadd.f32 %v718, %v1338
    %v1340 = vpop.f32.mrb[0].mxu0
    %v1341 = vadd.f32 %v722, %v1340
    %v1342 = vpop.f32.mrb[0].mxu0
    %v1343 = vadd.f32 %v718, %v1342
    %v1344 = vpop.f32.mrb[0].mxu0
    %v1345 = vadd.f32 %v722, %v1344
    %1346 = vmatprep.mubr.bf16.mxu0 0
    %1347 = vmatmul.mubr.bf16.gmra.mrb[0].mxu0 %v827
    %v1348 = vpop.f32.mrb[0].mxu0
    %v1349 = vadd.f32 %v718, %v1348
    %v1350 = vpop.f32.mrb[0].mxu0
    %v1351 = vadd.f32 %v722, %v1350
    %v1352 = vpop.f32.mrb[0].mxu0
    %v1353 = vadd.f32 %v718, %v1352
    %v1354 = vpop.f32.mrb[0].mxu0
    %v1355 = vadd.f32 %v722, %v1354
    %1356 = vmatprep.mubr.bf16.mxu0 0
    %1357 = vmatmul.mubr.bf16.gmra.mrb[0].mxu0 %v830
    %v1358 = vpop.f32.mrb[0].mxu0
    %v1359 = vadd.f32 %v718, %v1358
    %v1360 = vpop.f32.mrb[0].mxu0
    %v1361 = vadd.f32 %v722, %v1360
    %v1362 = vpop.f32.mrb[0].mxu0
    %v1363 = vadd.f32 %v718, %v1362
    %v1364 = vpop.f32.mrb[0].mxu0
    %v1365 = vadd.f32 %v722, %v1364
    %1366 = vmatprep.mubr.bf16.mxu0 0
    %1367 = vmatmul.mubr.bf16.gmra.mrb[0].mxu0 %v833
    %v1368 = vpop.f32.mrb[0].mxu0
    %v1369 = vadd.f32 %v718, %v1368
    %v1370 = vpop.f32.mrb[0].mxu0
    %v1371 = vadd.f32 %v722, %v1370
    %v1372 = vpop.f32.mrb[0].mxu0
    %v1373 = vadd.f32 %v718, %v1372
    %v1374 = vpop.f32.mrb[0].mxu0
    %v1375 = vadd.f32 %v722, %v1374
    %1376 = vmatprep.mubr.bf16.mxu0 0
    %1377 = vmatmul.mubr.bf16.gmra.mrb[0].mxu0 %v836
    %v1378 = vpop.f32.mrb[0].mxu0
    %v1379 = vadd.f32 %v718, %v1378
    %v1380 = vpop.f32.mrb[0].mxu0
    %v1381 = vadd.f32 %v722, %v1380
    %v1382 = vpop.f32.mrb[0].mxu0
    %v1383 = vadd.f32 %v718, %v1382
    %v1384 = vpop.f32.mrb[0].mxu0
    %v1385 = vadd.f32 %v722, %v1384
    %1386 = vmatprep.mubr.bf16.mxu0 0
    %1387 = vmatmul.mubr.bf16.gmra.mrb[0].mxu0 %v839
    %v1388 = vpop.f32.mrb[0].mxu0
    %v1389 = vadd.f32 %v718, %v1388
    %v1390 = vpop.f32.mrb[0].mxu0
    %v1391 = vadd.f32 %v722, %v1390
    %v1392 = vpop.f32.mrb[0].mxu0
    %v1393 = vadd.f32 %v718, %v1392
    %v1394 = vpop.f32.mrb[0].mxu0
    %v1395 = vadd.f32 %v722, %v1394
    %1396 = vmatprep.mubr.bf16.mxu0 0
    %1397 = vmatmul.mubr.bf16.gmra.mrb[0].mxu0 %v842
    %v1398 = vpop.f32.mrb[0].mxu0
    %v1399 = vadd.f32 %v718, %v1398
    %v1400 = vpop.f32.mrb[0].mxu0
    %v1401 = vadd.f32 %v722, %v1400
    %v1402 = vpop.f32.mrb[0].mxu0
    %v1403 = vadd.f32 %v718, %v1402
    %v1404 = vpop.f32.mrb[0].mxu0
    %v1405 = vadd.f32 %v722, %v1404
    %1406 = vmatprep.mubr.bf16.mxu0 0
    %1407 = vmatmul.mubr.bf16.gmra.mrb[0].mxu0 %v845
    %v1408 = vpop.f32.mrb[0].mxu0
    %v1409 = vadd.f32 %v718, %v1408
    %v1410 = vpop.f32.mrb[0].mxu0
    %v1411 = vadd.f32 %v722, %v1410
    %v1412 = vpop.f32.mrb[0].mxu0
    %v1413 = vadd.f32 %v718, %v1412
    %v1414 = vpop.f32.mrb[0].mxu0
    %v1415 = vadd.f32 %v722, %v1414
    %1416 = vmatprep.mubr.bf16.mxu0 0
    %1417 = vmatmul.mubr.bf16.gmra.mrb[0].mxu0 %v848
    %v1418 = vpop.f32.mrb[0].mxu0
    %v1419 = vadd.f32 %v718, %v1418
    %v1420 = vpop.f32.mrb[0].mxu0
    %v1421 = vadd.f32 %v722, %v1420
    %v1422 = vpop.f32.mrb[0].mxu0
    %v1423 = vadd.f32 %v718, %v1422
    %v1424 = vpop.f32.mrb[0].mxu0
    %v1425 = vadd.f32 %v722, %v1424
    %1426 = vmatprep.mubr.bf16.mxu0 0
    %1427 = vmatmul.mubr.bf16.gmra.mrb[0].mxu0 %v851
    %v1428 = vpop.f32.mrb[0].mxu0
    %v1429 = vadd.f32 %v718, %v1428
    %v1430 = vpop.f32.mrb[0].mxu0
    %v1431 = vadd.f32 %v722, %v1430
    %v1432 = vpop.f32.mrb[0].mxu0
    %v1433 = vadd.f32 %v718, %v1432
    %v1434 = vpop.f32.mrb[0].mxu0
    %v1435 = vadd.f32 %v722, %v1434
    %1436 = vmatprep.mubr.bf16.mxu0 0
    %1437 = vmatmul.mubr.bf16.gmra.mrb[0].mxu0 %v854
    %v1438 = vpop.f32.mrb[0].mxu0
    %v1439 = vadd.f32 %v718, %v1438
    %v1440 = vpop.f32.mrb[0].mxu0
    %v1441 = vadd.f32 %v722, %v1440
    %v1442 = vpop.f32.mrb[0].mxu0
    %v1443 = vadd.f32 %v718, %v1442
    %v1444 = vpop.f32.mrb[0].mxu0
    %v1445 = vadd.f32 %v722, %v1444
    %1446 = vmatprep.mubr.bf16.mxu0 0
    %1447 = vmatmul.mubr.bf16.gmra.mrb[0].mxu0 %v857
    %v1448 = vpop.f32.mrb[0].mxu0
    %v1449 = vadd.f32 %v718, %v1448
    %v1450 = vpop.f32.mrb[0].mxu0
    %v1451 = vadd.f32 %v722, %v1450
    %v1452 = vpop.f32.mrb[0].mxu0
    %v1453 = vadd.f32 %v718, %v1452
    %v1454 = vpop.f32.mrb[0].mxu0
    %v1455 = vadd.f32 %v722, %v1454
    %1456 = vmatprep.mubr.bf16.mxu0 0
    %1457 = vmatmul.mubr.bf16.gmra.mrb[0].mxu0 %v860
    %v1458 = vpop.f32.mrb[0].mxu0
    %v1459 = vadd.f32 %v718, %v1458
    %v1460 = vpop.f32.mrb[0].mxu0
    %v1461 = vadd.f32 %v722, %v1460
    %v1462 = vpop.f32.mrb[0].mxu0
    %v1463 = vadd.f32 %v718, %v1462
    %v1464 = vpop.f32.mrb[0].mxu0
    %v1465 = vadd.f32 %v722, %v1464
    %1466 = vmatprep.mubr.bf16.mxu0 0
    %1467 = vmatmul.mubr.bf16.gmra.mrb[0].mxu0 %v863
    %v1468 = vpop.f32.mrb[0].mxu0
    %v1469 = vadd.f32 %v718, %v1468
    %v1470 = vpop.f32.mrb[0].mxu0
    %v1471 = vadd.f32 %v722, %v1470
    %v1472 = vpop.f32.mrb[0].mxu0
    %v1473 = vadd.f32 %v718, %v1472
    %v1474 = vpop.f32.mrb[0].mxu0
    %v1475 = vadd.f32 %v722, %v1474
    %1476 = vmatprep.mubr.bf16.mxu0 0
    %1477 = vmatmul.mubr.bf16.gmra.mrb[0].mxu0 %v866
    %v1478 = vpop.f32.mrb[0].mxu0
    %v1479 = vadd.f32 %v718, %v1478
    %v1480 = vpop.f32.mrb[0].mxu0
    %v1481 = vadd.f32 %v722, %v1480
    %v1482 = vpop.f32.mrb[0].mxu0
    %v1483 = vadd.f32 %v718, %v1482
    %v1484 = vpop.f32.mrb[0].mxu0
    %v1485 = vadd.f32 %v722, %v1484
    %1486 = vmatprep.mubr.bf16.mxu0 0
    %1487 = vmatmul.mubr.bf16.gmra.mrb[0].mxu0 %v869
    %v1488 = vpop.f32.mrb[0].mxu0
    %v1489 = vadd.f32 %v718, %v1488
    %v1490 = vpop.f32.mrb[0].mxu0
    %v1491 = vadd.f32 %v722, %v1490
    %v1492 = vpop.f32.mrb[0].mxu0
    %v1493 = vadd.f32 %v718, %v1492
    %v1494 = vpop.f32.mrb[0].mxu0
    %v1495 = vadd.f32 %v722, %v1494
    %1496 = vmatprep.mubr.bf16.mxu0 0
    %1497 = vmatmul.mubr.bf16.gmra.mrb[0].mxu0 %v872
    %v1498 = vpop.f32.mrb[0].mxu0
    %v1499 = vadd.f32 %v718, %v1498
    %v1500 = vpop.f32.mrb[0].mxu0
    %v1501 = vadd.f32 %v722, %v1500
    %v1502 = vpop.f32.mrb[0].mxu0
    %v1503 = vadd.f32 %v718, %v1502
    %v1504 = vpop.f32.mrb[0].mxu0
    %v1505 = vadd.f32 %v722, %v1504
    %1506 = vmatprep.mubr.bf16.mxu0 0
    %1507 = vmatmul.mubr.bf16.gmra.mrb[0].mxu0 %v875
    %v1508 = vpop.f32.mrb[0].mxu0
    %v1509 = vadd.f32 %v718, %v1508
    %v1510 = vpop.f32.mrb[0].mxu0
    %v1511 = vadd.f32 %v722, %v1510
    %v1512 = vpop.f32.mrb[0].mxu0
    %v1513 = vadd.f32 %v718, %v1512
    %v1514 = vpop.f32.mrb[0].mxu0
    %v1515 = vadd.f32 %v722, %v1514
    %1516 = vmatprep.mubr.bf16.mxu0 0
    %1517 = vmatmul.mubr.bf16.gmra.mrb[0].mxu0 %v878
    %v1518 = vpop.f32.mrb[0].mxu0
    %v1519 = vadd.f32 %v718, %v1518
    %v1520 = vpop.f32.mrb[0].mxu0
    %v1521 = vadd.f32 %v722, %v1520
    %v1522 = vpop.f32.mrb[0].mxu0
    %v1523 = vadd.f32 %v718, %v1522
    %v1524 = vpop.f32.mrb[0].mxu0
    %v1525 = vadd.f32 %v722, %v1524
    %1526 = vmatprep.mubr.bf16.mxu0 0
    %1527 = vmatmul.mubr.bf16.gmra.mrb[0].mxu0 %v881
    %v1528 = vpop.f32.mrb[0].mxu0
    %v1529 = vadd.f32 %v718, %v1528
    %v1530 = vpop.f32.mrb[0].mxu0
    %v1531 = vadd.f32 %v722, %v1530
    %v1532 = vpop.f32.mrb[0].mxu0
    %v1533 = vadd.f32 %v718, %v1532
    %v1534 = vpop.f32.mrb[0].mxu0
    %v1535 = vadd.f32 %v722, %v1534
    %1536 = vmatprep.mubr.bf16.mxu0 0
    %1537 = vmatmul.mubr.bf16.gmra.mrb[0].mxu0 %v884
    %v1538 = vpop.f32.mrb[0].mxu0
    %v1539 = vadd.f32 %v718, %v1538
    %v1540 = vpop.f32.mrb[0].mxu0
    %v1541 = vadd.f32 %v722, %v1540
    %v1542 = vpop.f32.mrb[0].mxu0
    %v1543 = vadd.f32 %v718, %v1542
    %v1544 = vpop.f32.mrb[0].mxu0
    %v1545 = vadd.f32 %v722, %v1544
    %1546 = vmatprep.mubr.bf16.mxu0 0
    %1547 = vmatmul.mubr.bf16.gmra.mrb[0].mxu0 %v887
    %v1548 = vpop.f32.mrb[0].mxu0
    %v1549 = vadd.f32 %v718, %v1548
    %v1550 = vpop.f32.mrb[0].mxu0
    %v1551 = vadd.f32 %v722, %v1550
    %v1552 = vpop.f32.mrb[0].mxu0
    %v1553 = vadd.f32 %v718, %v1552
    %v1554 = vpop.f32.mrb[0].mxu0
    %v1555 = vadd.f32 %v722, %v1554
    %1556 = vmatprep.mubr.bf16.mxu0 0
    %1557 = vmatmul.mubr.bf16.gmra.mrb[0].mxu0 %v890
    %v1558 = vpop.f32.mrb[0].mxu0
    %v1559 = vadd.f32 %v718, %v1558
    %v1560 = vpop.f32.mrb[0].mxu0
    %v1561 = vadd.f32 %v722, %v1560
    %v1562 = vpop.f32.mrb[0].mxu0
    %v1563 = vadd.f32 %v718, %v1562
    %v1564 = vpop.f32.mrb[0].mxu0
    %v1565 = vadd.f32 %v722, %v1564
    %1566 = vmatprep.mubr.bf16.mxu0 0
    %1567 = vmatmul.mubr.bf16.gmra.mrb[0].mxu0 %v893
    %v1568 = vpop.f32.mrb[0].mxu0
    %v1569 = vadd.f32 %v718, %v1568
    %v1570 = vpop.f32.mrb[0].mxu0
    %v1571 = vadd.f32 %v722, %v1570
    %v1572 = vpop.f32.mrb[0].mxu0
    %v1573 = vadd.f32 %v718, %v1572
    %v1574 = vpop.f32.mrb[0].mxu0
    %v1575 = vadd.f32 %v722, %v1574
    %1576 = vmatprep.mubr.bf16.mxu0 0
    %1577 = vmatmul.mubr.bf16.gmra.mrb[0].mxu0 %v896
    %v1578 = vpop.f32.mrb[0].mxu0
    %v1579 = vadd.f32 %v718, %v1578
    %v1580 = vpop.f32.mrb[0].mxu0
    %v1581 = vadd.f32 %v722, %v1580
    %v1582 = vpop.f32.mrb[0].mxu0
    %v1583 = vadd.f32 %v718, %v1582
    %v1584 = vpop.f32.mrb[0].mxu0
    %v1585 = vadd.f32 %v722, %v1584
    %1586 = vmatprep.mubr.bf16.mxu0 0
    %1587 = vmatmul.mubr.bf16.gmra.mrb[0].mxu0 %v899
    %v1588 = vpop.f32.mrb[0].mxu0
    %v1589 = vadd.f32 %v718, %v1588
    %v1590 = vpop.f32.mrb[0].mxu0
    %v1591 = vadd.f32 %v722, %v1590
    %v1592 = vpop.f32.mrb[0].mxu0
    %v1593 = vadd.f32 %v718, %v1592
    %v1594 = vpop.f32.mrb[0].mxu0
    %v1595 = vadd.f32 %v722, %v1594
    %1596 = vmatprep.mubr.bf16.mxu0 0
    %1597 = vmatmul.mubr.bf16.gmra.mrb[0].mxu0 %v902
    %v1598 = vpop.f32.mrb[0].mxu0
    %v1599 = vadd.f32 %v718, %v1598
    %v1600 = vpop.f32.mrb[0].mxu0
    %v1601 = vadd.f32 %v722, %v1600
    %v1602 = vpop.f32.mrb[0].mxu0
    %v1603 = vadd.f32 %v718, %v1602
    %v1604 = vpop.f32.mrb[0].mxu0
    %v1605 = vadd.f32 %v722, %v1604
    %1606 = vmatprep.mubr.bf16.mxu0 0
    %1607 = vmatmul.mubr.bf16.gmra.mrb[0].mxu0 %v905
    %v1608 = vpop.f32.mrb[0].mxu0
    %v1609 = vadd.f32 %v718, %v1608
    %v1610 = vpop.f32.mrb[0].mxu0
    %v1611 = vadd.f32 %v722, %v1610
    %v1612 = vpop.f32.mrb[0].mxu0
    %v1613 = vadd.f32 %v718, %v1612
    %v1614 = vpop.f32.mrb[0].mxu0
    %v1615 = vadd.f32 %v722, %v1614
    %1616 = vmatprep.mubr.bf16.mxu0 0
    %1617 = vmatmul.mubr.bf16.gmra.mrb[0].mxu0 %v908
    %v1618 = vpop.f32.mrb[0].mxu0
    %v1619 = vadd.f32 %v718, %v1618
    %v1620 = vpop.f32.mrb[0].mxu0
    %v1621 = vadd.f32 %v722, %v1620
    %v1622 = vpop.f32.mrb[0].mxu0
    %v1623 = vadd.f32 %v718, %v1622
    %v1624 = vpop.f32.mrb[0].mxu0
    %v1625 = vadd.f32 %v722, %v1624
    %1626 = vmatprep.mubr.bf16.mxu0 0
    %1627 = vmatmul.mubr.bf16.gmra.mrb[0].mxu0 %v911
    %v1628 = vpop.f32.mrb[0].mxu0
    %v1629 = vadd.f32 %v718, %v1628
    %v1630 = vpop.f32.mrb[0].mxu0
    %v1631 = vadd.f32 %v722, %v1630
    %v1632 = vpop.f32.mrb[0].mxu0
    %v1633 = vadd.f32 %v718, %v1632
    %v1634 = vpop.f32.mrb[0].mxu0
    %v1635 = vadd.f32 %v722, %v1634
    %1636 = vmatprep.mubr.bf16.mxu0 0
    %1637 = vmatmul.mubr.bf16.gmra.mrb[0].mxu0 %v914
    %v1638 = vpop.f32.mrb[0].mxu0
    %v1639 = vadd.f32 %v718, %v1638
    %v1640 = vpop.f32.mrb[0].mxu0
    %v1641 = vadd.f32 %v722, %v1640
    %v1642 = vpop.f32.mrb[0].mxu0
    %v1643 = vadd.f32 %v718, %v1642
    %v1644 = vpop.f32.mrb[0].mxu0
    %v1645 = vadd.f32 %v722, %v1644
    %1646 = vdwg.mxu0
    %1647 = vmatprep.subr.bf16.mxu0 %v800
    %1648 = vmatpush1.bf16.msra.mxu0 %v799
    %1649 = vmatprep.subr.bf16.mxu0 %v933
    %1650 = vmatpush1.bf16.msra.mxu0 %v930
    %1651 = vmatprep.subr.bf16.mxu0 0
    %1652 = vmatpush1.bf16.msra.mxu0 0
    %1653 = vmatprep.subr.bf16.mxu0 0
    %1654 = vmatpush1.bf16.msra.mxu0 0
    %1655 = vmatprep.subr.bf16.mxu0 0
    %1656 = vmatpush1.bf16.msra.mxu0 0
    %1657 = vmatprep.subr.bf16.mxu0 0
    %1658 = vmatpush1.bf16.msra.mxu0 0
    %1659 = vmatprep.subr.bf16.mxu0 0
    %1660 = vmatpush1.bf16.msra.mxu0 0
    %1661 = vmatprep.subr.bf16.mxu0 0
    %1662 = vmatpush1.bf16.msra.mxu0 0
    %1663 = vmatprep.subr.bf16.mxu0 0
    %1664 = vmatpush1.bf16.msra.mxu0 0
    %1665 = vmatprep.subr.bf16.mxu0 0
    %1666 = vmatpush1.bf16.msra.mxu0 0
    %1667 = vmatprep.subr.bf16.mxu0 0
    %1668 = vmatpush1.bf16.msra.mxu0 0
    %1669 = vmatprep.subr.bf16.mxu0 0
    %1670 = vmatpush1.bf16.msra.mxu0 0
    %1671 = vmatprep.subr.bf16.mxu0 0
    %1672 = vmatpush1.bf16.msra.mxu0 0
    %1673 = vmatprep.subr.bf16.mxu0 0
    %1674 = vmatpush1.bf16.msra.mxu0 0
    %1675 = vmatprep.subr.bf16.mxu0 0
    %1676 = vmatpush1.bf16.msra.mxu0 0
    %1677 = vmatprep.subr.bf16.mxu0 0
    %1678 = vmatpush1.bf16.msra.mxu0 0
    %1679 = vmatprep.mubr.bf16.mxu0 0
    %1680 = vmatmul.mubr.bf16.gmra.mrb[0].mxu0 %v821
    %v1681 = vpop.f32.mrb[0].mxu0
    %v1682 = vadd.f32 %v726, %v1681
    %v1683 = vpop.f32.mrb[0].mxu0
    %v1684 = vadd.f32 %v730, %v1683
    %v1685 = vpop.f32.mrb[0].mxu0
    %v1686 = vadd.f32 %v726, %v1685
    %v1687 = vpop.f32.mrb[0].mxu0
    %v1688 = vadd.f32 %v730, %v1687
    %1689 = vmatprep.mubr.bf16.mxu0 0
    %1690 = vmatmul.mubr.bf16.gmra.mrb[0].mxu0 %v824
    %v1691 = vpop.f32.mrb[0].mxu0
    %v1692 = vadd.f32 %v726, %v1691
    %v1693 = vpop.f32.mrb[0].mxu0
    %v1694 = vadd.f32 %v730, %v1693
    %v1695 = vpop.f32.mrb[0].mxu0
    %v1696 = vadd.f32 %v726, %v1695
    %v1697 = vpop.f32.mrb[0].mxu0
    %v1698 = vadd.f32 %v730, %v1697
    %1699 = vmatprep.mubr.bf16.mxu0 0
    %1700 = vmatmul.mubr.bf16.gmra.mrb[0].mxu0 %v827
    %v1701 = vpop.f32.mrb[0].mxu0
    %v1702 = vadd.f32 %v726, %v1701
    %v1703 = vpop.f32.mrb[0].mxu0
    %v1704 = vadd.f32 %v730, %v1703
    %v1705 = vpop.f32.mrb[0].mxu0
    %v1706 = vadd.f32 %v726, %v1705
    %v1707 = vpop.f32.mrb[0].mxu0
    %v1708 = vadd.f32 %v730, %v1707
    %1709 = vmatprep.mubr.bf16.mxu0 0
    %1710 = vmatmul.mubr.bf16.gmra.mrb[0].mxu0 %v830
    %v1711 = vpop.f32.mrb[0].mxu0
    %v1712 = vadd.f32 %v726, %v1711
    %v1713 = vpop.f32.mrb[0].mxu0
    %v1714 = vadd.f32 %v730, %v1713
    %v1715 = vpop.f32.mrb[0].mxu0
    %v1716 = vadd.f32 %v726, %v1715
    %v1717 = vpop.f32.mrb[0].mxu0
    %v1718 = vadd.f32 %v730, %v1717
    %1719 = vmatprep.mubr.bf16.mxu0 0
    %1720 = vmatmul.mubr.bf16.gmra.mrb[0].mxu0 %v833
    %v1721 = vpop.f32.mrb[0].mxu0
    %v1722 = vadd.f32 %v726, %v1721
    %v1723 = vpop.f32.mrb[0].mxu0
    %v1724 = vadd.f32 %v730, %v1723
    %v1725 = vpop.f32.mrb[0].mxu0
    %v1726 = vadd.f32 %v726, %v1725
    %v1727 = vpop.f32.mrb[0].mxu0
    %v1728 = vadd.f32 %v730, %v1727
    %1729 = vmatprep.mubr.bf16.mxu0 0
    %1730 = vmatmul.mubr.bf16.gmra.mrb[0].mxu0 %v836
    %v1731 = vpop.f32.mrb[0].mxu0
    %v1732 = vadd.f32 %v726, %v1731
    %v1733 = vpop.f32.mrb[0].mxu0
    %v1734 = vadd.f32 %v730, %v1733
    %v1735 = vpop.f32.mrb[0].mxu0
    %v1736 = vadd.f32 %v726, %v1735
    %v1737 = vpop.f32.mrb[0].mxu0
    %v1738 = vadd.f32 %v730, %v1737
    %1739 = vmatprep.mubr.bf16.mxu0 0
    %1740 = vmatmul.mubr.bf16.gmra.mrb[0].mxu0 %v839
    %v1741 = vpop.f32.mrb[0].mxu0
    %v1742 = vadd.f32 %v726, %v1741
    %v1743 = vpop.f32.mrb[0].mxu0
    %v1744 = vadd.f32 %v730, %v1743
    %v1745 = vpop.f32.mrb[0].mxu0
    %v1746 = vadd.f32 %v726, %v1745
    %v1747 = vpop.f32.mrb[0].mxu0
    %v1748 = vadd.f32 %v730, %v1747
    %1749 = vmatprep.mubr.bf16.mxu0 0
    %1750 = vmatmul.mubr.bf16.gmra.mrb[0].mxu0 %v842
    %v1751 = vpop.f32.mrb[0].mxu0
    %v1752 = vadd.f32 %v726, %v1751
    %v1753 = vpop.f32.mrb[0].mxu0
    %v1754 = vadd.f32 %v730, %v1753
    %v1755 = vpop.f32.mrb[0].mxu0
    %v1756 = vadd.f32 %v726, %v1755
    %v1757 = vpop.f32.mrb[0].mxu0
    %v1758 = vadd.f32 %v730, %v1757
    %1759 = vmatprep.mubr.bf16.mxu0 0
    %1760 = vmatmul.mubr.bf16.gmra.mrb[0].mxu0 %v845
    %v1761 = vpop.f32.mrb[0].mxu0
    %v1762 = vadd.f32 %v726, %v1761
    %v1763 = vpop.f32.mrb[0].mxu0
    %v1764 = vadd.f32 %v730, %v1763
    %v1765 = vpop.f32.mrb[0].mxu0
    %v1766 = vadd.f32 %v726, %v1765
    %v1767 = vpop.f32.mrb[0].mxu0
    %v1768 = vadd.f32 %v730, %v1767
    %1769 = vmatprep.mubr.bf16.mxu0 0
    %1770 = vmatmul.mubr.bf16.gmra.mrb[0].mxu0 %v848
    %v1771 = vpop.f32.mrb[0].mxu0
    %v1772 = vadd.f32 %v726, %v1771
    %v1773 = vpop.f32.mrb[0].mxu0
    %v1774 = vadd.f32 %v730, %v1773
    %v1775 = vpop.f32.mrb[0].mxu0
    %v1776 = vadd.f32 %v726, %v1775
    %v1777 = vpop.f32.mrb[0].mxu0
    %v1778 = vadd.f32 %v730, %v1777
    %1779 = vmatprep.mubr.bf16.mxu0 0
    %1780 = vmatmul.mubr.bf16.gmra.mrb[0].mxu0 %v851
    %v1781 = vpop.f32.mrb[0].mxu0
    %v1782 = vadd.f32 %v726, %v1781
    %v1783 = vpop.f32.mrb[0].mxu0
    %v1784 = vadd.f32 %v730, %v1783
    %v1785 = vpop.f32.mrb[0].mxu0
    %v1786 = vadd.f32 %v726, %v1785
    %v1787 = vpop.f32.mrb[0].mxu0
    %v1788 = vadd.f32 %v730, %v1787
    %1789 = vmatprep.mubr.bf16.mxu0 0
    %1790 = vmatmul.mubr.bf16.gmra.mrb[0].mxu0 %v854
    %v1791 = vpop.f32.mrb[0].mxu0
    %v1792 = vadd.f32 %v726, %v1791
    %v1793 = vpop.f32.mrb[0].mxu0
    %v1794 = vadd.f32 %v730, %v1793
    %v1795 = vpop.f32.mrb[0].mxu0
    %v1796 = vadd.f32 %v726, %v1795
    %v1797 = vpop.f32.mrb[0].mxu0
    %v1798 = vadd.f32 %v730, %v1797
    %1799 = vmatprep.mubr.bf16.mxu0 0
    %1800 = vmatmul.mubr.bf16.gmra.mrb[0].mxu0 %v857
    %v1801 = vpop.f32.mrb[0].mxu0
    %v1802 = vadd.f32 %v726, %v1801
    %v1803 = vpop.f32.mrb[0].mxu0
    %v1804 = vadd.f32 %v730, %v1803
    %v1805 = vpop.f32.mrb[0].mxu0
    %v1806 = vadd.f32 %v726, %v1805
    %v1807 = vpop.f32.mrb[0].mxu0
    %v1808 = vadd.f32 %v730, %v1807
    %1809 = vmatprep.mubr.bf16.mxu0 0
    %1810 = vmatmul.mubr.bf16.gmra.mrb[0].mxu0 %v860
    %v1811 = vpop.f32.mrb[0].mxu0
    %v1812 = vadd.f32 %v726, %v1811
    %v1813 = vpop.f32.mrb[0].mxu0
    %v1814 = vadd.f32 %v730, %v1813
    %v1815 = vpop.f32.mrb[0].mxu0
    %v1816 = vadd.f32 %v726, %v1815
    %v1817 = vpop.f32.mrb[0].mxu0
    %v1818 = vadd.f32 %v730, %v1817
    %1819 = vmatprep.mubr.bf16.mxu0 0
    %1820 = vmatmul.mubr.bf16.gmra.mrb[0].mxu0 %v863
    %v1821 = vpop.f32.mrb[0].mxu0
    %v1822 = vadd.f32 %v726, %v1821
    %v1823 = vpop.f32.mrb[0].mxu0
    %v1824 = vadd.f32 %v730, %v1823
    %v1825 = vpop.f32.mrb[0].mxu0
    %v1826 = vadd.f32 %v726, %v1825
    %v1827 = vpop.f32.mrb[0].mxu0
    %v1828 = vadd.f32 %v730, %v1827
    %1829 = vmatprep.mubr.bf16.mxu0 0
    %1830 = vmatmul.mubr.bf16.gmra.mrb[0].mxu0 %v866
    %v1831 = vpop.f32.mrb[0].mxu0
    %v1832 = vadd.f32 %v726, %v1831
    %v1833 = vpop.f32.mrb[0].mxu0
    %v1834 = vadd.f32 %v730, %v1833
    %v1835 = vpop.f32.mrb[0].mxu0
    %v1836 = vadd.f32 %v726, %v1835
    %v1837 = vpop.f32.mrb[0].mxu0
    %v1838 = vadd.f32 %v730, %v1837
    %1839 = vmatprep.mubr.bf16.mxu0 0
    %1840 = vmatmul.mubr.bf16.gmra.mrb[0].mxu0 %v869
    %v1841 = vpop.f32.mrb[0].mxu0
    %v1842 = vadd.f32 %v726, %v1841
    %v1843 = vpop.f32.mrb[0].mxu0
    %v1844 = vadd.f32 %v730, %v1843
    %v1845 = vpop.f32.mrb[0].mxu0
    %v1846 = vadd.f32 %v726, %v1845
    %v1847 = vpop.f32.mrb[0].mxu0
    %v1848 = vadd.f32 %v730, %v1847
    %1849 = vmatprep.mubr.bf16.mxu0 0
    %1850 = vmatmul.mubr.bf16.gmra.mrb[0].mxu0 %v872
    %v1851 = vpop.f32.mrb[0].mxu0
    %v1852 = vadd.f32 %v726, %v1851
    %v1853 = vpop.f32.mrb[0].mxu0
    %v1854 = vadd.f32 %v730, %v1853
    %v1855 = vpop.f32.mrb[0].mxu0
    %v1856 = vadd.f32 %v726, %v1855
    %v1857 = vpop.f32.mrb[0].mxu0
    %v1858 = vadd.f32 %v730, %v1857
    %1859 = vmatprep.mubr.bf16.mxu0 0
    %1860 = vmatmul.mubr.bf16.gmra.mrb[0].mxu0 %v875
    %v1861 = vpop.f32.mrb[0].mxu0
    %v1862 = vadd.f32 %v726, %v1861
    %v1863 = vpop.f32.mrb[0].mxu0
    %v1864 = vadd.f32 %v730, %v1863
    %v1865 = vpop.f32.mrb[0].mxu0
    %v1866 = vadd.f32 %v726, %v1865
    %v1867 = vpop.f32.mrb[0].mxu0
    %v1868 = vadd.f32 %v730, %v1867
    %1869 = vmatprep.mubr.bf16.mxu0 0
    %1870 = vmatmul.mubr.bf16.gmra.mrb[0].mxu0 %v878
    %v1871 = vpop.f32.mrb[0].mxu0
    %v1872 = vadd.f32 %v726, %v1871
    %v1873 = vpop.f32.mrb[0].mxu0
    %v1874 = vadd.f32 %v730, %v1873
    %v1875 = vpop.f32.mrb[0].mxu0
    %v1876 = vadd.f32 %v726, %v1875
    %v1877 = vpop.f32.mrb[0].mxu0
    %v1878 = vadd.f32 %v730, %v1877
    %1879 = vmatprep.mubr.bf16.mxu0 0
    %1880 = vmatmul.mubr.bf16.gmra.mrb[0].mxu0 %v881
    %v1881 = vpop.f32.mrb[0].mxu0
    %v1882 = vadd.f32 %v726, %v1881
    %v1883 = vpop.f32.mrb[0].mxu0
    %v1884 = vadd.f32 %v730, %v1883
    %v1885 = vpop.f32.mrb[0].mxu0
    %v1886 = vadd.f32 %v726, %v1885
    %v1887 = vpop.f32.mrb[0].mxu0
    %v1888 = vadd.f32 %v730, %v1887
    %1889 = vmatprep.mubr.bf16.mxu0 0
    %1890 = vmatmul.mubr.bf16.gmra.mrb[0].mxu0 %v884
    %v1891 = vpop.f32.mrb[0].mxu0
    %v1892 = vadd.f32 %v726, %v1891
    %v1893 = vpop.f32.mrb[0].mxu0
    %v1894 = vadd.f32 %v730, %v1893
    %v1895 = vpop.f32.mrb[0].mxu0
    %v1896 = vadd.f32 %v726, %v1895
    %v1897 = vpop.f32.mrb[0].mxu0
    %v1898 = vadd.f32 %v730, %v1897
    %1899 = vmatprep.mubr.bf16.mxu0 0
    %1900 = vmatmul.mubr.bf16.gmra.mrb[0].mxu0 %v887
    %v1901 = vpop.f32.mrb[0].mxu0
    %v1902 = vadd.f32 %v726, %v1901
    %v1903 = vpop.f32.mrb[0].mxu0
    %v1904 = vadd.f32 %v730, %v1903
    %v1905 = vpop.f32.mrb[0].mxu0
    %v1906 = vadd.f32 %v726, %v1905
    %v1907 = vpop.f32.mrb[0].mxu0
    %v1908 = vadd.f32 %v730, %v1907
    %1909 = vmatprep.mubr.bf16.mxu0 0
    %1910 = vmatmul.mubr.bf16.gmra.mrb[0].mxu0 %v890
    %v1911 = vpop.f32.mrb[0].mxu0
    %v1912 = vadd.f32 %v726, %v1911
    %v1913 = vpop.f32.mrb[0].mxu0
    %v1914 = vadd.f32 %v730, %v1913
    %v1915 = vpop.f32.mrb[0].mxu0
    %v1916 = vadd.f32 %v726, %v1915
    %v1917 = vpop.f32.mrb[0].mxu0
    %v1918 = vadd.f32 %v730, %v1917
    %1919 = vmatprep.mubr.bf16.mxu0 0
    %1920 = vmatmul.mubr.bf16.gmra.mrb[0].mxu0 %v893
    %v1921 = vpop.f32.mrb[0].mxu0
    %v1922 = vadd.f32 %v726, %v1921
    %v1923 = vpop.f32.mrb[0].mxu0
    %v1924 = vadd.f32 %v730, %v1923
    %v1925 = vpop.f32.mrb[0].mxu0
    %v1926 = vadd.f32 %v726, %v1925
    %v1927 = vpop.f32.mrb[0].mxu0
    %v1928 = vadd.f32 %v730, %v1927
    %1929 = vmatprep.mubr.bf16.mxu0 0
    %1930 = vmatmul.mubr.bf16.gmra.mrb[0].mxu0 %v896
    %v1931 = vpop.f32.mrb[0].mxu0
    %v1932 = vadd.f32 %v726, %v1931
    %v1933 = vpop.f32.mrb[0].mxu0
    %v1934 = vadd.f32 %v730, %v1933
    %v1935 = vpop.f32.mrb[0].mxu0
    %v1936 = vadd.f32 %v726, %v1935
    %v1937 = vpop.f32.mrb[0].mxu0
    %v1938 = vadd.f32 %v730, %v1937
    %1939 = vmatprep.mubr.bf16.mxu0 0
    %1940 = vmatmul.mubr.bf16.gmra.mrb[0].mxu0 %v899
    %v1941 = vpop.f32.mrb[0].mxu0
    %v1942 = vadd.f32 %v726, %v1941
    %v1943 = vpop.f32.mrb[0].mxu0
    %v1944 = vadd.f32 %v730, %v1943
    %v1945 = vpop.f32.mrb[0].mxu0
    %v1946 = vadd.f32 %v726, %v1945
    %v1947 = vpop.f32.mrb[0].mxu0
    %v1948 = vadd.f32 %v730, %v1947
    %1949 = vmatprep.mubr.bf16.mxu0 0
    %1950 = vmatmul.mubr.bf16.gmra.mrb[0].mxu0 %v902
    %v1951 = vpop.f32.mrb[0].mxu0
    %v1952 = vadd.f32 %v726, %v1951
    %v1953 = vpop.f32.mrb[0].mxu0
    %v1954 = vadd.f32 %v730, %v1953
    %v1955 = vpop.f32.mrb[0].mxu0
    %v1956 = vadd.f32 %v726, %v1955
    %v1957 = vpop.f32.mrb[0].mxu0
    %v1958 = vadd.f32 %v730, %v1957
    %1959 = vmatprep.mubr.bf16.mxu0 0
    %1960 = vmatmul.mubr.bf16.gmra.mrb[0].mxu0 %v905
    %v1961 = vpop.f32.mrb[0].mxu0
    %v1962 = vadd.f32 %v726, %v1961
    %v1963 = vpop.f32.mrb[0].mxu0
    %v1964 = vadd.f32 %v730, %v1963
    %v1965 = vpop.f32.mrb[0].mxu0
    %v1966 = vadd.f32 %v726, %v1965
    %v1967 = vpop.f32.mrb[0].mxu0
    %v1968 = vadd.f32 %v730, %v1967
    %1969 = vmatprep.mubr.bf16.mxu0 0
    %1970 = vmatmul.mubr.bf16.gmra.mrb[0].mxu0 %v908
    %v1971 = vpop.f32.mrb[0].mxu0
    %v1972 = vadd.f32 %v726, %v1971
    %v1973 = vpop.f32.mrb[0].mxu0
    %v1974 = vadd.f32 %v730, %v1973
    %v1975 = vpop.f32.mrb[0].mxu0
    %v1976 = vadd.f32 %v726, %v1975
    %v1977 = vpop.f32.mrb[0].mxu0
    %v1978 = vadd.f32 %v730, %v1977
    %1979 = vmatprep.mubr.bf16.mxu0 0
    %1980 = vmatmul.mubr.bf16.gmra.mrb[0].mxu0 %v911
    %v1981 = vpop.f32.mrb[0].mxu0
    %v1982 = vadd.f32 %v726, %v1981
    %v1983 = vpop.f32.mrb[0].mxu0
    %v1984 = vadd.f32 %v730, %v1983
    %v1985 = vpop.f32.mrb[0].mxu0
    %v1986 = vadd.f32 %v726, %v1985
    %v1987 = vpop.f32.mrb[0].mxu0
    %v1988 = vadd.f32 %v730, %v1987
    %1989 = vmatprep.mubr.bf16.mxu0 0
    %1990 = vmatmul.mubr.bf16.gmra.mrb[0].mxu0 %v914
    %v1991 = vpop.f32.mrb[0].mxu0
    %v1992 = vadd.f32 %v726, %v1991
    %v1993 = vpop.f32.mrb[0].mxu0
    %v1994 = vadd.f32 %v730, %v1993
    %v1995 = vpop.f32.mrb[0].mxu0
    %v1996 = vadd.f32 %v726, %v1995
    %v1997 = vpop.f32.mrb[0].mxu0
    %v1998 = vadd.f32 %v730, %v1997
    %1999 = vdwg.mxu0
    %2000 = vmatprep.subr.bf16.mxu0 %v802
    %2001 = vmatpush1.bf16.msra.mxu0 %v801
    %2002 = vmatprep.subr.bf16.mxu0 %v939
    %2003 = vmatpush1.bf16.msra.mxu0 %v936
    %2004 = vmatprep.subr.bf16.mxu0 0
    %2005 = vmatpush1.bf16.msra.mxu0 0
    %2006 = vmatprep.subr.bf16.mxu0 0
    %2007 = vmatpush1.bf16.msra.mxu0 0
    %2008 = vmatprep.subr.bf16.mxu0 0
    %2009 = vmatpush1.bf16.msra.mxu0 0
    %2010 = vmatprep.subr.bf16.mxu0 0
    %2011 = vmatpush1.bf16.msra.mxu0 0
    %2012 = vmatprep.subr.bf16.mxu0 0
    %2013 = vmatpush1.bf16.msra.mxu0 0
    %2014 = vmatprep.subr.bf16.mxu0 0
    %2015 = vmatpush1.bf16.msra.mxu0 0
    %2016 = vmatprep.subr.bf16.mxu0 0
    %2017 = vmatpush1.bf16.msra.mxu0 0
    %2018 = vmatprep.subr.bf16.mxu0 0
    %2019 = vmatpush1.bf16.msra.mxu0 0
    %2020 = vmatprep.subr.bf16.mxu0 0
    %2021 = vmatpush1.bf16.msra.mxu0 0
    %2022 = vmatprep.subr.bf16.mxu0 0
    %2023 = vmatpush1.bf16.msra.mxu0 0
    %2024 = vmatprep.subr.bf16.mxu0 0
    %2025 = vmatpush1.bf16.msra.mxu0 0
    %2026 = vmatprep.subr.bf16.mxu0 0
    %2027 = vmatpush1.bf16.msra.mxu0 0
    %2028 = vmatprep.subr.bf16.mxu0 0
    %2029 = vmatpush1.bf16.msra.mxu0 0
    %2030 = vmatprep.subr.bf16.mxu0 0
    %2031 = vmatpush1.bf16.msra.mxu0 0
    %2032 = vmatprep.mubr.bf16.mxu0 0
    %2033 = vmatmul.mubr.bf16.gmra.mrb[0].mxu0 %v821
    %v2034 = vpop.f32.mrb[0].mxu0
    %v2035 = vadd.f32 %v734, %v2034
    %v2036 = vpop.f32.mrb[0].mxu0
    %v2037 = vadd.f32 %v738, %v2036
    %v2038 = vpop.f32.mrb[0].mxu0
    %v2039 = vadd.f32 %v734, %v2038
    %v2040 = vpop.f32.mrb[0].mxu0
    %v2041 = vadd.f32 %v738, %v2040
    %2042 = vmatprep.mubr.bf16.mxu0 0
    %2043 = vmatmul.mubr.bf16.gmra.mrb[0].mxu0 %v824
    %v2044 = vpop.f32.mrb[0].mxu0
    %v2045 = vadd.f32 %v734, %v2044
    %v2046 = vpop.f32.mrb[0].mxu0
    %v2047 = vadd.f32 %v738, %v2046
    %v2048 = vpop.f32.mrb[0].mxu0
    %v2049 = vadd.f32 %v734, %v2048
    %v2050 = vpop.f32.mrb[0].mxu0
    %v2051 = vadd.f32 %v738, %v2050
    %2052 = vmatprep.mubr.bf16.mxu0 0
    %2053 = vmatmul.mubr.bf16.gmra.mrb[0].mxu0 %v827
    %v2054 = vpop.f32.mrb[0].mxu0
    %v2055 = vadd.f32 %v734, %v2054
    %v2056 = vpop.f32.mrb[0].mxu0
    %v2057 = vadd.f32 %v738, %v2056
    %v2058 = vpop.f32.mrb[0].mxu0
    %v2059 = vadd.f32 %v734, %v2058
    %v2060 = vpop.f32.mrb[0].mxu0
    %v2061 = vadd.f32 %v738, %v2060
    %2062 = vmatprep.mubr.bf16.mxu0 0
    %2063 = vmatmul.mubr.bf16.gmra.mrb[0].mxu0 %v830
    %v2064 = vpop.f32.mrb[0].mxu0
    %v2065 = vadd.f32 %v734, %v2064
    %v2066 = vpop.f32.mrb[0].mxu0
    %v2067 = vadd.f32 %v738, %v2066
    %v2068 = vpop.f32.mrb[0].mxu0
    %v2069 = vadd.f32 %v734, %v2068
    %v2070 = vpop.f32.mrb[0].mxu0
    %v2071 = vadd.f32 %v738, %v2070
    %2072 = vmatprep.mubr.bf16.mxu0 0
    %2073 = vmatmul.mubr.bf16.gmra.mrb[0].mxu0 %v833
    %v2074 = vpop.f32.mrb[0].mxu0
    %v2075 = vadd.f32 %v734, %v2074
    %v2076 = vpop.f32.mrb[0].mxu0
    %v2077 = vadd.f32 %v738, %v2076
    %v2078 = vpop.f32.mrb[0].mxu0
    %v2079 = vadd.f32 %v734, %v2078
    %v2080 = vpop.f32.mrb[0].mxu0
    %v2081 = vadd.f32 %v738, %v2080
    %2082 = vmatprep.mubr.bf16.mxu0 0
    %2083 = vmatmul.mubr.bf16.gmra.mrb[0].mxu0 %v836
    %v2084 = vpop.f32.mrb[0].mxu0
    %v2085 = vadd.f32 %v734, %v2084
    %v2086 = vpop.f32.mrb[0].mxu0
    %v2087 = vadd.f32 %v738, %v2086
    %v2088 = vpop.f32.mrb[0].mxu0
    %v2089 = vadd.f32 %v734, %v2088
    %v2090 = vpop.f32.mrb[0].mxu0
    %v2091 = vadd.f32 %v738, %v2090
    %2092 = vmatprep.mubr.bf16.mxu0 0
    %2093 = vmatmul.mubr.bf16.gmra.mrb[0].mxu0 %v839
    %v2094 = vpop.f32.mrb[0].mxu0
    %v2095 = vadd.f32 %v734, %v2094
    %v2096 = vpop.f32.mrb[0].mxu0
    %v2097 = vadd.f32 %v738, %v2096
    %v2098 = vpop.f32.mrb[0].mxu0
    %v2099 = vadd.f32 %v734, %v2098
    %v2100 = vpop.f32.mrb[0].mxu0
    %v2101 = vadd.f32 %v738, %v2100
    %2102 = vmatprep.mubr.bf16.mxu0 0
    %2103 = vmatmul.mubr.bf16.gmra.mrb[0].mxu0 %v842
    %v2104 = vpop.f32.mrb[0].mxu0
    %v2105 = vadd.f32 %v734, %v2104
    %v2106 = vpop.f32.mrb[0].mxu0
    %v2107 = vadd.f32 %v738, %v2106
    %v2108 = vpop.f32.mrb[0].mxu0
    %v2109 = vadd.f32 %v734, %v2108
    %v2110 = vpop.f32.mrb[0].mxu0
    %v2111 = vadd.f32 %v738, %v2110
    %2112 = vmatprep.mubr.bf16.mxu0 0
    %2113 = vmatmul.mubr.bf16.gmra.mrb[0].mxu0 %v845
    %v2114 = vpop.f32.mrb[0].mxu0
    %v2115 = vadd.f32 %v734, %v2114
    %v2116 = vpop.f32.mrb[0].mxu0
    %v2117 = vadd.f32 %v738, %v2116
    %v2118 = vpop.f32.mrb[0].mxu0
    %v2119 = vadd.f32 %v734, %v2118
    %v2120 = vpop.f32.mrb[0].mxu0
    %v2121 = vadd.f32 %v738, %v2120
    %2122 = vmatprep.mubr.bf16.mxu0 0
    %2123 = vmatmul.mubr.bf16.gmra.mrb[0].mxu0 %v848
    %v2124 = vpop.f32.mrb[0].mxu0
    %v2125 = vadd.f32 %v734, %v2124
    %v2126 = vpop.f32.mrb[0].mxu0
    %v2127 = vadd.f32 %v738, %v2126
    %v2128 = vpop.f32.mrb[0].mxu0
    %v2129 = vadd.f32 %v734, %v2128
    %v2130 = vpop.f32.mrb[0].mxu0
    %v2131 = vadd.f32 %v738, %v2130
    %2132 = vmatprep.mubr.bf16.mxu0 0
    %2133 = vmatmul.mubr.bf16.gmra.mrb[0].mxu0 %v851
    %v2134 = vpop.f32.mrb[0].mxu0
    %v2135 = vadd.f32 %v734, %v2134
    %v2136 = vpop.f32.mrb[0].mxu0
    %v2137 = vadd.f32 %v738, %v2136
    %v2138 = vpop.f32.mrb[0].mxu0
    %v2139 = vadd.f32 %v734, %v2138
    %v2140 = vpop.f32.mrb[0].mxu0
    %v2141 = vadd.f32 %v738, %v2140
    %2142 = vmatprep.mubr.bf16.mxu0 0
    %2143 = vmatmul.mubr.bf16.gmra.mrb[0].mxu0 %v854
    %v2144 = vpop.f32.mrb[0].mxu0
    %v2145 = vadd.f32 %v734, %v2144
    %v2146 = vpop.f32.mrb[0].mxu0
    %v2147 = vadd.f32 %v738, %v2146
    %v2148 = vpop.f32.mrb[0].mxu0
    %v2149 = vadd.f32 %v734, %v2148
    %v2150 = vpop.f32.mrb[0].mxu0
    %v2151 = vadd.f32 %v738, %v2150
    %2152 = vmatprep.mubr.bf16.mxu0 0
    %2153 = vmatmul.mubr.bf16.gmra.mrb[0].mxu0 %v857
    %v2154 = vpop.f32.mrb[0].mxu0
    %v2155 = vadd.f32 %v734, %v2154
    %v2156 = vpop.f32.mrb[0].mxu0
    %v2157 = vadd.f32 %v738, %v2156
    %v2158 = vpop.f32.mrb[0].mxu0
    %v2159 = vadd.f32 %v734, %v2158
    %v2160 = vpop.f32.mrb[0].mxu0
    %v2161 = vadd.f32 %v738, %v2160
    %2162 = vmatprep.mubr.bf16.mxu0 0
    %2163 = vmatmul.mubr.bf16.gmra.mrb[0].mxu0 %v860
    %v2164 = vpop.f32.mrb[0].mxu0
    %v2165 = vadd.f32 %v734, %v2164
    %v2166 = vpop.f32.mrb[0].mxu0
    %v2167 = vadd.f32 %v738, %v2166
    %v2168 = vpop.f32.mrb[0].mxu0
    %v2169 = vadd.f32 %v734, %v2168
    %v2170 = vpop.f32.mrb[0].mxu0
    %v2171 = vadd.f32 %v738, %v2170
    %2172 = vmatprep.mubr.bf16.mxu0 0
    %2173 = vmatmul.mubr.bf16.gmra.mrb[0].mxu0 %v863
    %v2174 = vpop.f32.mrb[0].mxu0
    %v2175 = vadd.f32 %v734, %v2174
    %v2176 = vpop.f32.mrb[0].mxu0
    %v2177 = vadd.f32 %v738, %v2176
    %v2178 = vpop.f32.mrb[0].mxu0
    %v2179 = vadd.f32 %v734, %v2178
    %v2180 = vpop.f32.mrb[0].mxu0
    %v2181 = vadd.f32 %v738, %v2180
    %2182 = vmatprep.mubr.bf16.mxu0 0
    %2183 = vmatmul.mubr.bf16.gmra.mrb[0].mxu0 %v866
    %v2184 = vpop.f32.mrb[0].mxu0
    %v2185 = vadd.f32 %v734, %v2184
    %v2186 = vpop.f32.mrb[0].mxu0
    %v2187 = vadd.f32 %v738, %v2186
    %v2188 = vpop.f32.mrb[0].mxu0
    %v2189 = vadd.f32 %v734, %v2188
    %v2190 = vpop.f32.mrb[0].mxu0
    %v2191 = vadd.f32 %v738, %v2190
    %2192 = vmatprep.mubr.bf16.mxu0 0
    %2193 = vmatmul.mubr.bf16.gmra.mrb[0].mxu0 %v869
    %v2194 = vpop.f32.mrb[0].mxu0
    %v2195 = vadd.f32 %v734, %v2194
    %v2196 = vpop.f32.mrb[0].mxu0
    %v2197 = vadd.f32 %v738, %v2196
    %v2198 = vpop.f32.mrb[0].mxu0
    %v2199 = vadd.f32 %v734, %v2198
    %v2200 = vpop.f32.mrb[0].mxu0
    %v2201 = vadd.f32 %v738, %v2200
    %2202 = vmatprep.mubr.bf16.mxu0 0
    %2203 = vmatmul.mubr.bf16.gmra.mrb[0].mxu0 %v872
    %v2204 = vpop.f32.mrb[0].mxu0
    %v2205 = vadd.f32 %v734, %v2204
    %v2206 = vpop.f32.mrb[0].mxu0
    %v2207 = vadd.f32 %v738, %v2206
    %v2208 = vpop.f32.mrb[0].mxu0
    %v2209 = vadd.f32 %v734, %v2208
    %v2210 = vpop.f32.mrb[0].mxu0
    %v2211 = vadd.f32 %v738, %v2210
    %2212 = vmatprep.mubr.bf16.mxu0 0
    %2213 = vmatmul.mubr.bf16.gmra.mrb[0].mxu0 %v875
    %v2214 = vpop.f32.mrb[0].mxu0
    %v2215 = vadd.f32 %v734, %v2214
    %v2216 = vpop.f32.mrb[0].mxu0
    %v2217 = vadd.f32 %v738, %v2216
    %v2218 = vpop.f32.mrb[0].mxu0
    %v2219 = vadd.f32 %v734, %v2218
    %v2220 = vpop.f32.mrb[0].mxu0
    %v2221 = vadd.f32 %v738, %v2220
    %2222 = vmatprep.mubr.bf16.mxu0 0
    %2223 = vmatmul.mubr.bf16.gmra.mrb[0].mxu0 %v878
    %v2224 = vpop.f32.mrb[0].mxu0
    %v2225 = vadd.f32 %v734, %v2224
    %v2226 = vpop.f32.mrb[0].mxu0
    %v2227 = vadd.f32 %v738, %v2226
    %v2228 = vpop.f32.mrb[0].mxu0
    %v2229 = vadd.f32 %v734, %v2228
    %v2230 = vpop.f32.mrb[0].mxu0
    %v2231 = vadd.f32 %v738, %v2230
    %2232 = vmatprep.mubr.bf16.mxu0 0
    %2233 = vmatmul.mubr.bf16.gmra.mrb[0].mxu0 %v881
    %v2234 = vpop.f32.mrb[0].mxu0
    %v2235 = vadd.f32 %v734, %v2234
    %v2236 = vpop.f32.mrb[0].mxu0
    %v2237 = vadd.f32 %v738, %v2236
    %v2238 = vpop.f32.mrb[0].mxu0
    %v2239 = vadd.f32 %v734, %v2238
    %v2240 = vpop.f32.mrb[0].mxu0
    %v2241 = vadd.f32 %v738, %v2240
    %2242 = vmatprep.mubr.bf16.mxu0 0
    %2243 = vmatmul.mubr.bf16.gmra.mrb[0].mxu0 %v884
    %v2244 = vpop.f32.mrb[0].mxu0
    %v2245 = vadd.f32 %v734, %v2244
    %v2246 = vpop.f32.mrb[0].mxu0
    %v2247 = vadd.f32 %v738, %v2246
    %v2248 = vpop.f32.mrb[0].mxu0
    %v2249 = vadd.f32 %v734, %v2248
    %v2250 = vpop.f32.mrb[0].mxu0
    %v2251 = vadd.f32 %v738, %v2250
    %2252 = vmatprep.mubr.bf16.mxu0 0
    %2253 = vmatmul.mubr.bf16.gmra.mrb[0].mxu0 %v887
    %v2254 = vpop.f32.mrb[0].mxu0
    %v2255 = vadd.f32 %v734, %v2254
    %v2256 = vpop.f32.mrb[0].mxu0
    %v2257 = vadd.f32 %v738, %v2256
    %v2258 = vpop.f32.mrb[0].mxu0
    %v2259 = vadd.f32 %v734, %v2258
    %v2260 = vpop.f32.mrb[0].mxu0
    %v2261 = vadd.f32 %v738, %v2260
    %2262 = vmatprep.mubr.bf16.mxu0 0
    %2263 = vmatmul.mubr.bf16.gmra.mrb[0].mxu0 %v890
    %v2264 = vpop.f32.mrb[0].mxu0
    %v2265 = vadd.f32 %v734, %v2264
    %v2266 = vpop.f32.mrb[0].mxu0
    %v2267 = vadd.f32 %v738, %v2266
    %v2268 = vpop.f32.mrb[0].mxu0
    %v2269 = vadd.f32 %v734, %v2268
    %v2270 = vpop.f32.mrb[0].mxu0
    %v2271 = vadd.f32 %v738, %v2270
    %2272 = vmatprep.mubr.bf16.mxu0 0
    %2273 = vmatmul.mubr.bf16.gmra.mrb[0].mxu0 %v893
    %v2274 = vpop.f32.mrb[0].mxu0
    %v2275 = vadd.f32 %v734, %v2274
    %v2276 = vpop.f32.mrb[0].mxu0
    %v2277 = vadd.f32 %v738, %v2276
    %v2278 = vpop.f32.mrb[0].mxu0
    %v2279 = vadd.f32 %v734, %v2278
    %v2280 = vpop.f32.mrb[0].mxu0
    %v2281 = vadd.f32 %v738, %v2280
    %2282 = vmatprep.mubr.bf16.mxu0 0
    %2283 = vmatmul.mubr.bf16.gmra.mrb[0].mxu0 %v896
    %v2284 = vpop.f32.mrb[0].mxu0
    %v2285 = vadd.f32 %v734, %v2284
    %v2286 = vpop.f32.mrb[0].mxu0
    %v2287 = vadd.f32 %v738, %v2286
    %v2288 = vpop.f32.mrb[0].mxu0
    %v2289 = vadd.f32 %v734, %v2288
    %v2290 = vpop.f32.mrb[0].mxu0
    %v2291 = vadd.f32 %v738, %v2290
    %2292 = vmatprep.mubr.bf16.mxu0 0
    %2293 = vmatmul.mubr.bf16.gmra.mrb[0].mxu0 %v899
    %v2294 = vpop.f32.mrb[0].mxu0
    %v2295 = vadd.f32 %v734, %v2294
    %v2296 = vpop.f32.mrb[0].mxu0
    %v2297 = vadd.f32 %v738, %v2296
    %v2298 = vpop.f32.mrb[0].mxu0
    %v2299 = vadd.f32 %v734, %v2298
    %v2300 = vpop.f32.mrb[0].mxu0
    %v2301 = vadd.f32 %v738, %v2300
    %2302 = vmatprep.mubr.bf16.mxu0 0
    %2303 = vmatmul.mubr.bf16.gmra.mrb[0].mxu0 %v902
    %v2304 = vpop.f32.mrb[0].mxu0
    %v2305 = vadd.f32 %v734, %v2304
    %v2306 = vpop.f32.mrb[0].mxu0
    %v2307 = vadd.f32 %v738, %v2306
    %v2308 = vpop.f32.mrb[0].mxu0
    %v2309 = vadd.f32 %v734, %v2308
    %v2310 = vpop.f32.mrb[0].mxu0
    %v2311 = vadd.f32 %v738, %v2310
    %2312 = vmatprep.mubr.bf16.mxu0 0
    %2313 = vmatmul.mubr.bf16.gmra.mrb[0].mxu0 %v905
    %v2314 = vpop.f32.mrb[0].mxu0
    %v2315 = vadd.f32 %v734, %v2314
    %v2316 = vpop.f32.mrb[0].mxu0
    %v2317 = vadd.f32 %v738, %v2316
    %v2318 = vpop.f32.mrb[0].mxu0
    %v2319 = vadd.f32 %v734, %v2318
    %v2320 = vpop.f32.mrb[0].mxu0
    %v2321 = vadd.f32 %v738, %v2320
    %2322 = vmatprep.mubr.bf16.mxu0 0
    %2323 = vmatmul.mubr.bf16.gmra.mrb[0].mxu0 %v908
    %v2324 = vpop.f32.mrb[0].mxu0
    %v2325 = vadd.f32 %v734, %v2324
    %v2326 = vpop.f32.mrb[0].mxu0
    %v2327 = vadd.f32 %v738, %v2326
    %v2328 = vpop.f32.mrb[0].mxu0
    %v2329 = vadd.f32 %v734, %v2328
    %v2330 = vpop.f32.mrb[0].mxu0
    %v2331 = vadd.f32 %v738, %v2330
    %2332 = vmatprep.mubr.bf16.mxu0 0
    %2333 = vmatmul.mubr.bf16.gmra.mrb[0].mxu0 %v911
    %v2334 = vpop.f32.mrb[0].mxu0
    %v2335 = vadd.f32 %v734, %v2334
    %v2336 = vpop.f32.mrb[0].mxu0
    %v2337 = vadd.f32 %v738, %v2336
    %v2338 = vpop.f32.mrb[0].mxu0
    %v2339 = vadd.f32 %v734, %v2338
    %v2340 = vpop.f32.mrb[0].mxu0
    %v2341 = vadd.f32 %v738, %v2340
    %2342 = vmatprep.mubr.bf16.mxu0 0
    %2343 = vmatmul.mubr.bf16.gmra.mrb[0].mxu0 %v914
    %v2344 = vpop.f32.mrb[0].mxu0
    %v2345 = vadd.f32 %v734, %v2344
    %v2346 = vpop.f32.mrb[0].mxu0
    %v2347 = vadd.f32 %v738, %v2346
    %v2348 = vpop.f32.mrb[0].mxu0
    %v2349 = vadd.f32 %v734, %v2348
    %v2350 = vpop.f32.mrb[0].mxu0
    %v2351 = vadd.f32 %v738, %v2350
    %2352 = vdwg.mxu0
    %v2353 = vmax.f32 %v976, 0.0
    %v2354 = vmax.f32 %v978, 0.0
    %v2355 = vmax.f32 %v1329, 0.0
    %v2356 = vmax.f32 %v1331, 0.0
    %v2357 = vmax.f32 %v1682, 0.0
    %v2358 = vmax.f32 %v1684, 0.0
    %v2359 = vmax.f32 %v2035, 0.0
    %v2360 = vmax.f32 %v2037, 0.0
    %v2361 = vmax.f32 %v980, 0.0
    %v2362 = vmax.f32 %v982, 0.0
    %v2363 = vmax.f32 %v1333, 0.0
    %v2364 = vmax.f32 %v1335, 0.0
    %v2365 = vmax.f32 %v1686, 0.0
    %v2366 = vmax.f32 %v1688, 0.0
    %v2367 = vmax.f32 %v2039, 0.0
    %v2368 = vmax.f32 %v2041, 0.0
    %v2369 = vmax.f32 %v986, 0.0
    %v2370 = vmax.f32 %v988, 0.0
    %v2371 = vmax.f32 %v1339, 0.0
    %v2372 = vmax.f32 %v1341, 0.0
    %v2373 = vmax.f32 %v1692, 0.0
    %v2374 = vmax.f32 %v1694, 0.0
    %v2375 = vmax.f32 %v2045, 0.0
    %v2376 = vmax.f32 %v2047, 0.0
    %v2377 = vmax.f32 %v990, 0.0
    %v2378 = vmax.f32 %v992, 0.0
    %v2379 = vmax.f32 %v1343, 0.0
    %v2380 = vmax.f32 %v1345, 0.0
    %v2381 = vmax.f32 %v1696, 0.0
    %v2382 = vmax.f32 %v1698, 0.0
    %v2383 = vmax.f32 %v2049, 0.0
    %v2384 = vmax.f32 %v2051, 0.0
    %v2385 = vmax.f32 %v996, 0.0
    %v2386 = vmax.f32 %v998, 0.0
    %v2387 = vmax.f32 %v1349, 0.0
    %v2388 = vmax.f32 %v1351, 0.0
    %v2389 = vmax.f32 %v1702, 0.0
    %v2390 = vmax.f32 %v1704, 0.0
    %v2391 = vmax.f32 %v2055, 0.0
    %v2392 = vmax.f32 %v2057, 0.0
    %v2393 = vmax.f32 %v1000, 0.0
    %v2394 = vmax.f32 %v1002, 0.0
    %v2395 = vmax.f32 %v1353, 0.0
    %v2396 = vmax.f32 %v1355, 0.0
    %v2397 = vmax.f32 %v1706, 0.0
    %v2398 = vmax.f32 %v1708, 0.0
    %v2399 = vmax.f32 %v2059, 0.0
    %v2400 = vmax.f32 %v2061, 0.0
    %v2401 = vmax.f32 %v1006, 0.0
    %v2402 = vmax.f32 %v1008, 0.0
    %v2403 = vmax.f32 %v1359, 0.0
    %v2404 = vmax.f32 %v1361, 0.0
    %v2405 = vmax.f32 %v1712, 0.0
    %v2406 = vmax.f32 %v1714, 0.0
    %v2407 = vmax.f32 %v2065, 0.0
    %v2408 = vmax.f32 %v2067, 0.0
    %v2409 = vmax.f32 %v1010, 0.0
    %v2410 = vmax.f32 %v1012, 0.0
    %v2411 = vmax.f32 %v1363, 0.0
    %v2412 = vmax.f32 %v1365, 0.0
    %v2413 = vmax.f32 %v1716, 0.0
    %v2414 = vmax.f32 %v1718, 0.0
    %v2415 = vmax.f32 %v2069, 0.0
    %v2416 = vmax.f32 %v2071, 0.0
    %v2417 = vmax.f32 %v1016, 0.0
    %v2418 = vmax.f32 %v1018, 0.0
    %v2419 = vmax.f32 %v1369, 0.0
    %v2420 = vmax.f32 %v1371, 0.0
    %v2421 = vmax.f32 %v1722, 0.0
    %v2422 = vmax.f32 %v1724, 0.0
    %v2423 = vmax.f32 %v2075, 0.0
    %v2424 = vmax.f32 %v2077, 0.0
    %v2425 = vmax.f32 %v1020, 0.0
    %v2426 = vmax.f32 %v1022, 0.0
    %v2427 = vmax.f32 %v1373, 0.0
    %v2428 = vmax.f32 %v1375, 0.0
    %v2429 = vmax.f32 %v1726, 0.0
    %v2430 = vmax.f32 %v1728, 0.0
    %v2431 = vmax.f32 %v2079, 0.0
    %v2432 = vmax.f32 %v2081, 0.0
    %v2433 = vmax.f32 %v1026, 0.0
    %v2434 = vmax.f32 %v1028, 0.0
    %v2435 = vmax.f32 %v1379, 0.0
    %v2436 = vmax.f32 %v1381, 0.0
    %v2437 = vmax.f32 %v1732, 0.0
    %v2438 = vmax.f32 %v1734, 0.0
    %v2439 = vmax.f32 %v2085, 0.0
    %v2440 = vmax.f32 %v2087, 0.0
    %v2441 = vmax.f32 %v1030, 0.0
    %v2442 = vmax.f32 %v1032, 0.0
    %v2443 = vmax.f32 %v1383, 0.0
    %v2444 = vmax.f32 %v1385, 0.0
    %v2445 = vmax.f32 %v1736, 0.0
    %v2446 = vmax.f32 %v1738, 0.0
    %v2447 = vmax.f32 %v2089, 0.0
    %v2448 = vmax.f32 %v2091, 0.0
    %v2449 = vmax.f32 %v1036, 0.0
    %v2450 = vmax.f32 %v1038, 0.0
    %v2451 = vmax.f32 %v1389, 0.0
    %v2452 = vmax.f32 %v1391, 0.0
    %v2453 = vmax.f32 %v1742, 0.0
    %v2454 = vmax.f32 %v1744, 0.0
    %v2455 = vmax.f32 %v2095, 0.0
    %v2456 = vmax.f32 %v2097, 0.0
    %v2457 = vmax.f32 %v1040, 0.0
    %v2458 = vmax.f32 %v1042, 0.0
    %v2459 = vmax.f32 %v1393, 0.0
    %v2460 = vmax.f32 %v1395, 0.0
    %v2461 = vmax.f32 %v1746, 0.0
    %v2462 = vmax.f32 %v1748, 0.0
    %v2463 = vmax.f32 %v2099, 0.0
    %v2464 = vmax.f32 %v2101, 0.0
    %v2465 = vmax.f32 %v1046, 0.0
    %v2466 = vmax.f32 %v1048, 0.0
    %v2467 = vmax.f32 %v1399, 0.0
    %v2468 = vmax.f32 %v1401, 0.0
    %v2469 = vmax.f32 %v1752, 0.0
    %v2470 = vmax.f32 %v1754, 0.0
    %v2471 = vmax.f32 %v2105, 0.0
    %v2472 = vmax.f32 %v2107, 0.0
    %v2473 = vmax.f32 %v1050, 0.0
    %v2474 = vmax.f32 %v1052, 0.0
    %v2475 = vmax.f32 %v1403, 0.0
    %v2476 = vmax.f32 %v1405, 0.0
    %v2477 = vmax.f32 %v1756, 0.0
    %v2478 = vmax.f32 %v1758, 0.0
    %v2479 = vmax.f32 %v2109, 0.0
    %v2480 = vmax.f32 %v2111, 0.0
    %v2481 = vmax.f32 %v1056, 0.0
    %v2482 = vmax.f32 %v1058, 0.0
    %v2483 = vmax.f32 %v1409, 0.0
    %v2484 = vmax.f32 %v1411, 0.0
    %v2485 = vmax.f32 %v1762, 0.0
    %v2486 = vmax.f32 %v1764, 0.0
    %v2487 = vmax.f32 %v2115, 0.0
    %v2488 = vmax.f32 %v2117, 0.0
    %v2489 = vmax.f32 %v1060, 0.0
    %v2490 = vmax.f32 %v1062, 0.0
    %v2491 = vmax.f32 %v1413, 0.0
    %v2492 = vmax.f32 %v1415, 0.0
    %v2493 = vmax.f32 %v1766, 0.0
    %v2494 = vmax.f32 %v1768, 0.0
    %v2495 = vmax.f32 %v2119, 0.0
    %v2496 = vmax.f32 %v2121, 0.0
    %v2497 = vmax.f32 %v1066, 0.0
    %v2498 = vmax.f32 %v1068, 0.0
    %v2499 = vmax.f32 %v1419, 0.0
    %v2500 = vmax.f32 %v1421, 0.0
    %v2501 = vmax.f32 %v1772, 0.0
    %v2502 = vmax.f32 %v1774, 0.0
    %v2503 = vmax.f32 %v2125, 0.0
    %v2504 = vmax.f32 %v2127, 0.0
    %v2505 = vmax.f32 %v1070, 0.0
    %v2506 = vmax.f32 %v1072, 0.0
    %v2507 = vmax.f32 %v1423, 0.0
    %v2508 = vmax.f32 %v1425, 0.0
    %v2509 = vmax.f32 %v1776, 0.0
    %v2510 = vmax.f32 %v1778, 0.0
    %v2511 = vmax.f32 %v2129, 0.0
    %v2512 = vmax.f32 %v2131, 0.0
    %v2513 = vmax.f32 %v1076, 0.0
    %v2514 = vmax.f32 %v1078, 0.0
    %v2515 = vmax.f32 %v1429, 0.0
    %v2516 = vmax.f32 %v1431, 0.0
    %v2517 = vmax.f32 %v1782, 0.0
    %v2518 = vmax.f32 %v1784, 0.0
    %v2519 = vmax.f32 %v2135, 0.0
    %v2520 = vmax.f32 %v2137, 0.0
    %v2521 = vmax.f32 %v1080, 0.0
    %v2522 = vmax.f32 %v1082, 0.0
    %v2523 = vmax.f32 %v1433, 0.0
    %v2524 = vmax.f32 %v1435, 0.0
    %v2525 = vmax.f32 %v1786, 0.0
    %v2526 = vmax.f32 %v1788, 0.0
    %v2527 = vmax.f32 %v2139, 0.0
    %v2528 = vmax.f32 %v2141, 0.0
    %v2529 = vmax.f32 %v1086, 0.0
    %v2530 = vmax.f32 %v1088, 0.0
    %v2531 = vmax.f32 %v1439, 0.0
    %v2532 = vmax.f32 %v1441, 0.0
    %v2533 = vmax.f32 %v1792, 0.0
    %v2534 = vmax.f32 %v1794, 0.0
    %v2535 = vmax.f32 %v2145, 0.0
    %v2536 = vmax.f32 %v2147, 0.0
    %v2537 = vmax.f32 %v1090, 0.0
    %v2538 = vmax.f32 %v1092, 0.0
    %v2539 = vmax.f32 %v1443, 0.0
    %v2540 = vmax.f32 %v1445, 0.0
    %v2541 = vmax.f32 %v1796, 0.0
    %v2542 = vmax.f32 %v1798, 0.0
    %v2543 = vmax.f32 %v2149, 0.0
    %v2544 = vmax.f32 %v2151, 0.0
    %v2545 = vmax.f32 %v1096, 0.0
    %v2546 = vmax.f32 %v1098, 0.0
    %v2547 = vmax.f32 %v1449, 0.0
    %v2548 = vmax.f32 %v1451, 0.0
    %v2549 = vmax.f32 %v1802, 0.0
    %v2550 = vmax.f32 %v1804, 0.0
    %v2551 = vmax.f32 %v2155, 0.0
    %v2552 = vmax.f32 %v2157, 0.0
    %v2553 = vmax.f32 %v1100, 0.0
    %v2554 = vmax.f32 %v1102, 0.0
    %v2555 = vmax.f32 %v1453, 0.0
    %v2556 = vmax.f32 %v1455, 0.0
    %v2557 = vmax.f32 %v1806, 0.0
    %v2558 = vmax.f32 %v1808, 0.0
    %v2559 = vmax.f32 %v2159, 0.0
    %v2560 = vmax.f32 %v2161, 0.0
    %v2561 = vmax.f32 %v1106, 0.0
    %v2562 = vmax.f32 %v1108, 0.0
    %v2563 = vmax.f32 %v1459, 0.0
    %v2564 = vmax.f32 %v1461, 0.0
    %v2565 = vmax.f32 %v1812, 0.0
    %v2566 = vmax.f32 %v1814, 0.0
    %v2567 = vmax.f32 %v2165, 0.0
    %v2568 = vmax.f32 %v2167, 0.0
    %v2569 = vmax.f32 %v1110, 0.0
    %v2570 = vmax.f32 %v1112, 0.0
    %v2571 = vmax.f32 %v1463, 0.0
    %v2572 = vmax.f32 %v1465, 0.0
    %v2573 = vmax.f32 %v1816, 0.0
    %v2574 = vmax.f32 %v1818, 0.0
    %v2575 = vmax.f32 %v2169, 0.0
    %v2576 = vmax.f32 %v2171, 0.0
    %v2577 = vmax.f32 %v1116, 0.0
    %v2578 = vmax.f32 %v1118, 0.0
    %v2579 = vmax.f32 %v1469, 0.0
    %v2580 = vmax.f32 %v1471, 0.0
    %v2581 = vmax.f32 %v1822, 0.0
    %v2582 = vmax.f32 %v1824, 0.0
    %v2583 = vmax.f32 %v2175, 0.0
    %v2584 = vmax.f32 %v2177, 0.0
    %v2585 = vmax.f32 %v1120, 0.0
    %v2586 = vmax.f32 %v1122, 0.0
    %v2587 = vmax.f32 %v1473, 0.0
    %v2588 = vmax.f32 %v1475, 0.0
    %v2589 = vmax.f32 %v1826, 0.0
    %v2590 = vmax.f32 %v1828, 0.0
    %v2591 = vmax.f32 %v2179, 0.0
    %v2592 = vmax.f32 %v2181, 0.0
    %v2593 = vmax.f32 %v1126, 0.0
    %v2594 = vmax.f32 %v1128, 0.0
    %v2595 = vmax.f32 %v1479, 0.0
    %v2596 = vmax.f32 %v1481, 0.0
    %v2597 = vmax.f32 %v1832, 0.0
    %v2598 = vmax.f32 %v1834, 0.0
    %v2599 = vmax.f32 %v2185, 0.0
    %v2600 = vmax.f32 %v2187, 0.0
    %v2601 = vmax.f32 %v1130, 0.0
    %v2602 = vmax.f32 %v1132, 0.0
    %v2603 = vmax.f32 %v1483, 0.0
    %v2604 = vmax.f32 %v1485, 0.0
    %v2605 = vmax.f32 %v1836, 0.0
    %v2606 = vmax.f32 %v1838, 0.0
    %v2607 = vmax.f32 %v2189, 0.0
    %v2608 = vmax.f32 %v2191, 0.0
    %v2609 = vmax.f32 %v1136, 0.0
    %v2610 = vmax.f32 %v1138, 0.0
    %v2611 = vmax.f32 %v1489, 0.0
    %v2612 = vmax.f32 %v1491, 0.0
    %v2613 = vmax.f32 %v1842, 0.0
    %v2614 = vmax.f32 %v1844, 0.0
    %v2615 = vmax.f32 %v2195, 0.0
    %v2616 = vmax.f32 %v2197, 0.0
    %v2617 = vmax.f32 %v1140, 0.0
    %v2618 = vmax.f32 %v1142, 0.0
    %v2619 = vmax.f32 %v1493, 0.0
    %v2620 = vmax.f32 %v1495, 0.0
    %v2621 = vmax.f32 %v1846, 0.0
    %v2622 = vmax.f32 %v1848, 0.0
    %v2623 = vmax.f32 %v2199, 0.0
    %v2624 = vmax.f32 %v2201, 0.0
    %v2625 = vmax.f32 %v1146, 0.0
    %v2626 = vmax.f32 %v1148, 0.0
    %v2627 = vmax.f32 %v1499, 0.0
    %v2628 = vmax.f32 %v1501, 0.0
    %v2629 = vmax.f32 %v1852, 0.0
    %v2630 = vmax.f32 %v1854, 0.0
    %v2631 = vmax.f32 %v2205, 0.0
    %v2632 = vmax.f32 %v2207, 0.0
    %v2633 = vmax.f32 %v1150, 0.0
    %v2634 = vmax.f32 %v1152, 0.0
    %v2635 = vmax.f32 %v1503, 0.0
    %v2636 = vmax.f32 %v1505, 0.0
    %v2637 = vmax.f32 %v1856, 0.0
    %v2638 = vmax.f32 %v1858, 0.0
    %v2639 = vmax.f32 %v2209, 0.0
    %v2640 = vmax.f32 %v2211, 0.0
    %v2641 = vmax.f32 %v1156, 0.0
    %v2642 = vmax.f32 %v1158, 0.0
    %v2643 = vmax.f32 %v1509, 0.0
    %v2644 = vmax.f32 %v1511, 0.0
    %v2645 = vmax.f32 %v1862, 0.0
    %v2646 = vmax.f32 %v1864, 0.0
    %v2647 = vmax.f32 %v2215, 0.0
    %v2648 = vmax.f32 %v2217, 0.0
    %v2649 = vmax.f32 %v1160, 0.0
    %v2650 = vmax.f32 %v1162, 0.0
    %v2651 = vmax.f32 %v1513, 0.0
    %v2652 = vmax.f32 %v1515, 0.0
    %v2653 = vmax.f32 %v1866, 0.0
    %v2654 = vmax.f32 %v1868, 0.0
    %v2655 = vmax.f32 %v2219, 0.0
    %v2656 = vmax.f32 %v2221, 0.0
    %v2657 = vmax.f32 %v1166, 0.0
    %v2658 = vmax.f32 %v1168, 0.0
    %v2659 = vmax.f32 %v1519, 0.0
    %v2660 = vmax.f32 %v1521, 0.0
    %v2661 = vmax.f32 %v1872, 0.0
    %v2662 = vmax.f32 %v1874, 0.0
    %v2663 = vmax.f32 %v2225, 0.0
    %v2664 = vmax.f32 %v2227, 0.0
    %v2665 = vmax.f32 %v1170, 0.0
    %v2666 = vmax.f32 %v1172, 0.0
    %v2667 = vmax.f32 %v1523, 0.0
    %v2668 = vmax.f32 %v1525, 0.0
    %v2669 = vmax.f32 %v1876, 0.0
    %v2670 = vmax.f32 %v1878, 0.0
    %v2671 = vmax.f32 %v2229, 0.0
    %v2672 = vmax.f32 %v2231, 0.0
    %v2673 = vmax.f32 %v1176, 0.0
    %v2674 = vmax.f32 %v1178, 0.0
    %v2675 = vmax.f32 %v1529, 0.0
    %v2676 = vmax.f32 %v1531, 0.0
    %v2677 = vmax.f32 %v1882, 0.0
    %v2678 = vmax.f32 %v1884, 0.0
    %v2679 = vmax.f32 %v2235, 0.0
    %v2680 = vmax.f32 %v2237, 0.0
    %v2681 = vmax.f32 %v1180, 0.0
    %v2682 = vmax.f32 %v1182, 0.0
    %v2683 = vmax.f32 %v1533, 0.0
    %v2684 = vmax.f32 %v1535, 0.0
    %v2685 = vmax.f32 %v1886, 0.0
    %v2686 = vmax.f32 %v1888, 0.0
    %v2687 = vmax.f32 %v2239, 0.0
    %v2688 = vmax.f32 %v2241, 0.0
    %v2689 = vmax.f32 %v1186, 0.0
    %v2690 = vmax.f32 %v1188, 0.0
    %v2691 = vmax.f32 %v1539, 0.0
    %v2692 = vmax.f32 %v1541, 0.0
    %v2693 = vmax.f32 %v1892, 0.0
    %v2694 = vmax.f32 %v1894, 0.0
    %v2695 = vmax.f32 %v2245, 0.0
    %v2696 = vmax.f32 %v2247, 0.0
    %v2697 = vmax.f32 %v1190, 0.0
    %v2698 = vmax.f32 %v1192, 0.0
    %v2699 = vmax.f32 %v1543, 0.0
    %v2700 = vmax.f32 %v1545, 0.0
    %v2701 = vmax.f32 %v1896, 0.0
    %v2702 = vmax.f32 %v1898, 0.0
    %v2703 = vmax.f32 %v2249, 0.0
    %v2704 = vmax.f32 %v2251, 0.0
    %v2705 = vmax.f32 %v1196, 0.0
    %v2706 = vmax.f32 %v1198, 0.0
    %v2707 = vmax.f32 %v1549, 0.0
    %v2708 = vmax.f32 %v1551, 0.0
    %v2709 = vmax.f32 %v1902, 0.0
    %v2710 = vmax.f32 %v1904, 0.0
    %v2711 = vmax.f32 %v2255, 0.0
    %v2712 = vmax.f32 %v2257, 0.0
    %v2713 = vmax.f32 %v1200, 0.0
    %v2714 = vmax.f32 %v1202, 0.0
    %v2715 = vmax.f32 %v1553, 0.0
    %v2716 = vmax.f32 %v1555, 0.0
    %v2717 = vmax.f32 %v1906, 0.0
    %v2718 = vmax.f32 %v1908, 0.0
    %v2719 = vmax.f32 %v2259, 0.0
    %v2720 = vmax.f32 %v2261, 0.0
    %v2721 = vmax.f32 %v1206, 0.0
    %v2722 = vmax.f32 %v1208, 0.0
    %v2723 = vmax.f32 %v1559, 0.0
    %v2724 = vmax.f32 %v1561, 0.0
    %v2725 = vmax.f32 %v1912, 0.0
    %v2726 = vmax.f32 %v1914, 0.0
    %v2727 = vmax.f32 %v2265, 0.0
    %v2728 = vmax.f32 %v2267, 0.0
    %v2729 = vmax.f32 %v1210, 0.0
    %v2730 = vmax.f32 %v1212, 0.0
    %v2731 = vmax.f32 %v1563, 0.0
    %v2732 = vmax.f32 %v1565, 0.0
    %v2733 = vmax.f32 %v1916, 0.0
    %v2734 = vmax.f32 %v1918, 0.0
    %v2735 = vmax.f32 %v2269, 0.0
    %v2736 = vmax.f32 %v2271, 0.0
    %v2737 = vmax.f32 %v1216, 0.0
    %v2738 = vmax.f32 %v1218, 0.0
    %v2739 = vmax.f32 %v1569, 0.0
    %v2740 = vmax.f32 %v1571, 0.0
    %v2741 = vmax.f32 %v1922, 0.0
    %v2742 = vmax.f32 %v1924, 0.0
    %v2743 = vmax.f32 %v2275, 0.0
    %v2744 = vmax.f32 %v2277, 0.0
    %v2745 = vmax.f32 %v1220, 0.0
    %v2746 = vmax.f32 %v1222, 0.0
    %v2747 = vmax.f32 %v1573, 0.0
    %v2748 = vmax.f32 %v1575, 0.0
    %v2749 = vmax.f32 %v1926, 0.0
    %v2750 = vmax.f32 %v1928, 0.0
    %v2751 = vmax.f32 %v2279, 0.0
    %v2752 = vmax.f32 %v2281, 0.0
    %v2753 = vmax.f32 %v1226, 0.0
    %v2754 = vmax.f32 %v1228, 0.0
    %v2755 = vmax.f32 %v1579, 0.0
    %v2756 = vmax.f32 %v1581, 0.0
    %v2757 = vmax.f32 %v1932, 0.0
    %v2758 = vmax.f32 %v1934, 0.0
    %v2759 = vmax.f32 %v2285, 0.0
    %v2760 = vmax.f32 %v2287, 0.0
    %v2761 = vmax.f32 %v1230, 0.0
    %v2762 = vmax.f32 %v1232, 0.0
    %v2763 = vmax.f32 %v1583, 0.0
    %v2764 = vmax.f32 %v1585, 0.0
    %v2765 = vmax.f32 %v1936, 0.0
    %v2766 = vmax.f32 %v1938, 0.0
    %v2767 = vmax.f32 %v2289, 0.0
    %v2768 = vmax.f32 %v2291, 0.0
    %v2769 = vmax.f32 %v1236, 0.0
    %v2770 = vmax.f32 %v1238, 0.0
    %v2771 = vmax.f32 %v1589, 0.0
    %v2772 = vmax.f32 %v1591, 0.0
    %v2773 = vmax.f32 %v1942, 0.0
    %v2774 = vmax.f32 %v1944, 0.0
    %v2775 = vmax.f32 %v2295, 0.0
    %v2776 = vmax.f32 %v2297, 0.0
    %v2777 = vmax.f32 %v1240, 0.0
    %v2778 = vmax.f32 %v1242, 0.0
    %v2779 = vmax.f32 %v1593, 0.0
    %v2780 = vmax.f32 %v1595, 0.0
    %v2781 = vmax.f32 %v1946, 0.0
    %v2782 = vmax.f32 %v1948, 0.0
    %v2783 = vmax.f32 %v2299, 0.0
    %v2784 = vmax.f32 %v2301, 0.0
    %v2785 = vmax.f32 %v1246, 0.0
    %v2786 = vmax.f32 %v1248, 0.0
    %v2787 = vmax.f32 %v1599, 0.0
    %v2788 = vmax.f32 %v1601, 0.0
    %v2789 = vmax.f32 %v1952, 0.0
    %v2790 = vmax.f32 %v1954, 0.0
    %v2791 = vmax.f32 %v2305, 0.0
    %v2792 = vmax.f32 %v2307, 0.0
    %v2793 = vmax.f32 %v1250, 0.0
    %v2794 = vmax.f32 %v1252, 0.0
    %v2795 = vmax.f32 %v1603, 0.0
    %v2796 = vmax.f32 %v1605, 0.0
    %v2797 = vmax.f32 %v1956, 0.0
    %v2798 = vmax.f32 %v1958, 0.0
    %v2799 = vmax.f32 %v2309, 0.0
    %v2800 = vmax.f32 %v2311, 0.0
    %v2801 = vmax.f32 %v1256, 0.0
    %v2802 = vmax.f32 %v1258, 0.0
    %v2803 = vmax.f32 %v1609, 0.0
    %v2804 = vmax.f32 %v1611, 0.0
    %v2805 = vmax.f32 %v1962, 0.0
    %v2806 = vmax.f32 %v1964, 0.0
    %v2807 = vmax.f32 %v2315, 0.0
    %v2808 = vmax.f32 %v2317, 0.0
    %v2809 = vmax.f32 %v1260, 0.0
    %v2810 = vmax.f32 %v1262, 0.0
    %v2811 = vmax.f32 %v1613, 0.0
    %v2812 = vmax.f32 %v1615, 0.0
    %v2813 = vmax.f32 %v1966, 0.0
    %v2814 = vmax.f32 %v1968, 0.0
    %v2815 = vmax.f32 %v2319, 0.0
    %v2816 = vmax.f32 %v2321, 0.0
    %v2817 = vmax.f32 %v1266, 0.0
    %v2818 = vmax.f32 %v1268, 0.0
    %v2819 = vmax.f32 %v1619, 0.0
    %v2820 = vmax.f32 %v1621, 0.0
    %v2821 = vmax.f32 %v1972, 0.0
    %v2822 = vmax.f32 %v1974, 0.0
    %v2823 = vmax.f32 %v2325, 0.0
    %v2824 = vmax.f32 %v2327, 0.0
    %v2825 = vmax.f32 %v1270, 0.0
    %v2826 = vmax.f32 %v1272, 0.0
    %v2827 = vmax.f32 %v1623, 0.0
    %v2828 = vmax.f32 %v1625, 0.0
    %v2829 = vmax.f32 %v1976, 0.0
    %v2830 = vmax.f32 %v1978, 0.0
    %v2831 = vmax.f32 %v2329, 0.0
    %v2832 = vmax.f32 %v2331, 0.0
    %v2833 = vmax.f32 %v1276, 0.0
    %v2834 = vmax.f32 %v1278, 0.0
    %v2835 = vmax.f32 %v1629, 0.0
    %v2836 = vmax.f32 %v1631, 0.0
    %v2837 = vmax.f32 %v1982, 0.0
    %v2838 = vmax.f32 %v1984, 0.0
    %v2839 = vmax.f32 %v2335, 0.0
    %v2840 = vmax.f32 %v2337, 0.0
    %v2841 = vmax.f32 %v1280, 0.0
    %v2842 = vmax.f32 %v1282, 0.0
    %v2843 = vmax.f32 %v1633, 0.0
    %v2844 = vmax.f32 %v1635, 0.0
    %v2845 = vmax.f32 %v1986, 0.0
    %v2846 = vmax.f32 %v1988, 0.0
    %v2847 = vmax.f32 %v2339, 0.0
    %v2848 = vmax.f32 %v2341, 0.0
    %v2849 = vmax.f32 %v1286, 0.0
    %v2850 = vmax.f32 %v1288, 0.0
    %v2851 = vmax.f32 %v1639, 0.0
    %v2852 = vmax.f32 %v1641, 0.0
    %v2853 = vmax.f32 %v1992, 0.0
    %v2854 = vmax.f32 %v1994, 0.0
    %v2855 = vmax.f32 %v2345, 0.0
    %v2856 = vmax.f32 %v2347, 0.0
    %v2857 = vmax.f32 %v1290, 0.0
    %v2858 = vmax.f32 %v1292, 0.0
    %v2859 = vmax.f32 %v1643, 0.0
    %v2860 = vmax.f32 %v1645, 0.0
    %v2861 = vmax.f32 %v1996, 0.0
    %v2862 = vmax.f32 %v1998, 0.0
    %v2863 = vmax.f32 %v2349, 0.0
    %v2864 = vmax.f32 %v2351, 0.0
    %v2865 = vpack.c.bf16 %v2361, %v2353
    %v2866 = vpack.c.bf16 %v2362, %v2354
    %v2867 = vpack.c.bf16 %v2363, %v2355
    %v2868 = vpack.c.bf16 %v2364, %v2356
    %v2869 = vpack.c.bf16 %v2365, %v2357
    %v2870 = vpack.c.bf16 %v2366, %v2358
    %v2871 = vpack.c.bf16 %v2367, %v2359
    %v2872 = vpack.c.bf16 %v2368, %v2360
    %v2873 = vpack.c.bf16 %v2377, %v2369
    %v2874 = vpack.c.bf16 %v2378, %v2370
    %v2875 = vpack.c.bf16 %v2379, %v2371
    %v2876 = vpack.c.bf16 %v2380, %v2372
    %v2877 = vpack.c.bf16 %v2381, %v2373
    %v2878 = vpack.c.bf16 %v2382, %v2374
    %v2879 = vpack.c.bf16 %v2383, %v2375
    %v2880 = vpack.c.bf16 %v2384, %v2376
    %v2881 = vpack.c.bf16 %v2393, %v2385
    %v2882 = vpack.c.bf16 %v2394, %v2386
    %v2883 = vpack.c.bf16 %v2395, %v2387
    %v2884 = vpack.c.bf16 %v2396, %v2388
    %v2885 = vpack.c.bf16 %v2397, %v2389
    %v2886 = vpack.c.bf16 %v2398, %v2390
    %v2887 = vpack.c.bf16 %v2399, %v2391
    %v2888 = vpack.c.bf16 %v2400, %v2392
    %v2889 = vpack.c.bf16 %v2409, %v2401
    %v2890 = vpack.c.bf16 %v2410, %v2402
    %v2891 = vpack.c.bf16 %v2411, %v2403
    %v2892 = vpack.c.bf16 %v2412, %v2404
    %v2893 = vpack.c.bf16 %v2413, %v2405
    %v2894 = vpack.c.bf16 %v2414, %v2406
    %v2895 = vpack.c.bf16 %v2415, %v2407
    %v2896 = vpack.c.bf16 %v2416, %v2408
    %v2897 = vpack.c.bf16 %v2425, %v2417
    %v2898 = vpack.c.bf16 %v2426, %v2418
    %v2899 = vpack.c.bf16 %v2427, %v2419
    %v2900 = vpack.c.bf16 %v2428, %v2420
    %v2901 = vpack.c.bf16 %v2429, %v2421
    %v2902 = vpack.c.bf16 %v2430, %v2422
    %v2903 = vpack.c.bf16 %v2431, %v2423
    %v2904 = vpack.c.bf16 %v2432, %v2424
    %v2905 = vpack.c.bf16 %v2441, %v2433
    %v2906 = vpack.c.bf16 %v2442, %v2434
    %v2907 = vpack.c.bf16 %v2443, %v2435
    %v2908 = vpack.c.bf16 %v2444, %v2436
    %v2909 = vpack.c.bf16 %v2445, %v2437
    %v2910 = vpack.c.bf16 %v2446, %v2438
    %v2911 = vpack.c.bf16 %v2447, %v2439
    %v2912 = vpack.c.bf16 %v2448, %v2440
    %v2913 = vpack.c.bf16 %v2457, %v2449
    %v2914 = vpack.c.bf16 %v2458, %v2450
    %v2915 = vpack.c.bf16 %v2459, %v2451
    %v2916 = vpack.c.bf16 %v2460, %v2452
    %v2917 = vpack.c.bf16 %v2461, %v2453
    %v2918 = vpack.c.bf16 %v2462, %v2454
    %v2919 = vpack.c.bf16 %v2463, %v2455
    %v2920 = vpack.c.bf16 %v2464, %v2456
    %v2921 = vpack.c.bf16 %v2473, %v2465
    %v2922 = vpack.c.bf16 %v2474, %v2466
    %v2923 = vpack.c.bf16 %v2475, %v2467
    %v2924 = vpack.c.bf16 %v2476, %v2468
    %v2925 = vpack.c.bf16 %v2477, %v2469
    %v2926 = vpack.c.bf16 %v2478, %v2470
    %v2927 = vpack.c.bf16 %v2479, %v2471
    %v2928 = vpack.c.bf16 %v2480, %v2472
    %v2929 = vpack.c.bf16 %v2489, %v2481
    %v2930 = vpack.c.bf16 %v2490, %v2482
    %v2931 = vpack.c.bf16 %v2491, %v2483
    %v2932 = vpack.c.bf16 %v2492, %v2484
    %v2933 = vpack.c.bf16 %v2493, %v2485
    %v2934 = vpack.c.bf16 %v2494, %v2486
    %v2935 = vpack.c.bf16 %v2495, %v2487
    %v2936 = vpack.c.bf16 %v2496, %v2488
    %v2937 = vpack.c.bf16 %v2505, %v2497
    %v2938 = vpack.c.bf16 %v2506, %v2498
    %v2939 = vpack.c.bf16 %v2507, %v2499
    %v2940 = vpack.c.bf16 %v2508, %v2500
    %v2941 = vpack.c.bf16 %v2509, %v2501
    %v2942 = vpack.c.bf16 %v2510, %v2502
    %v2943 = vpack.c.bf16 %v2511, %v2503
    %v2944 = vpack.c.bf16 %v2512, %v2504
    %v2945 = vpack.c.bf16 %v2521, %v2513
    %v2946 = vpack.c.bf16 %v2522, %v2514
    %v2947 = vpack.c.bf16 %v2523, %v2515
    %v2948 = vpack.c.bf16 %v2524, %v2516
    %v2949 = vpack.c.bf16 %v2525, %v2517
    %v2950 = vpack.c.bf16 %v2526, %v2518
    %v2951 = vpack.c.bf16 %v2527, %v2519
    %v2952 = vpack.c.bf16 %v2528, %v2520
    %v2953 = vpack.c.bf16 %v2537, %v2529
    %v2954 = vpack.c.bf16 %v2538, %v2530
    %v2955 = vpack.c.bf16 %v2539, %v2531
    %v2956 = vpack.c.bf16 %v2540, %v2532
    %v2957 = vpack.c.bf16 %v2541, %v2533
    %v2958 = vpack.c.bf16 %v2542, %v2534
    %v2959 = vpack.c.bf16 %v2543, %v2535
    %v2960 = vpack.c.bf16 %v2544, %v2536
    %v2961 = vpack.c.bf16 %v2553, %v2545
    %v2962 = vpack.c.bf16 %v2554, %v2546
    %v2963 = vpack.c.bf16 %v2555, %v2547
    %v2964 = vpack.c.bf16 %v2556, %v2548
    %v2965 = vpack.c.bf16 %v2557, %v2549
    %v2966 = vpack.c.bf16 %v2558, %v2550
    %v2967 = vpack.c.bf16 %v2559, %v2551
    %v2968 = vpack.c.bf16 %v2560, %v2552
    %v2969 = vpack.c.bf16 %v2569, %v2561
    %v2970 = vpack.c.bf16 %v2570, %v2562
    %v2971 = vpack.c.bf16 %v2571, %v2563
    %v2972 = vpack.c.bf16 %v2572, %v2564
    %v2973 = vpack.c.bf16 %v2573, %v2565
    %v2974 = vpack.c.bf16 %v2574, %v2566
    %v2975 = vpack.c.bf16 %v2575, %v2567
    %v2976 = vpack.c.bf16 %v2576, %v2568
    %v2977 = vpack.c.bf16 %v2585, %v2577
    %v2978 = vpack.c.bf16 %v2586, %v2578
    %v2979 = vpack.c.bf16 %v2587, %v2579
    %v2980 = vpack.c.bf16 %v2588, %v2580
    %v2981 = vpack.c.bf16 %v2589, %v2581
    %v2982 = vpack.c.bf16 %v2590, %v2582
    %v2983 = vpack.c.bf16 %v2591, %v2583
    %v2984 = vpack.c.bf16 %v2592, %v2584
    %v2985 = vpack.c.bf16 %v2601, %v2593
    %v2986 = vpack.c.bf16 %v2602, %v2594
    %v2987 = vpack.c.bf16 %v2603, %v2595
    %v2988 = vpack.c.bf16 %v2604, %v2596
    %v2989 = vpack.c.bf16 %v2605, %v2597
    %v2990 = vpack.c.bf16 %v2606, %v2598
    %v2991 = vpack.c.bf16 %v2607, %v2599
    %v2992 = vpack.c.bf16 %v2608, %v2600
    %v2993 = vpack.c.bf16 %v2617, %v2609
    %v2994 = vpack.c.bf16 %v2618, %v2610
    %v2995 = vpack.c.bf16 %v2619, %v2611
    %v2996 = vpack.c.bf16 %v2620, %v2612
    %v2997 = vpack.c.bf16 %v2621, %v2613
    %v2998 = vpack.c.bf16 %v2622, %v2614
    %v2999 = vpack.c.bf16 %v2623, %v2615
    %v3000 = vpack.c.bf16 %v2624, %v2616
    %v3001 = vpack.c.bf16 %v2633, %v2625
    %v3002 = vpack.c.bf16 %v2634, %v2626
    %v3003 = vpack.c.bf16 %v2635, %v2627
    %v3004 = vpack.c.bf16 %v2636, %v2628
    %v3005 = vpack.c.bf16 %v2637, %v2629
    %v3006 = vpack.c.bf16 %v2638, %v2630
    %v3007 = vpack.c.bf16 %v2639, %v2631
    %v3008 = vpack.c.bf16 %v2640, %v2632
    %v3009 = vpack.c.bf16 %v2649, %v2641
    %v3010 = vpack.c.bf16 %v2650, %v2642
    %v3011 = vpack.c.bf16 %v2651, %v2643
    %v3012 = vpack.c.bf16 %v2652, %v2644
    %v3013 = vpack.c.bf16 %v2653, %v2645
    %v3014 = vpack.c.bf16 %v2654, %v2646
    %v3015 = vpack.c.bf16 %v2655, %v2647
    %v3016 = vpack.c.bf16 %v2656, %v2648
    %v3017 = vpack.c.bf16 %v2665, %v2657
    %v3018 = vpack.c.bf16 %v2666, %v2658
    %v3019 = vpack.c.bf16 %v2667, %v2659
    %v3020 = vpack.c.bf16 %v2668, %v2660
    %v3021 = vpack.c.bf16 %v2669, %v2661
    %v3022 = vpack.c.bf16 %v2670, %v2662
    %v3023 = vpack.c.bf16 %v2671, %v2663
    %v3024 = vpack.c.bf16 %v2672, %v2664
    %v3025 = vpack.c.bf16 %v2681, %v2673
    %v3026 = vpack.c.bf16 %v2682, %v2674
    %v3027 = vpack.c.bf16 %v2683, %v2675
    %v3028 = vpack.c.bf16 %v2684, %v2676
    %v3029 = vpack.c.bf16 %v2685, %v2677
    %v3030 = vpack.c.bf16 %v2686, %v2678
    %v3031 = vpack.c.bf16 %v2687, %v2679
    %v3032 = vpack.c.bf16 %v2688, %v2680
    %v3033 = vpack.c.bf16 %v2697, %v2689
    %v3034 = vpack.c.bf16 %v2698, %v2690
    %v3035 = vpack.c.bf16 %v2699, %v2691
    %v3036 = vpack.c.bf16 %v2700, %v2692
    %v3037 = vpack.c.bf16 %v2701, %v2693
    %v3038 = vpack.c.bf16 %v2702, %v2694
    %v3039 = vpack.c.bf16 %v2703, %v2695
    %v3040 = vpack.c.bf16 %v2704, %v2696
    %v3041 = vpack.c.bf16 %v2713, %v2705
    %v3042 = vpack.c.bf16 %v2714, %v2706
    %v3043 = vpack.c.bf16 %v2715, %v2707
    %v3044 = vpack.c.bf16 %v2716, %v2708
    %v3045 = vpack.c.bf16 %v2717, %v2709
    %v3046 = vpack.c.bf16 %v2718, %v2710
    %v3047 = vpack.c.bf16 %v2719, %v2711
    %v3048 = vpack.c.bf16 %v2720, %v2712
    %v3049 = vpack.c.bf16 %v2729, %v2721
    %v3050 = vpack.c.bf16 %v2730, %v2722
    %v3051 = vpack.c.bf16 %v2731, %v2723
    %v3052 = vpack.c.bf16 %v2732, %v2724
    %v3053 = vpack.c.bf16 %v2733, %v2725
    %v3054 = vpack.c.bf16 %v2734, %v2726
    %v3055 = vpack.c.bf16 %v2735, %v2727
    %v3056 = vpack.c.bf16 %v2736, %v2728
    %v3057 = vpack.c.bf16 %v2745, %v2737
    %v3058 = vpack.c.bf16 %v2746, %v2738
    %v3059 = vpack.c.bf16 %v2747, %v2739
    %v3060 = vpack.c.bf16 %v2748, %v2740
    %v3061 = vpack.c.bf16 %v2749, %v2741
    %v3062 = vpack.c.bf16 %v2750, %v2742
    %v3063 = vpack.c.bf16 %v2751, %v2743
    %v3064 = vpack.c.bf16 %v2752, %v2744
    %v3065 = vpack.c.bf16 %v2761, %v2753
    %v3066 = vpack.c.bf16 %v2762, %v2754
    %v3067 = vpack.c.bf16 %v2763, %v2755
    %v3068 = vpack.c.bf16 %v2764, %v2756
    %v3069 = vpack.c.bf16 %v2765, %v2757
    %v3070 = vpack.c.bf16 %v2766, %v2758
    %v3071 = vpack.c.bf16 %v2767, %v2759
    %v3072 = vpack.c.bf16 %v2768, %v2760
    %v3073 = vpack.c.bf16 %v2777, %v2769
    %v3074 = vpack.c.bf16 %v2778, %v2770
    %v3075 = vpack.c.bf16 %v2779, %v2771
    %v3076 = vpack.c.bf16 %v2780, %v2772
    %v3077 = vpack.c.bf16 %v2781, %v2773
    %v3078 = vpack.c.bf16 %v2782, %v2774
    %v3079 = vpack.c.bf16 %v2783, %v2775
    %v3080 = vpack.c.bf16 %v2784, %v2776
    %v3081 = vpack.c.bf16 %v2793, %v2785
    %v3082 = vpack.c.bf16 %v2794, %v2786
    %v3083 = vpack.c.bf16 %v2795, %v2787
    %v3084 = vpack.c.bf16 %v2796, %v2788
    %v3085 = vpack.c.bf16 %v2797, %v2789
    %v3086 = vpack.c.bf16 %v2798, %v2790
    %v3087 = vpack.c.bf16 %v2799, %v2791
    %v3088 = vpack.c.bf16 %v2800, %v2792
    %v3089 = vpack.c.bf16 %v2809, %v2801
    %v3090 = vpack.c.bf16 %v2810, %v2802
    %v3091 = vpack.c.bf16 %v2811, %v2803
    %v3092 = vpack.c.bf16 %v2812, %v2804
    %v3093 = vpack.c.bf16 %v2813, %v2805
    %v3094 = vpack.c.bf16 %v2814, %v2806
    %v3095 = vpack.c.bf16 %v2815, %v2807
    %v3096 = vpack.c.bf16 %v2816, %v2808
    %v3097 = vpack.c.bf16 %v2825, %v2817
    %v3098 = vpack.c.bf16 %v2826, %v2818
    %v3099 = vpack.c.bf16 %v2827, %v2819
    %v3100 = vpack.c.bf16 %v2828, %v2820
    %v3101 = vpack.c.bf16 %v2829, %v2821
    %v3102 = vpack.c.bf16 %v2830, %v2822
    %v3103 = vpack.c.bf16 %v2831, %v2823
    %v3104 = vpack.c.bf16 %v2832, %v2824
    %v3105 = vpack.c.bf16 %v2841, %v2833
    %v3106 = vpack.c.bf16 %v2842, %v2834
    %v3107 = vpack.c.bf16 %v2843, %v2835
    %v3108 = vpack.c.bf16 %v2844, %v2836
    %v3109 = vpack.c.bf16 %v2845, %v2837
    %v3110 = vpack.c.bf16 %v2846, %v2838
    %v3111 = vpack.c.bf16 %v2847, %v2839
    %v3112 = vpack.c.bf16 %v2848, %v2840
    %v3113 = vpack.c.bf16 %v2857, %v2849
    %v3114 = vpack.c.bf16 %v2858, %v2850
    %v3115 = vpack.c.bf16 %v2859, %v2851
    %v3116 = vpack.c.bf16 %v2860, %v2852
    %v3117 = vpack.c.bf16 %v2861, %v2853
    %v3118 = vpack.c.bf16 %v2862, %v2854
    %v3119 = vpack.c.bf16 %v2863, %v2855
    %v3120 = vpack.c.bf16 %v2864, %v2856
    %v3121 = vld [vmem:[#allocation2] sm:$0xf]
    %v3122 = vld [vmem:[#allocation2 + $0x4] sm:$0xf]
    %v3123 = vld [vmem:[#allocation2 + $0x8] sm:$0xf]
    %v3124 = vld [vmem:[#allocation2 + $0xc] sm:$0xf]
    %v3125 = vld [vmem:[#allocation2 + $0x10] sm:$0xf]
    %v3126 = vld [vmem:[#allocation2 + $0x14] sm:$0xf]
    %v3127 = vld [vmem:[#allocation2 + $0x18] sm:$0xf]
    %v3128 = vld [vmem:[#allocation2 + $0x1c] sm:$0xf]
    %v3129 = vld [vmem:[#allocation2 + $0x20] sm:$0xf]
    %v3130 = vld [vmem:[#allocation2 + $0x24] sm:$0xf]
    %v3131 = vld [vmem:[#allocation2 + $0x28] sm:$0xf]
    %v3132 = vld [vmem:[#allocation2 + $0x2c] sm:$0xf]
    %v3133 = vld [vmem:[#allocation2 + $0x30] sm:$0xf]
    %v3134 = vld [vmem:[#allocation2 + $0x34] sm:$0xf]
    %v3135 = vld [vmem:[#allocation2 + $0x38] sm:$0xf]
    %v3136 = vld [vmem:[#allocation2 + $0x3c] sm:$0xf]
    %v3137 = vld [vmem:[#allocation2 + $0x40] sm:$0xf]
    %v3138 = vld [vmem:[#allocation2 + $0x44] sm:$0xf]
    %v3139 = vld [vmem:[#allocation2 + $0x48] sm:$0xf]
    %v3140 = vld [vmem:[#allocation2 + $0x4c] sm:$0xf]
    %v3141 = vld [vmem:[#allocation2 + $0x50] sm:$0xf]
    %v3142 = vld [vmem:[#allocation2 + $0x54] sm:$0xf]
    %v3143 = vld [vmem:[#allocation2 + $0x58] sm:$0xf]
    %v3144 = vld [vmem:[#allocation2 + $0x5c] sm:$0xf]
    %v3145 = vld [vmem:[#allocation2 + $0x60] sm:$0xf]
    %v3146 = vld [vmem:[#allocation2 + $0x64] sm:$0xf]
    %v3147 = vld [vmem:[#allocation2 + $0x68] sm:$0xf]
    %v3148 = vld [vmem:[#allocation2 + $0x6c] sm:$0xf]
    %v3149 = vld [vmem:[#allocation2 + $0x70] sm:$0xf]
    %v3150 = vld [vmem:[#allocation2 + $0x74] sm:$0xf]
    %v3151 = vld [vmem:[#allocation2 + $0x78] sm:$0xf]
    %v3152 = vld [vmem:[#allocation2 + $0x7c] sm:$0xf]
    %v3153 = vld [vmem:[#allocation2 + $0x80] sm:$0xf]
    %v3154 = vld [vmem:[#allocation2 + $0x84] sm:$0xf]
    %v3155 = vld [vmem:[#allocation2 + $0x88] sm:$0xf]
    %v3156 = vld [vmem:[#allocation2 + $0x8c] sm:$0xf]
    %v3157 = vld [vmem:[#allocation2 + $0x90] sm:$0xf]
    %v3158 = vld [vmem:[#allocation2 + $0x94] sm:$0xf]
    %v3159 = vld [vmem:[#allocation2 + $0x98] sm:$0xf]
    %v3160 = vld [vmem:[#allocation2 + $0x9c] sm:$0xf]
    %v3161 = vld [vmem:[#allocation2 + $0xa0] sm:$0xf]
    %v3162 = vld [vmem:[#allocation2 + $0xa4] sm:$0xf]
    %v3163 = vld [vmem:[#allocation2 + $0xa8] sm:$0xf]
    %v3164 = vld [vmem:[#allocation2 + $0xac] sm:$0xf]
    %v3165 = vld [vmem:[#allocation2 + $0xb0] sm:$0xf]
    %v3166 = vld [vmem:[#allocation2 + $0xb4] sm:$0xf]
    %v3167 = vld [vmem:[#allocation2 + $0xb8] sm:$0xf]
    %v3168 = vld [vmem:[#allocation2 + $0xbc] sm:$0xf]
    %v3169 = vld [vmem:[#allocation2 + $0xc0] sm:$0xf]
    %v3170 = vld [vmem:[#allocation2 + $0xc4] sm:$0xf]
    %v3171 = vld [vmem:[#allocation2 + $0xc8] sm:$0xf]
    %v3172 = vld [vmem:[#allocation2 + $0xcc] sm:$0xf]
    %v3173 = vld [vmem:[#allocation2 + $0xd0] sm:$0xf]
    %v3174 = vld [vmem:[#allocation2 + $0xd4] sm:$0xf]
    %v3175 = vld [vmem:[#allocation2 + $0xd8] sm:$0xf]
    %v3176 = vld [vmem:[#allocation2 + $0xdc] sm:$0xf]
    %v3177 = vld [vmem:[#allocation2 + $0xe0] sm:$0xf]
    %v3178 = vld [vmem:[#allocation2 + $0xe4] sm:$0xf]
    %v3179 = vld [vmem:[#allocation2 + $0xe8] sm:$0xf]
    %v3180 = vld [vmem:[#allocation2 + $0xec] sm:$0xf]
    %v3181 = vld [vmem:[#allocation2 + $0xf0] sm:$0xf]
    %v3182 = vld [vmem:[#allocation2 + $0xf4] sm:$0xf]
    %v3183 = vld [vmem:[#allocation2 + $0xf8] sm:$0xf]
    %v3184 = vld [vmem:[#allocation2 + $0xfc] sm:$0xf]
    %v3185 = vld [vmem:[#allocation2 + $0x100] sm:$0xf]
    %v3186 = vld [vmem:[#allocation2 + $0x104] sm:$0xf]
    %v3187 = vld [vmem:[#allocation2 + $0x108] sm:$0xf]
    %v3188 = vld [vmem:[#allocation2 + $0x10c] sm:$0xf]
    %v3189 = vld [vmem:[#allocation2 + $0x110] sm:$0xf]
    %v3190 = vld [vmem:[#allocation2 + $0x114] sm:$0xf]
    %v3191 = vld [vmem:[#allocation2 + $0x118] sm:$0xf]
    %v3192 = vld [vmem:[#allocation2 + $0x11c] sm:$0xf]
    %v3193 = vld [vmem:[#allocation2 + $0x120] sm:$0xf]
    %v3194 = vld [vmem:[#allocation2 + $0x124] sm:$0xf]
    %v3195 = vld [vmem:[#allocation2 + $0x128] sm:$0xf]
    %v3196 = vld [vmem:[#allocation2 + $0x12c] sm:$0xf]
    %v3197 = vld [vmem:[#allocation2 + $0x130] sm:$0xf]
    %v3198 = vld [vmem:[#allocation2 + $0x134] sm:$0xf]
    %v3199 = vld [vmem:[#allocation2 + $0x138] sm:$0xf]
    %v3200 = vld [vmem:[#allocation2 + $0x13c] sm:$0xf]
    %v3201 = vld [vmem:[#allocation2 + $0x140] sm:$0xf]
    %v3202 = vld [vmem:[#allocation2 + $0x144] sm:$0xf]
    %v3203 = vld [vmem:[#allocation2 + $0x148] sm:$0xf]
    %v3204 = vld [vmem:[#allocation2 + $0x14c] sm:$0xf]
    %v3205 = vld [vmem:[#allocation2 + $0x150] sm:$0xf]
    %v3206 = vld [vmem:[#allocation2 + $0x154] sm:$0xf]
    %v3207 = vld [vmem:[#allocation2 + $0x158] sm:$0xf]
    %v3208 = vld [vmem:[#allocation2 + $0x15c] sm:$0xf]
    %v3209 = vld [vmem:[#allocation2 + $0x160] sm:$0xf]
    %v3210 = vld [vmem:[#allocation2 + $0x164] sm:$0xf]
    %v3211 = vld [vmem:[#allocation2 + $0x168] sm:$0xf]
    %v3212 = vld [vmem:[#allocation2 + $0x16c] sm:$0xf]
    %v3213 = vld [vmem:[#allocation2 + $0x170] sm:$0xf]
    %v3214 = vld [vmem:[#allocation2 + $0x174] sm:$0xf]
    %v3215 = vld [vmem:[#allocation2 + $0x178] sm:$0xf]
    %v3216 = vld [vmem:[#allocation2 + $0x17c] sm:$0xf]
    %v3217 = vld [vmem:[#allocation2 + $0x180] sm:$0xf]
    %v3218 = vld [vmem:[#allocation2 + $0x184] sm:$0xf]
    %v3219 = vld [vmem:[#allocation2 + $0x188] sm:$0xf]
    %v3220 = vld [vmem:[#allocation2 + $0x18c] sm:$0xf]
    %v3221 = vld [vmem:[#allocation2 + $0x190] sm:$0xf]
    %v3222 = vld [vmem:[#allocation2 + $0x194] sm:$0xf]
    %v3223 = vld [vmem:[#allocation2 + $0x198] sm:$0xf]
    %v3224 = vld [vmem:[#allocation2 + $0x19c] sm:$0xf]
    %v3225 = vld [vmem:[#allocation2 + $0x1a0] sm:$0xf]
    %v3226 = vld [vmem:[#allocation2 + $0x1a4] sm:$0xf]
    %v3227 = vld [vmem:[#allocation2 + $0x1a8] sm:$0xf]
    %v3228 = vld [vmem:[#allocation2 + $0x1ac] sm:$0xf]
    %v3229 = vld [vmem:[#allocation2 + $0x1b0] sm:$0xf]
    %v3230 = vld [vmem:[#allocation2 + $0x1b4] sm:$0xf]
    %v3231 = vld [vmem:[#allocation2 + $0x1b8] sm:$0xf]
    %v3232 = vld [vmem:[#allocation2 + $0x1bc] sm:$0xf]
    %v3233 = vld [vmem:[#allocation2 + $0x1c0] sm:$0xf]
    %v3234 = vld [vmem:[#allocation2 + $0x1c4] sm:$0xf]
    %v3235 = vld [vmem:[#allocation2 + $0x1c8] sm:$0xf]
    %v3236 = vld [vmem:[#allocation2 + $0x1cc] sm:$0xf]
    %v3237 = vld [vmem:[#allocation2 + $0x1d0] sm:$0xf]
    %v3238 = vld [vmem:[#allocation2 + $0x1d4] sm:$0xf]
    %v3239 = vld [vmem:[#allocation2 + $0x1d8] sm:$0xf]
    %v3240 = vld [vmem:[#allocation2 + $0x1dc] sm:$0xf]
    %v3241 = vld [vmem:[#allocation2 + $0x1e0] sm:$0xf]
    %v3242 = vld [vmem:[#allocation2 + $0x1e4] sm:$0xf]
    %v3243 = vld [vmem:[#allocation2 + $0x1e8] sm:$0xf]
    %v3244 = vld [vmem:[#allocation2 + $0x1ec] sm:$0xf]
    %v3245 = vld [vmem:[#allocation2 + $0x1f0] sm:$0xf]
    %v3246 = vld [vmem:[#allocation2 + $0x1f4] sm:$0xf]
    %v3247 = vld [vmem:[#allocation2 + $0x1f8] sm:$0xf]
    %v3248 = vld [vmem:[#allocation2 + $0x1fc] sm:$0xf]
    %v3249 = vld [vmem:[%s5] sm:$0x1]
    %v3251 = vlaneseq
    %v3252 = vshrl.u32 %v3251, 7
    %v3253 = vsub.s32 0, %v3252
    %v3254 = vrot.slane %v3249, %v3253
    %v3384 = vunpack.c.l.b16 %v3121
    %v3385 = vunpack.c.l.b16 %v3122
    %v3386 = vunpack.c.l.b16 %v3123
    %v3387 = vunpack.c.l.b16 %v3124
    %v3388 = vunpack.c.l.b16 %v3125
    %v3389 = vunpack.c.l.b16 %v3126
    %v3390 = vunpack.c.l.b16 %v3127
    %v3391 = vunpack.c.l.b16 %v3128
    %v3392 = vunpack.c.l.b16 %v3129
    %v3393 = vunpack.c.l.b16 %v3130
    %v3394 = vunpack.c.l.b16 %v3131
    %v3395 = vunpack.c.l.b16 %v3132
    %v3396 = vunpack.c.l.b16 %v3133
    %v3397 = vunpack.c.l.b16 %v3134
    %v3398 = vunpack.c.l.b16 %v3135
    %v3399 = vunpack.c.l.b16 %v3136
    %v3400 = vunpack.c.l.b16 %v3137
    %v3401 = vunpack.c.l.b16 %v3138
    %v3402 = vunpack.c.l.b16 %v3139
    %v3403 = vunpack.c.l.b16 %v3140
    %v3404 = vunpack.c.l.b16 %v3141
    %v3405 = vunpack.c.l.b16 %v3142
    %v3406 = vunpack.c.l.b16 %v3143
    %v3407 = vunpack.c.l.b16 %v3144
    %v3408 = vunpack.c.l.b16 %v3145
    %v3409 = vunpack.c.l.b16 %v3146
    %v3410 = vunpack.c.l.b16 %v3147
    %v3411 = vunpack.c.l.b16 %v3148
    %v3412 = vunpack.c.l.b16 %v3149
    %v3413 = vunpack.c.l.b16 %v3150
    %v3414 = vunpack.c.l.b16 %v3151
    %v3415 = vunpack.c.l.b16 %v3152
    %v3416 = vunpack.c.l.b16 %v3153
    %v3417 = vunpack.c.l.b16 %v3154
    %v3418 = vunpack.c.l.b16 %v3155
    %v3419 = vunpack.c.l.b16 %v3156
    %v3420 = vunpack.c.l.b16 %v3157
    %v3421 = vunpack.c.l.b16 %v3158
    %v3422 = vunpack.c.l.b16 %v3159
    %v3423 = vunpack.c.l.b16 %v3160
    %v3424 = vunpack.c.l.b16 %v3161
    %v3425 = vunpack.c.l.b16 %v3162
    %v3426 = vunpack.c.l.b16 %v3163
    %v3427 = vunpack.c.l.b16 %v3164
    %v3428 = vunpack.c.l.b16 %v3165
    %v3429 = vunpack.c.l.b16 %v3166
    %v3430 = vunpack.c.l.b16 %v3167
    %v3431 = vunpack.c.l.b16 %v3168
    %v3432 = vunpack.c.l.b16 %v3169
    %v3433 = vunpack.c.l.b16 %v3170
    %v3434 = vunpack.c.l.b16 %v3171
    %v3435 = vunpack.c.l.b16 %v3172
    %v3436 = vunpack.c.l.b16 %v3173
    %v3437 = vunpack.c.l.b16 %v3174
    %v3438 = vunpack.c.l.b16 %v3175
    %v3439 = vunpack.c.l.b16 %v3176
    %v3440 = vunpack.c.l.b16 %v3177
    %v3441 = vunpack.c.l.b16 %v3178
    %v3442 = vunpack.c.l.b16 %v3179
    %v3443 = vunpack.c.l.b16 %v3180
    %v3444 = vunpack.c.l.b16 %v3181
    %v3445 = vunpack.c.l.b16 %v3182
    %v3446 = vunpack.c.l.b16 %v3183
    %v3447 = vunpack.c.l.b16 %v3184
    %v3448 = vunpack.c.l.b16 %v3185
    %v3449 = vunpack.c.l.b16 %v3186
    %v3450 = vunpack.c.l.b16 %v3187
    %v3451 = vunpack.c.l.b16 %v3188
    %v3452 = vunpack.c.l.b16 %v3189
    %v3453 = vunpack.c.l.b16 %v3190
    %v3454 = vunpack.c.l.b16 %v3191
    %v3455 = vunpack.c.l.b16 %v3192
    %v3456 = vunpack.c.l.b16 %v3193
    %v3457 = vunpack.c.l.b16 %v3194
    %v3458 = vunpack.c.l.b16 %v3195
    %v3459 = vunpack.c.l.b16 %v3196
    %v3460 = vunpack.c.l.b16 %v3197
    %v3461 = vunpack.c.l.b16 %v3198
    %v3462 = vunpack.c.l.b16 %v3199
    %v3463 = vunpack.c.l.b16 %v3200
    %v3464 = vunpack.c.l.b16 %v3201
    %v3465 = vunpack.c.l.b16 %v3202
    %v3466 = vunpack.c.l.b16 %v3203
    %v3467 = vunpack.c.l.b16 %v3204
    %v3468 = vunpack.c.l.b16 %v3205
    %v3469 = vunpack.c.l.b16 %v3206
    %v3470 = vunpack.c.l.b16 %v3207
    %v3471 = vunpack.c.l.b16 %v3208
    %v3472 = vunpack.c.l.b16 %v3209
    %v3473 = vunpack.c.l.b16 %v3210
    %v3474 = vunpack.c.l.b16 %v3211
    %v3475 = vunpack.c.l.b16 %v3212
    %v3476 = vunpack.c.l.b16 %v3213
    %v3477 = vunpack.c.l.b16 %v3214
    %v3478 = vunpack.c.l.b16 %v3215
    %v3479 = vunpack.c.l.b16 %v3216
    %v3480 = vunpack.c.l.b16 %v3217
    %v3481 = vunpack.c.l.b16 %v3218
    %v3482 = vunpack.c.l.b16 %v3219
    %v3483 = vunpack.c.l.b16 %v3220
    %v3484 = vunpack.c.l.b16 %v3221
    %v3485 = vunpack.c.l.b16 %v3222
    %v3486 = vunpack.c.l.b16 %v3223
    %v3487 = vunpack.c.l.b16 %v3224
    %v3488 = vunpack.c.l.b16 %v3225
    %v3489 = vunpack.c.l.b16 %v3226
    %v3490 = vunpack.c.l.b16 %v3227
    %v3491 = vunpack.c.l.b16 %v3228
    %v3492 = vunpack.c.l.b16 %v3229
    %v3493 = vunpack.c.l.b16 %v3230
    %v3494 = vunpack.c.l.b16 %v3231
    %v3495 = vunpack.c.l.b16 %v3232
    %v3496 = vunpack.c.l.b16 %v3233
    %v3497 = vunpack.c.l.b16 %v3234
    %v3498 = vunpack.c.l.b16 %v3235
    %v3499 = vunpack.c.l.b16 %v3236
    %v3500 = vunpack.c.l.b16 %v3237
    %v3501 = vunpack.c.l.b16 %v3238
    %v3502 = vunpack.c.l.b16 %v3239
    %v3503 = vunpack.c.l.b16 %v3240
    %v3504 = vunpack.c.l.b16 %v3241
    %v3505 = vunpack.c.l.b16 %v3242
    %v3506 = vunpack.c.l.b16 %v3243
    %v3507 = vunpack.c.l.b16 %v3244
    %v3508 = vunpack.c.l.b16 %v3245
    %v3509 = vunpack.c.l.b16 %v3246
    %v3510 = vunpack.c.l.b16 %v3247
    %v3511 = vunpack.c.l.b16 %v3248
    %v3512 = vpack.c.b16 %v3385, %v3384
    %v3513 = vpack.c.b16 %v3387, %v3386
    %v3514 = vpack.c.b16 %v3389, %v3388
    %v3515 = vpack.c.b16 %v3391, %v3390
    %v3516 = vpack.c.b16 %v3393, %v3392
    %v3517 = vpack.c.b16 %v3395, %v3394
    %v3518 = vpack.c.b16 %v3397, %v3396
    %v3519 = vpack.c.b16 %v3399, %v3398
    %v3520 = vpack.c.b16 %v3401, %v3400
    %v3521 = vpack.c.b16 %v3403, %v3402
    %v3522 = vpack.c.b16 %v3405, %v3404
    %v3523 = vpack.c.b16 %v3407, %v3406
    %v3524 = vpack.c.b16 %v3409, %v3408
    %v3525 = vpack.c.b16 %v3411, %v3410
    %v3526 = vpack.c.b16 %v3413, %v3412
    %v3527 = vpack.c.b16 %v3415, %v3414
    %v3528 = vpack.c.b16 %v3417, %v3416
    %v3529 = vpack.c.b16 %v3419, %v3418
    %v3530 = vpack.c.b16 %v3421, %v3420
    %v3531 = vpack.c.b16 %v3423, %v3422
    %v3532 = vpack.c.b16 %v3425, %v3424
    %v3533 = vpack.c.b16 %v3427, %v3426
    %v3534 = vpack.c.b16 %v3429, %v3428
    %v3535 = vpack.c.b16 %v3431, %v3430
    %v3536 = vpack.c.b16 %v3433, %v3432
    %v3537 = vpack.c.b16 %v3435, %v3434
    %v3538 = vpack.c.b16 %v3437, %v3436
    %v3539 = vpack.c.b16 %v3439, %v3438
    %v3540 = vpack.c.b16 %v3441, %v3440
    %v3541 = vpack.c.b16 %v3443, %v3442
    %v3542 = vpack.c.b16 %v3445, %v3444
    %v3543 = vpack.c.b16 %v3447, %v3446
    %v3544 = vpack.c.b16 %v3449, %v3448
    %v3545 = vpack.c.b16 %v3451, %v3450
    %v3546 = vpack.c.b16 %v3453, %v3452
    %v3547 = vpack.c.b16 %v3455, %v3454
    %v3548 = vpack.c.b16 %v3457, %v3456
    %v3549 = vpack.c.b16 %v3459, %v3458
    %v3550 = vpack.c.b16 %v3461, %v3460
    %v3551 = vpack.c.b16 %v3463, %v3462
    %v3552 = vpack.c.b16 %v3465, %v3464
    %v3553 = vpack.c.b16 %v3467, %v3466
    %v3554 = vpack.c.b16 %v3469, %v3468
    %v3555 = vpack.c.b16 %v3471, %v3470
    %v3556 = vpack.c.b16 %v3473, %v3472
    %v3557 = vpack.c.b16 %v3475, %v3474
    %v3558 = vpack.c.b16 %v3477, %v3476
    %v3559 = vpack.c.b16 %v3479, %v3478
    %v3560 = vpack.c.b16 %v3481, %v3480
    %v3561 = vpack.c.b16 %v3483, %v3482
    %v3562 = vpack.c.b16 %v3485, %v3484
    %v3563 = vpack.c.b16 %v3487, %v3486
    %v3564 = vpack.c.b16 %v3489, %v3488
    %v3565 = vpack.c.b16 %v3491, %v3490
    %v3566 = vpack.c.b16 %v3493, %v3492
    %v3567 = vpack.c.b16 %v3495, %v3494
    %v3568 = vpack.c.b16 %v3497, %v3496
    %v3569 = vpack.c.b16 %v3499, %v3498
    %v3570 = vpack.c.b16 %v3501, %v3500
    %v3571 = vpack.c.b16 %v3503, %v3502
    %v3572 = vpack.c.b16 %v3505, %v3504
    %v3573 = vpack.c.b16 %v3507, %v3506
    %v3574 = vpack.c.b16 %v3509, %v3508
    %v3575 = vpack.c.b16 %v3511, %v3510
    %3640 = vmatprep.subr.bf16.mxu0 0
    %3641 = vmatpush1.bf16.msra.mxu0 %v3512
    %3642 = vmatprep.subr.bf16.mxu0 0
    %3643 = vmatpush1.bf16.msra.mxu0 %v3513
    %3644 = vmatprep.subr.bf16.mxu0 0
    %3645 = vmatpush1.bf16.msra.mxu0 %v3514
    %3646 = vmatprep.subr.bf16.mxu0 0
    %3647 = vmatpush1.bf16.msra.mxu0 %v3515
    %3648 = vmatprep.subr.bf16.mxu0 0
    %3649 = vmatpush1.bf16.msra.mxu0 %v3516
    %3650 = vmatprep.subr.bf16.mxu0 0
    %3651 = vmatpush1.bf16.msra.mxu0 %v3517
    %3652 = vmatprep.subr.bf16.mxu0 0
    %3653 = vmatpush1.bf16.msra.mxu0 %v3518
    %3654 = vmatprep.subr.bf16.mxu0 0
    %3655 = vmatpush1.bf16.msra.mxu0 %v3519
    %3656 = vmatprep.subr.bf16.mxu0 0
    %3657 = vmatpush1.bf16.msra.mxu0 %v3520
    %3658 = vmatprep.subr.bf16.mxu0 0
    %3659 = vmatpush1.bf16.msra.mxu0 %v3521
    %3660 = vmatprep.subr.bf16.mxu0 0
    %3661 = vmatpush1.bf16.msra.mxu0 %v3522
    %3662 = vmatprep.subr.bf16.mxu0 0
    %3663 = vmatpush1.bf16.msra.mxu0 %v3523
    %3664 = vmatprep.subr.bf16.mxu0 0
    %3665 = vmatpush1.bf16.msra.mxu0 %v3524
    %3666 = vmatprep.subr.bf16.mxu0 0
    %3667 = vmatpush1.bf16.msra.mxu0 %v3525
    %3668 = vmatprep.subr.bf16.mxu0 0
    %3669 = vmatpush1.bf16.msra.mxu0 %v3526
    %3670 = vmatprep.subr.bf16.mxu0 0
    %3671 = vmatpush1.bf16.msra.mxu0 %v3527
    %3672 = vmatprep.mubr.bf16.mxu0 %v2866
    %3673 = vmatmul.mubr.bf16.gmra.mrb[0].mxu0 %v2865
    %v3674 = vpop.f32.mrb[0].mxu0
    %v3675 = vadd.f32 %v3254, %v3674
    %v3676 = vpop.f32.mrb[0].mxu0
    %v3677 = vpop.f32.mrb[0].mxu0
    %v3678 = vadd.f32 %v3254, %v3677
    %v3679 = vpop.f32.mrb[0].mxu0
    %3680 = vmatprep.mubr.bf16.mxu0 %v2874
    %3681 = vmatmul.mubr.bf16.gmra.mrb[0].mxu0 %v2873
    %v3682 = vpop.f32.mrb[0].mxu0
    %v3683 = vadd.f32 %v3254, %v3682
    %v3684 = vpop.f32.mrb[0].mxu0
    %v3685 = vpop.f32.mrb[0].mxu0
    %v3686 = vadd.f32 %v3254, %v3685
    %v3687 = vpop.f32.mrb[0].mxu0
    %3688 = vmatprep.mubr.bf16.mxu0 %v2882
    %3689 = vmatmul.mubr.bf16.gmra.mrb[0].mxu0 %v2881
    %v3690 = vpop.f32.mrb[0].mxu0
    %v3691 = vadd.f32 %v3254, %v3690
    %v3692 = vpop.f32.mrb[0].mxu0
    %v3693 = vpop.f32.mrb[0].mxu0
    %v3694 = vadd.f32 %v3254, %v3693
    %v3695 = vpop.f32.mrb[0].mxu0
    %3696 = vmatprep.mubr.bf16.mxu0 %v2890
    %3697 = vmatmul.mubr.bf16.gmra.mrb[0].mxu0 %v2889
    %v3698 = vpop.f32.mrb[0].mxu0
    %v3699 = vadd.f32 %v3254, %v3698
    %v3700 = vpop.f32.mrb[0].mxu0
    %v3701 = vpop.f32.mrb[0].mxu0
    %v3702 = vadd.f32 %v3254, %v3701
    %v3703 = vpop.f32.mrb[0].mxu0
    %3704 = vmatprep.mubr.bf16.mxu0 %v2898
    %3705 = vmatmul.mubr.bf16.gmra.mrb[0].mxu0 %v2897
    %v3706 = vpop.f32.mrb[0].mxu0
    %v3707 = vadd.f32 %v3254, %v3706
    %v3708 = vpop.f32.mrb[0].mxu0
    %v3709 = vpop.f32.mrb[0].mxu0
    %v3710 = vadd.f32 %v3254, %v3709
    %v3711 = vpop.f32.mrb[0].mxu0
    %3712 = vmatprep.mubr.bf16.mxu0 %v2906
    %3713 = vmatmul.mubr.bf16.gmra.mrb[0].mxu0 %v2905
    %v3714 = vpop.f32.mrb[0].mxu0
    %v3715 = vadd.f32 %v3254, %v3714
    %v3716 = vpop.f32.mrb[0].mxu0
    %v3717 = vpop.f32.mrb[0].mxu0
    %v3718 = vadd.f32 %v3254, %v3717
    %v3719 = vpop.f32.mrb[0].mxu0
    %3720 = vmatprep.mubr.bf16.mxu0 %v2914
    %3721 = vmatmul.mubr.bf16.gmra.mrb[0].mxu0 %v2913
    %v3722 = vpop.f32.mrb[0].mxu0
    %v3723 = vadd.f32 %v3254, %v3722
    %v3724 = vpop.f32.mrb[0].mxu0
    %v3725 = vpop.f32.mrb[0].mxu0
    %v3726 = vadd.f32 %v3254, %v3725
    %v3727 = vpop.f32.mrb[0].mxu0
    %3728 = vmatprep.mubr.bf16.mxu0 %v2922
    %3729 = vmatmul.mubr.bf16.gmra.mrb[0].mxu0 %v2921
    %v3730 = vpop.f32.mrb[0].mxu0
    %v3731 = vadd.f32 %v3254, %v3730
    %v3732 = vpop.f32.mrb[0].mxu0
    %v3733 = vpop.f32.mrb[0].mxu0
    %v3734 = vadd.f32 %v3254, %v3733
    %v3735 = vpop.f32.mrb[0].mxu0
    %3736 = vmatprep.mubr.bf16.mxu0 %v2930
    %3737 = vmatmul.mubr.bf16.gmra.mrb[0].mxu0 %v2929
    %v3738 = vpop.f32.mrb[0].mxu0
    %v3739 = vadd.f32 %v3254, %v3738
    %v3740 = vpop.f32.mrb[0].mxu0
    %v3741 = vpop.f32.mrb[0].mxu0
    %v3742 = vadd.f32 %v3254, %v3741
    %v3743 = vpop.f32.mrb[0].mxu0
    %3744 = vmatprep.mubr.bf16.mxu0 %v2938
    %3745 = vmatmul.mubr.bf16.gmra.mrb[0].mxu0 %v2937
    %v3746 = vpop.f32.mrb[0].mxu0
    %v3747 = vadd.f32 %v3254, %v3746
    %v3748 = vpop.f32.mrb[0].mxu0
    %v3749 = vpop.f32.mrb[0].mxu0
    %v3750 = vadd.f32 %v3254, %v3749
    %v3751 = vpop.f32.mrb[0].mxu0
    %3752 = vmatprep.mubr.bf16.mxu0 %v2946
    %3753 = vmatmul.mubr.bf16.gmra.mrb[0].mxu0 %v2945
    %v3754 = vpop.f32.mrb[0].mxu0
    %v3755 = vadd.f32 %v3254, %v3754
    %v3756 = vpop.f32.mrb[0].mxu0
    %v3757 = vpop.f32.mrb[0].mxu0
    %v3758 = vadd.f32 %v3254, %v3757
    %v3759 = vpop.f32.mrb[0].mxu0
    %3760 = vmatprep.mubr.bf16.mxu0 %v2954
    %3761 = vmatmul.mubr.bf16.gmra.mrb[0].mxu0 %v2953
    %v3762 = vpop.f32.mrb[0].mxu0
    %v3763 = vadd.f32 %v3254, %v3762
    %v3764 = vpop.f32.mrb[0].mxu0
    %v3765 = vpop.f32.mrb[0].mxu0
    %v3766 = vadd.f32 %v3254, %v3765
    %v3767 = vpop.f32.mrb[0].mxu0
    %3768 = vmatprep.mubr.bf16.mxu0 %v2962
    %3769 = vmatmul.mubr.bf16.gmra.mrb[0].mxu0 %v2961
    %v3770 = vpop.f32.mrb[0].mxu0
    %v3771 = vadd.f32 %v3254, %v3770
    %v3772 = vpop.f32.mrb[0].mxu0
    %v3773 = vpop.f32.mrb[0].mxu0
    %v3774 = vadd.f32 %v3254, %v3773
    %v3775 = vpop.f32.mrb[0].mxu0
    %3776 = vmatprep.mubr.bf16.mxu0 %v2970
    %3777 = vmatmul.mubr.bf16.gmra.mrb[0].mxu0 %v2969
    %v3778 = vpop.f32.mrb[0].mxu0
    %v3779 = vadd.f32 %v3254, %v3778
    %v3780 = vpop.f32.mrb[0].mxu0
    %v3781 = vpop.f32.mrb[0].mxu0
    %v3782 = vadd.f32 %v3254, %v3781
    %v3783 = vpop.f32.mrb[0].mxu0
    %3784 = vmatprep.mubr.bf16.mxu0 %v2978
    %3785 = vmatmul.mubr.bf16.gmra.mrb[0].mxu0 %v2977
    %v3786 = vpop.f32.mrb[0].mxu0
    %v3787 = vadd.f32 %v3254, %v3786
    %v3788 = vpop.f32.mrb[0].mxu0
    %v3789 = vpop.f32.mrb[0].mxu0
    %v3790 = vadd.f32 %v3254, %v3789
    %v3791 = vpop.f32.mrb[0].mxu0
    %3792 = vmatprep.mubr.bf16.mxu0 %v2986
    %3793 = vmatmul.mubr.bf16.gmra.mrb[0].mxu0 %v2985
    %v3794 = vpop.f32.mrb[0].mxu0
    %v3795 = vadd.f32 %v3254, %v3794
    %v3796 = vpop.f32.mrb[0].mxu0
    %v3797 = vpop.f32.mrb[0].mxu0
    %v3798 = vadd.f32 %v3254, %v3797
    %v3799 = vpop.f32.mrb[0].mxu0
    %3800 = vmatprep.mubr.bf16.mxu0 %v2994
    %3801 = vmatmul.mubr.bf16.gmra.mrb[0].mxu0 %v2993
    %v3802 = vpop.f32.mrb[0].mxu0
    %v3803 = vadd.f32 %v3254, %v3802
    %v3804 = vpop.f32.mrb[0].mxu0
    %v3805 = vpop.f32.mrb[0].mxu0
    %v3806 = vadd.f32 %v3254, %v3805
    %v3807 = vpop.f32.mrb[0].mxu0
    %3808 = vmatprep.mubr.bf16.mxu0 %v3002
    %3809 = vmatmul.mubr.bf16.gmra.mrb[0].mxu0 %v3001
    %v3810 = vpop.f32.mrb[0].mxu0
    %v3811 = vadd.f32 %v3254, %v3810
    %v3812 = vpop.f32.mrb[0].mxu0
    %v3813 = vpop.f32.mrb[0].mxu0
    %v3814 = vadd.f32 %v3254, %v3813
    %v3815 = vpop.f32.mrb[0].mxu0
    %3816 = vmatprep.mubr.bf16.mxu0 %v3010
    %3817 = vmatmul.mubr.bf16.gmra.mrb[0].mxu0 %v3009
    %v3818 = vpop.f32.mrb[0].mxu0
    %v3819 = vadd.f32 %v3254, %v3818
    %v3820 = vpop.f32.mrb[0].mxu0
    %v3821 = vpop.f32.mrb[0].mxu0
    %v3822 = vadd.f32 %v3254, %v3821
    %v3823 = vpop.f32.mrb[0].mxu0
    %3824 = vmatprep.mubr.bf16.mxu0 %v3018
    %3825 = vmatmul.mubr.bf16.gmra.mrb[0].mxu0 %v3017
    %v3826 = vpop.f32.mrb[0].mxu0
    %v3827 = vadd.f32 %v3254, %v3826
    %v3828 = vpop.f32.mrb[0].mxu0
    %v3829 = vpop.f32.mrb[0].mxu0
    %v3830 = vadd.f32 %v3254, %v3829
    %v3831 = vpop.f32.mrb[0].mxu0
    %3832 = vmatprep.mubr.bf16.mxu0 %v3026
    %3833 = vmatmul.mubr.bf16.gmra.mrb[0].mxu0 %v3025
    %v3834 = vpop.f32.mrb[0].mxu0
    %v3835 = vadd.f32 %v3254, %v3834
    %v3836 = vpop.f32.mrb[0].mxu0
    %v3837 = vpop.f32.mrb[0].mxu0
    %v3838 = vadd.f32 %v3254, %v3837
    %v3839 = vpop.f32.mrb[0].mxu0
    %3840 = vmatprep.mubr.bf16.mxu0 %v3034
    %3841 = vmatmul.mubr.bf16.gmra.mrb[0].mxu0 %v3033
    %v3842 = vpop.f32.mrb[0].mxu0
    %v3843 = vadd.f32 %v3254, %v3842
    %v3844 = vpop.f32.mrb[0].mxu0
    %v3845 = vpop.f32.mrb[0].mxu0
    %v3846 = vadd.f32 %v3254, %v3845
    %v3847 = vpop.f32.mrb[0].mxu0
    %3848 = vmatprep.mubr.bf16.mxu0 %v3042
    %3849 = vmatmul.mubr.bf16.gmra.mrb[0].mxu0 %v3041
    %v3850 = vpop.f32.mrb[0].mxu0
    %v3851 = vadd.f32 %v3254, %v3850
    %v3852 = vpop.f32.mrb[0].mxu0
    %v3853 = vpop.f32.mrb[0].mxu0
    %v3854 = vadd.f32 %v3254, %v3853
    %v3855 = vpop.f32.mrb[0].mxu0
    %3856 = vmatprep.mubr.bf16.mxu0 %v3050
    %3857 = vmatmul.mubr.bf16.gmra.mrb[0].mxu0 %v3049
    %v3858 = vpop.f32.mrb[0].mxu0
    %v3859 = vadd.f32 %v3254, %v3858
    %v3860 = vpop.f32.mrb[0].mxu0
    %v3861 = vpop.f32.mrb[0].mxu0
    %v3862 = vadd.f32 %v3254, %v3861
    %v3863 = vpop.f32.mrb[0].mxu0
    %3864 = vmatprep.mubr.bf16.mxu0 %v3058
    %3865 = vmatmul.mubr.bf16.gmra.mrb[0].mxu0 %v3057
    %v3866 = vpop.f32.mrb[0].mxu0
    %v3867 = vadd.f32 %v3254, %v3866
    %v3868 = vpop.f32.mrb[0].mxu0
    %v3869 = vpop.f32.mrb[0].mxu0
    %v3870 = vadd.f32 %v3254, %v3869
    %v3871 = vpop.f32.mrb[0].mxu0
    %3872 = vmatprep.mubr.bf16.mxu0 %v3066
    %3873 = vmatmul.mubr.bf16.gmra.mrb[0].mxu0 %v3065
    %v3874 = vpop.f32.mrb[0].mxu0
    %v3875 = vadd.f32 %v3254, %v3874
    %v3876 = vpop.f32.mrb[0].mxu0
    %v3877 = vpop.f32.mrb[0].mxu0
    %v3878 = vadd.f32 %v3254, %v3877
    %v3879 = vpop.f32.mrb[0].mxu0
    %3880 = vmatprep.mubr.bf16.mxu0 %v3074
    %3881 = vmatmul.mubr.bf16.gmra.mrb[0].mxu0 %v3073
    %v3882 = vpop.f32.mrb[0].mxu0
    %v3883 = vadd.f32 %v3254, %v3882
    %v3884 = vpop.f32.mrb[0].mxu0
    %v3885 = vpop.f32.mrb[0].mxu0
    %v3886 = vadd.f32 %v3254, %v3885
    %v3887 = vpop.f32.mrb[0].mxu0
    %3888 = vmatprep.mubr.bf16.mxu0 %v3082
    %3889 = vmatmul.mubr.bf16.gmra.mrb[0].mxu0 %v3081
    %v3890 = vpop.f32.mrb[0].mxu0
    %v3891 = vadd.f32 %v3254, %v3890
    %v3892 = vpop.f32.mrb[0].mxu0
    %v3893 = vpop.f32.mrb[0].mxu0
    %v3894 = vadd.f32 %v3254, %v3893
    %v3895 = vpop.f32.mrb[0].mxu0
    %3896 = vmatprep.mubr.bf16.mxu0 %v3090
    %3897 = vmatmul.mubr.bf16.gmra.mrb[0].mxu0 %v3089
    %v3898 = vpop.f32.mrb[0].mxu0
    %v3899 = vadd.f32 %v3254, %v3898
    %v3900 = vpop.f32.mrb[0].mxu0
    %v3901 = vpop.f32.mrb[0].mxu0
    %v3902 = vadd.f32 %v3254, %v3901
    %v3903 = vpop.f32.mrb[0].mxu0
    %3904 = vmatprep.mubr.bf16.mxu0 %v3098
    %3905 = vmatmul.mubr.bf16.gmra.mrb[0].mxu0 %v3097
    %v3906 = vpop.f32.mrb[0].mxu0
    %v3907 = vadd.f32 %v3254, %v3906
    %v3908 = vpop.f32.mrb[0].mxu0
    %v3909 = vpop.f32.mrb[0].mxu0
    %v3910 = vadd.f32 %v3254, %v3909
    %v3911 = vpop.f32.mrb[0].mxu0
    %3912 = vmatprep.mubr.bf16.mxu0 %v3106
    %3913 = vmatmul.mubr.bf16.gmra.mrb[0].mxu0 %v3105
    %v3914 = vpop.f32.mrb[0].mxu0
    %v3915 = vadd.f32 %v3254, %v3914
    %v3916 = vpop.f32.mrb[0].mxu0
    %v3917 = vpop.f32.mrb[0].mxu0
    %v3918 = vadd.f32 %v3254, %v3917
    %v3919 = vpop.f32.mrb[0].mxu0
    %3920 = vmatprep.mubr.bf16.mxu0 %v3114
    %3921 = vmatmul.mubr.bf16.gmra.mrb[0].mxu0 %v3113
    %v3922 = vpop.f32.mrb[0].mxu0
    %v3923 = vadd.f32 %v3254, %v3922
    %v3924 = vpop.f32.mrb[0].mxu0
    %v3925 = vpop.f32.mrb[0].mxu0
    %v3926 = vadd.f32 %v3254, %v3925
    %v3927 = vpop.f32.mrb[0].mxu0
    %3928 = vdwg.mxu0
    %3929 = vmatprep.subr.bf16.mxu0 0
    %3930 = vmatpush1.bf16.msra.mxu0 %v3528
    %3931 = vmatprep.subr.bf16.mxu0 0
    %3932 = vmatpush1.bf16.msra.mxu0 %v3529
    %3933 = vmatprep.subr.bf16.mxu0 0
    %3934 = vmatpush1.bf16.msra.mxu0 %v3530
    %3935 = vmatprep.subr.bf16.mxu0 0
    %3936 = vmatpush1.bf16.msra.mxu0 %v3531
    %3937 = vmatprep.subr.bf16.mxu0 0
    %3938 = vmatpush1.bf16.msra.mxu0 %v3532
    %3939 = vmatprep.subr.bf16.mxu0 0
    %3940 = vmatpush1.bf16.msra.mxu0 %v3533
    %3941 = vmatprep.subr.bf16.mxu0 0
    %3942 = vmatpush1.bf16.msra.mxu0 %v3534
    %3943 = vmatprep.subr.bf16.mxu0 0
    %3944 = vmatpush1.bf16.msra.mxu0 %v3535
    %3945 = vmatprep.subr.bf16.mxu0 0
    %3946 = vmatpush1.bf16.msra.mxu0 %v3536
    %3947 = vmatprep.subr.bf16.mxu0 0
    %3948 = vmatpush1.bf16.msra.mxu0 %v3537
    %3949 = vmatprep.subr.bf16.mxu0 0
    %3950 = vmatpush1.bf16.msra.mxu0 %v3538
    %3951 = vmatprep.subr.bf16.mxu0 0
    %3952 = vmatpush1.bf16.msra.mxu0 %v3539
    %3953 = vmatprep.subr.bf16.mxu0 0
    %3954 = vmatpush1.bf16.msra.mxu0 %v3540
    %3955 = vmatprep.subr.bf16.mxu0 0
    %3956 = vmatpush1.bf16.msra.mxu0 %v3541
    %3957 = vmatprep.subr.bf16.mxu0 0
    %3958 = vmatpush1.bf16.msra.mxu0 %v3542
    %3959 = vmatprep.subr.bf16.mxu0 0
    %3960 = vmatpush1.bf16.msra.mxu0 %v3543
    %3961 = vmatprep.mubr.bf16.mxu0 %v2868
    %3962 = vmatmul.mubr.bf16.gmra.mrb[0].mxu0 %v2867
    %v3963 = vpop.f32.mrb[0].mxu0
    %v3964 = vadd.f32 %v3675, %v3963
    %v3965 = vpop.f32.mrb[0].mxu0
    %v3966 = vpop.f32.mrb[0].mxu0
    %v3967 = vadd.f32 %v3678, %v3966
    %v3968 = vpop.f32.mrb[0].mxu0
    %3969 = vmatprep.mubr.bf16.mxu0 %v2876
    %3970 = vmatmul.mubr.bf16.gmra.mrb[0].mxu0 %v2875
    %v3971 = vpop.f32.mrb[0].mxu0
    %v3972 = vadd.f32 %v3683, %v3971
    %v3973 = vpop.f32.mrb[0].mxu0
    %v3974 = vpop.f32.mrb[0].mxu0
    %v3975 = vadd.f32 %v3686, %v3974
    %v3976 = vpop.f32.mrb[0].mxu0
    %3977 = vmatprep.mubr.bf16.mxu0 %v2884
    %3978 = vmatmul.mubr.bf16.gmra.mrb[0].mxu0 %v2883
    %v3979 = vpop.f32.mrb[0].mxu0
    %v3980 = vadd.f32 %v3691, %v3979
    %v3981 = vpop.f32.mrb[0].mxu0
    %v3982 = vpop.f32.mrb[0].mxu0
    %v3983 = vadd.f32 %v3694, %v3982
    %v3984 = vpop.f32.mrb[0].mxu0
    %3985 = vmatprep.mubr.bf16.mxu0 %v2892
    %3986 = vmatmul.mubr.bf16.gmra.mrb[0].mxu0 %v2891
    %v3987 = vpop.f32.mrb[0].mxu0
    %v3988 = vadd.f32 %v3699, %v3987
    %v3989 = vpop.f32.mrb[0].mxu0
    %v3990 = vpop.f32.mrb[0].mxu0
    %v3991 = vadd.f32 %v3702, %v3990
    %v3992 = vpop.f32.mrb[0].mxu0
    %3993 = vmatprep.mubr.bf16.mxu0 %v2900
    %3994 = vmatmul.mubr.bf16.gmra.mrb[0].mxu0 %v2899
    %v3995 = vpop.f32.mrb[0].mxu0
    %v3996 = vadd.f32 %v3707, %v3995
    %v3997 = vpop.f32.mrb[0].mxu0
    %v3998 = vpop.f32.mrb[0].mxu0
    %v3999 = vadd.f32 %v3710, %v3998
    %v4000 = vpop.f32.mrb[0].mxu0
    %4001 = vmatprep.mubr.bf16.mxu0 %v2908
    %4002 = vmatmul.mubr.bf16.gmra.mrb[0].mxu0 %v2907
    %v4003 = vpop.f32.mrb[0].mxu0
    %v4004 = vadd.f32 %v3715, %v4003
    %v4005 = vpop.f32.mrb[0].mxu0
    %v4006 = vpop.f32.mrb[0].mxu0
    %v4007 = vadd.f32 %v3718, %v4006
    %v4008 = vpop.f32.mrb[0].mxu0
    %4009 = vmatprep.mubr.bf16.mxu0 %v2916
    %4010 = vmatmul.mubr.bf16.gmra.mrb[0].mxu0 %v2915
    %v4011 = vpop.f32.mrb[0].mxu0
    %v4012 = vadd.f32 %v3723, %v4011
    %v4013 = vpop.f32.mrb[0].mxu0
    %v4014 = vpop.f32.mrb[0].mxu0
    %v4015 = vadd.f32 %v3726, %v4014
    %v4016 = vpop.f32.mrb[0].mxu0
    %4017 = vmatprep.mubr.bf16.mxu0 %v2924
    %4018 = vmatmul.mubr.bf16.gmra.mrb[0].mxu0 %v2923
    %v4019 = vpop.f32.mrb[0].mxu0
    %v4020 = vadd.f32 %v3731, %v4019
    %v4021 = vpop.f32.mrb[0].mxu0
    %v4022 = vpop.f32.mrb[0].mxu0
    %v4023 = vadd.f32 %v3734, %v4022
    %v4024 = vpop.f32.mrb[0].mxu0
    %4025 = vmatprep.mubr.bf16.mxu0 %v2932
    %4026 = vmatmul.mubr.bf16.gmra.mrb[0].mxu0 %v2931
    %v4027 = vpop.f32.mrb[0].mxu0
    %v4028 = vadd.f32 %v3739, %v4027
    %v4029 = vpop.f32.mrb[0].mxu0
    %v4030 = vpop.f32.mrb[0].mxu0
    %v4031 = vadd.f32 %v3742, %v4030
    %v4032 = vpop.f32.mrb[0].mxu0
    %4033 = vmatprep.mubr.bf16.mxu0 %v2940
    %4034 = vmatmul.mubr.bf16.gmra.mrb[0].mxu0 %v2939
    %v4035 = vpop.f32.mrb[0].mxu0
    %v4036 = vadd.f32 %v3747, %v4035
    %v4037 = vpop.f32.mrb[0].mxu0
    %v4038 = vpop.f32.mrb[0].mxu0
    %v4039 = vadd.f32 %v3750, %v4038
    %v4040 = vpop.f32.mrb[0].mxu0
    %4041 = vmatprep.mubr.bf16.mxu0 %v2948
    %4042 = vmatmul.mubr.bf16.gmra.mrb[0].mxu0 %v2947
    %v4043 = vpop.f32.mrb[0].mxu0
    %v4044 = vadd.f32 %v3755, %v4043
    %v4045 = vpop.f32.mrb[0].mxu0
    %v4046 = vpop.f32.mrb[0].mxu0
    %v4047 = vadd.f32 %v3758, %v4046
    %v4048 = vpop.f32.mrb[0].mxu0
    %4049 = vmatprep.mubr.bf16.mxu0 %v2956
    %4050 = vmatmul.mubr.bf16.gmra.mrb[0].mxu0 %v2955
    %v4051 = vpop.f32.mrb[0].mxu0
    %v4052 = vadd.f32 %v3763, %v4051
    %v4053 = vpop.f32.mrb[0].mxu0
    %v4054 = vpop.f32.mrb[0].mxu0
    %v4055 = vadd.f32 %v3766, %v4054
    %v4056 = vpop.f32.mrb[0].mxu0
    %4057 = vmatprep.mubr.bf16.mxu0 %v2964
    %4058 = vmatmul.mubr.bf16.gmra.mrb[0].mxu0 %v2963
    %v4059 = vpop.f32.mrb[0].mxu0
    %v4060 = vadd.f32 %v3771, %v4059
    %v4061 = vpop.f32.mrb[0].mxu0
    %v4062 = vpop.f32.mrb[0].mxu0
    %v4063 = vadd.f32 %v3774, %v4062
    %v4064 = vpop.f32.mrb[0].mxu0
    %4065 = vmatprep.mubr.bf16.mxu0 %v2972
    %4066 = vmatmul.mubr.bf16.gmra.mrb[0].mxu0 %v2971
    %v4067 = vpop.f32.mrb[0].mxu0
    %v4068 = vadd.f32 %v3779, %v4067
    %v4069 = vpop.f32.mrb[0].mxu0
    %v4070 = vpop.f32.mrb[0].mxu0
    %v4071 = vadd.f32 %v3782, %v4070
    %v4072 = vpop.f32.mrb[0].mxu0
    %4073 = vmatprep.mubr.bf16.mxu0 %v2980
    %4074 = vmatmul.mubr.bf16.gmra.mrb[0].mxu0 %v2979
    %v4075 = vpop.f32.mrb[0].mxu0
    %v4076 = vadd.f32 %v3787, %v4075
    %v4077 = vpop.f32.mrb[0].mxu0
    %v4078 = vpop.f32.mrb[0].mxu0
    %v4079 = vadd.f32 %v3790, %v4078
    %v4080 = vpop.f32.mrb[0].mxu0
    %4081 = vmatprep.mubr.bf16.mxu0 %v2988
    %4082 = vmatmul.mubr.bf16.gmra.mrb[0].mxu0 %v2987
    %v4083 = vpop.f32.mrb[0].mxu0
    %v4084 = vadd.f32 %v3795, %v4083
    %v4085 = vpop.f32.mrb[0].mxu0
    %v4086 = vpop.f32.mrb[0].mxu0
    %v4087 = vadd.f32 %v3798, %v4086
    %v4088 = vpop.f32.mrb[0].mxu0
    %4089 = vmatprep.mubr.bf16.mxu0 %v2996
    %4090 = vmatmul.mubr.bf16.gmra.mrb[0].mxu0 %v2995
    %v4091 = vpop.f32.mrb[0].mxu0
    %v4092 = vadd.f32 %v3803, %v4091
    %v4093 = vpop.f32.mrb[0].mxu0
    %v4094 = vpop.f32.mrb[0].mxu0
    %v4095 = vadd.f32 %v3806, %v4094
    %v4096 = vpop.f32.mrb[0].mxu0
    %4097 = vmatprep.mubr.bf16.mxu0 %v3004
    %4098 = vmatmul.mubr.bf16.gmra.mrb[0].mxu0 %v3003
    %v4099 = vpop.f32.mrb[0].mxu0
    %v4100 = vadd.f32 %v3811, %v4099
    %v4101 = vpop.f32.mrb[0].mxu0
    %v4102 = vpop.f32.mrb[0].mxu0
    %v4103 = vadd.f32 %v3814, %v4102
    %v4104 = vpop.f32.mrb[0].mxu0
    %4105 = vmatprep.mubr.bf16.mxu0 %v3012
    %4106 = vmatmul.mubr.bf16.gmra.mrb[0].mxu0 %v3011
    %v4107 = vpop.f32.mrb[0].mxu0
    %v4108 = vadd.f32 %v3819, %v4107
    %v4109 = vpop.f32.mrb[0].mxu0
    %v4110 = vpop.f32.mrb[0].mxu0
    %v4111 = vadd.f32 %v3822, %v4110
    %v4112 = vpop.f32.mrb[0].mxu0
    %4113 = vmatprep.mubr.bf16.mxu0 %v3020
    %4114 = vmatmul.mubr.bf16.gmra.mrb[0].mxu0 %v3019
    %v4115 = vpop.f32.mrb[0].mxu0
    %v4116 = vadd.f32 %v3827, %v4115
    %v4117 = vpop.f32.mrb[0].mxu0
    %v4118 = vpop.f32.mrb[0].mxu0
    %v4119 = vadd.f32 %v3830, %v4118
    %v4120 = vpop.f32.mrb[0].mxu0
    %4121 = vmatprep.mubr.bf16.mxu0 %v3028
    %4122 = vmatmul.mubr.bf16.gmra.mrb[0].mxu0 %v3027
    %v4123 = vpop.f32.mrb[0].mxu0
    %v4124 = vadd.f32 %v3835, %v4123
    %v4125 = vpop.f32.mrb[0].mxu0
    %v4126 = vpop.f32.mrb[0].mxu0
    %v4127 = vadd.f32 %v3838, %v4126
    %v4128 = vpop.f32.mrb[0].mxu0
    %4129 = vmatprep.mubr.bf16.mxu0 %v3036
    %4130 = vmatmul.mubr.bf16.gmra.mrb[0].mxu0 %v3035
    %v4131 = vpop.f32.mrb[0].mxu0
    %v4132 = vadd.f32 %v3843, %v4131
    %v4133 = vpop.f32.mrb[0].mxu0
    %v4134 = vpop.f32.mrb[0].mxu0
    %v4135 = vadd.f32 %v3846, %v4134
    %v4136 = vpop.f32.mrb[0].mxu0
    %4137 = vmatprep.mubr.bf16.mxu0 %v3044
    %4138 = vmatmul.mubr.bf16.gmra.mrb[0].mxu0 %v3043
    %v4139 = vpop.f32.mrb[0].mxu0
    %v4140 = vadd.f32 %v3851, %v4139
    %v4141 = vpop.f32.mrb[0].mxu0
    %v4142 = vpop.f32.mrb[0].mxu0
    %v4143 = vadd.f32 %v3854, %v4142
    %v4144 = vpop.f32.mrb[0].mxu0
    %4145 = vmatprep.mubr.bf16.mxu0 %v3052
    %4146 = vmatmul.mubr.bf16.gmra.mrb[0].mxu0 %v3051
    %v4147 = vpop.f32.mrb[0].mxu0
    %v4148 = vadd.f32 %v3859, %v4147
    %v4149 = vpop.f32.mrb[0].mxu0
    %v4150 = vpop.f32.mrb[0].mxu0
    %v4151 = vadd.f32 %v3862, %v4150
    %v4152 = vpop.f32.mrb[0].mxu0
    %4153 = vmatprep.mubr.bf16.mxu0 %v3060
    %4154 = vmatmul.mubr.bf16.gmra.mrb[0].mxu0 %v3059
    %v4155 = vpop.f32.mrb[0].mxu0
    %v4156 = vadd.f32 %v3867, %v4155
    %v4157 = vpop.f32.mrb[0].mxu0
    %v4158 = vpop.f32.mrb[0].mxu0
    %v4159 = vadd.f32 %v3870, %v4158
    %v4160 = vpop.f32.mrb[0].mxu0
    %4161 = vmatprep.mubr.bf16.mxu0 %v3068
    %4162 = vmatmul.mubr.bf16.gmra.mrb[0].mxu0 %v3067
    %v4163 = vpop.f32.mrb[0].mxu0
    %v4164 = vadd.f32 %v3875, %v4163
    %v4165 = vpop.f32.mrb[0].mxu0
    %v4166 = vpop.f32.mrb[0].mxu0
    %v4167 = vadd.f32 %v3878, %v4166
    %v4168 = vpop.f32.mrb[0].mxu0
    %4169 = vmatprep.mubr.bf16.mxu0 %v3076
    %4170 = vmatmul.mubr.bf16.gmra.mrb[0].mxu0 %v3075
    %v4171 = vpop.f32.mrb[0].mxu0
    %v4172 = vadd.f32 %v3883, %v4171
    %v4173 = vpop.f32.mrb[0].mxu0
    %v4174 = vpop.f32.mrb[0].mxu0
    %v4175 = vadd.f32 %v3886, %v4174
    %v4176 = vpop.f32.mrb[0].mxu0
    %4177 = vmatprep.mubr.bf16.mxu0 %v3084
    %4178 = vmatmul.mubr.bf16.gmra.mrb[0].mxu0 %v3083
    %v4179 = vpop.f32.mrb[0].mxu0
    %v4180 = vadd.f32 %v3891, %v4179
    %v4181 = vpop.f32.mrb[0].mxu0
    %v4182 = vpop.f32.mrb[0].mxu0
    %v4183 = vadd.f32 %v3894, %v4182
    %v4184 = vpop.f32.mrb[0].mxu0
    %4185 = vmatprep.mubr.bf16.mxu0 %v3092
    %4186 = vmatmul.mubr.bf16.gmra.mrb[0].mxu0 %v3091
    %v4187 = vpop.f32.mrb[0].mxu0
    %v4188 = vadd.f32 %v3899, %v4187
    %v4189 = vpop.f32.mrb[0].mxu0
    %v4190 = vpop.f32.mrb[0].mxu0
    %v4191 = vadd.f32 %v3902, %v4190
    %v4192 = vpop.f32.mrb[0].mxu0
    %4193 = vmatprep.mubr.bf16.mxu0 %v3100
    %4194 = vmatmul.mubr.bf16.gmra.mrb[0].mxu0 %v3099
    %v4195 = vpop.f32.mrb[0].mxu0
    %v4196 = vadd.f32 %v3907, %v4195
    %v4197 = vpop.f32.mrb[0].mxu0
    %v4198 = vpop.f32.mrb[0].mxu0
    %v4199 = vadd.f32 %v3910, %v4198
    %v4200 = vpop.f32.mrb[0].mxu0
    %4201 = vmatprep.mubr.bf16.mxu0 %v3108
    %4202 = vmatmul.mubr.bf16.gmra.mrb[0].mxu0 %v3107
    %v4203 = vpop.f32.mrb[0].mxu0
    %v4204 = vadd.f32 %v3915, %v4203
    %v4205 = vpop.f32.mrb[0].mxu0
    %v4206 = vpop.f32.mrb[0].mxu0
    %v4207 = vadd.f32 %v3918, %v4206
    %v4208 = vpop.f32.mrb[0].mxu0
    %4209 = vmatprep.mubr.bf16.mxu0 %v3116
    %4210 = vmatmul.mubr.bf16.gmra.mrb[0].mxu0 %v3115
    %v4211 = vpop.f32.mrb[0].mxu0
    %v4212 = vadd.f32 %v3923, %v4211
    %v4213 = vpop.f32.mrb[0].mxu0
    %v4214 = vpop.f32.mrb[0].mxu0
    %v4215 = vadd.f32 %v3926, %v4214
    %v4216 = vpop.f32.mrb[0].mxu0
    %4217 = vdwg.mxu0
    %4218 = vmatprep.subr.bf16.mxu0 0
    %4219 = vmatpush1.bf16.msra.mxu0 %v3544
    %4220 = vmatprep.subr.bf16.mxu0 0
    %4221 = vmatpush1.bf16.msra.mxu0 %v3545
    %4222 = vmatprep.subr.bf16.mxu0 0
    %4223 = vmatpush1.bf16.msra.mxu0 %v3546
    %4224 = vmatprep.subr.bf16.mxu0 0
    %4225 = vmatpush1.bf16.msra.mxu0 %v3547
    %4226 = vmatprep.subr.bf16.mxu0 0
    %4227 = vmatpush1.bf16.msra.mxu0 %v3548
    %4228 = vmatprep.subr.bf16.mxu0 0
    %4229 = vmatpush1.bf16.msra.mxu0 %v3549
    %4230 = vmatprep.subr.bf16.mxu0 0
    %4231 = vmatpush1.bf16.msra.mxu0 %v3550
    %4232 = vmatprep.subr.bf16.mxu0 0
    %4233 = vmatpush1.bf16.msra.mxu0 %v3551
    %4234 = vmatprep.subr.bf16.mxu0 0
    %4235 = vmatpush1.bf16.msra.mxu0 %v3552
    %4236 = vmatprep.subr.bf16.mxu0 0
    %4237 = vmatpush1.bf16.msra.mxu0 %v3553
    %4238 = vmatprep.subr.bf16.mxu0 0
    %4239 = vmatpush1.bf16.msra.mxu0 %v3554
    %4240 = vmatprep.subr.bf16.mxu0 0
    %4241 = vmatpush1.bf16.msra.mxu0 %v3555
    %4242 = vmatprep.subr.bf16.mxu0 0
    %4243 = vmatpush1.bf16.msra.mxu0 %v3556
    %4244 = vmatprep.subr.bf16.mxu0 0
    %4245 = vmatpush1.bf16.msra.mxu0 %v3557
    %4246 = vmatprep.subr.bf16.mxu0 0
    %4247 = vmatpush1.bf16.msra.mxu0 %v3558
    %4248 = vmatprep.subr.bf16.mxu0 0
    %4249 = vmatpush1.bf16.msra.mxu0 %v3559
    %4250 = vmatprep.mubr.bf16.mxu0 %v2870
    %4251 = vmatmul.mubr.bf16.gmra.mrb[0].mxu0 %v2869
    %v4252 = vpop.f32.mrb[0].mxu0
    %v4253 = vadd.f32 %v3964, %v4252
    %v4254 = vpop.f32.mrb[0].mxu0
    %v4255 = vpop.f32.mrb[0].mxu0
    %v4256 = vadd.f32 %v3967, %v4255
    %v4257 = vpop.f32.mrb[0].mxu0
    %4258 = vmatprep.mubr.bf16.mxu0 %v2878
    %4259 = vmatmul.mubr.bf16.gmra.mrb[0].mxu0 %v2877
    %v4260 = vpop.f32.mrb[0].mxu0
    %v4261 = vadd.f32 %v3972, %v4260
    %v4262 = vpop.f32.mrb[0].mxu0
    %v4263 = vpop.f32.mrb[0].mxu0
    %v4264 = vadd.f32 %v3975, %v4263
    %v4265 = vpop.f32.mrb[0].mxu0
    %4266 = vmatprep.mubr.bf16.mxu0 %v2886
    %4267 = vmatmul.mubr.bf16.gmra.mrb[0].mxu0 %v2885
    %v4268 = vpop.f32.mrb[0].mxu0
    %v4269 = vadd.f32 %v3980, %v4268
    %v4270 = vpop.f32.mrb[0].mxu0
    %v4271 = vpop.f32.mrb[0].mxu0
    %v4272 = vadd.f32 %v3983, %v4271
    %v4273 = vpop.f32.mrb[0].mxu0
    %4274 = vmatprep.mubr.bf16.mxu0 %v2894
    %4275 = vmatmul.mubr.bf16.gmra.mrb[0].mxu0 %v2893
    %v4276 = vpop.f32.mrb[0].mxu0
    %v4277 = vadd.f32 %v3988, %v4276
    %v4278 = vpop.f32.mrb[0].mxu0
    %v4279 = vpop.f32.mrb[0].mxu0
    %v4280 = vadd.f32 %v3991, %v4279
    %v4281 = vpop.f32.mrb[0].mxu0
    %4282 = vmatprep.mubr.bf16.mxu0 %v2902
    %4283 = vmatmul.mubr.bf16.gmra.mrb[0].mxu0 %v2901
    %v4284 = vpop.f32.mrb[0].mxu0
    %v4285 = vadd.f32 %v3996, %v4284
    %v4286 = vpop.f32.mrb[0].mxu0
    %v4287 = vpop.f32.mrb[0].mxu0
    %v4288 = vadd.f32 %v3999, %v4287
    %v4289 = vpop.f32.mrb[0].mxu0
    %4290 = vmatprep.mubr.bf16.mxu0 %v2910
    %4291 = vmatmul.mubr.bf16.gmra.mrb[0].mxu0 %v2909
    %v4292 = vpop.f32.mrb[0].mxu0
    %v4293 = vadd.f32 %v4004, %v4292
    %v4294 = vpop.f32.mrb[0].mxu0
    %v4295 = vpop.f32.mrb[0].mxu0
    %v4296 = vadd.f32 %v4007, %v4295
    %v4297 = vpop.f32.mrb[0].mxu0
    %4298 = vmatprep.mubr.bf16.mxu0 %v2918
    %4299 = vmatmul.mubr.bf16.gmra.mrb[0].mxu0 %v2917
    %v4300 = vpop.f32.mrb[0].mxu0
    %v4301 = vadd.f32 %v4012, %v4300
    %v4302 = vpop.f32.mrb[0].mxu0
    %v4303 = vpop.f32.mrb[0].mxu0
    %v4304 = vadd.f32 %v4015, %v4303
    %v4305 = vpop.f32.mrb[0].mxu0
    %4306 = vmatprep.mubr.bf16.mxu0 %v2926
    %4307 = vmatmul.mubr.bf16.gmra.mrb[0].mxu0 %v2925
    %v4308 = vpop.f32.mrb[0].mxu0
    %v4309 = vadd.f32 %v4020, %v4308
    %v4310 = vpop.f32.mrb[0].mxu0
    %v4311 = vpop.f32.mrb[0].mxu0
    %v4312 = vadd.f32 %v4023, %v4311
    %v4313 = vpop.f32.mrb[0].mxu0
    %4314 = vmatprep.mubr.bf16.mxu0 %v2934
    %4315 = vmatmul.mubr.bf16.gmra.mrb[0].mxu0 %v2933
    %v4316 = vpop.f32.mrb[0].mxu0
    %v4317 = vadd.f32 %v4028, %v4316
    %v4318 = vpop.f32.mrb[0].mxu0
    %v4319 = vpop.f32.mrb[0].mxu0
    %v4320 = vadd.f32 %v4031, %v4319
    %v4321 = vpop.f32.mrb[0].mxu0
    %4322 = vmatprep.mubr.bf16.mxu0 %v2942
    %4323 = vmatmul.mubr.bf16.gmra.mrb[0].mxu0 %v2941
    %v4324 = vpop.f32.mrb[0].mxu0
    %v4325 = vadd.f32 %v4036, %v4324
    %v4326 = vpop.f32.mrb[0].mxu0
    %v4327 = vpop.f32.mrb[0].mxu0
    %v4328 = vadd.f32 %v4039, %v4327
    %v4329 = vpop.f32.mrb[0].mxu0
    %4330 = vmatprep.mubr.bf16.mxu0 %v2950
    %4331 = vmatmul.mubr.bf16.gmra.mrb[0].mxu0 %v2949
    %v4332 = vpop.f32.mrb[0].mxu0
    %v4333 = vadd.f32 %v4044, %v4332
    %v4334 = vpop.f32.mrb[0].mxu0
    %v4335 = vpop.f32.mrb[0].mxu0
    %v4336 = vadd.f32 %v4047, %v4335
    %v4337 = vpop.f32.mrb[0].mxu0
    %4338 = vmatprep.mubr.bf16.mxu0 %v2958
    %4339 = vmatmul.mubr.bf16.gmra.mrb[0].mxu0 %v2957
    %v4340 = vpop.f32.mrb[0].mxu0
    %v4341 = vadd.f32 %v4052, %v4340
    %v4342 = vpop.f32.mrb[0].mxu0
    %v4343 = vpop.f32.mrb[0].mxu0
    %v4344 = vadd.f32 %v4055, %v4343
    %v4345 = vpop.f32.mrb[0].mxu0
    %4346 = vmatprep.mubr.bf16.mxu0 %v2966
    %4347 = vmatmul.mubr.bf16.gmra.mrb[0].mxu0 %v2965
    %v4348 = vpop.f32.mrb[0].mxu0
    %v4349 = vadd.f32 %v4060, %v4348
    %v4350 = vpop.f32.mrb[0].mxu0
    %v4351 = vpop.f32.mrb[0].mxu0
    %v4352 = vadd.f32 %v4063, %v4351
    %v4353 = vpop.f32.mrb[0].mxu0
    %4354 = vmatprep.mubr.bf16.mxu0 %v2974
    %4355 = vmatmul.mubr.bf16.gmra.mrb[0].mxu0 %v2973
    %v4356 = vpop.f32.mrb[0].mxu0
    %v4357 = vadd.f32 %v4068, %v4356
    %v4358 = vpop.f32.mrb[0].mxu0
    %v4359 = vpop.f32.mrb[0].mxu0
    %v4360 = vadd.f32 %v4071, %v4359
    %v4361 = vpop.f32.mrb[0].mxu0
    %4362 = vmatprep.mubr.bf16.mxu0 %v2982
    %4363 = vmatmul.mubr.bf16.gmra.mrb[0].mxu0 %v2981
    %v4364 = vpop.f32.mrb[0].mxu0
    %v4365 = vadd.f32 %v4076, %v4364
    %v4366 = vpop.f32.mrb[0].mxu0
    %v4367 = vpop.f32.mrb[0].mxu0
    %v4368 = vadd.f32 %v4079, %v4367
    %v4369 = vpop.f32.mrb[0].mxu0
    %4370 = vmatprep.mubr.bf16.mxu0 %v2990
    %4371 = vmatmul.mubr.bf16.gmra.mrb[0].mxu0 %v2989
    %v4372 = vpop.f32.mrb[0].mxu0
    %v4373 = vadd.f32 %v4084, %v4372
    %v4374 = vpop.f32.mrb[0].mxu0
    %v4375 = vpop.f32.mrb[0].mxu0
    %v4376 = vadd.f32 %v4087, %v4375
    %v4377 = vpop.f32.mrb[0].mxu0
    %4378 = vmatprep.mubr.bf16.mxu0 %v2998
    %4379 = vmatmul.mubr.bf16.gmra.mrb[0].mxu0 %v2997
    %v4380 = vpop.f32.mrb[0].mxu0
    %v4381 = vadd.f32 %v4092, %v4380
    %v4382 = vpop.f32.mrb[0].mxu0
    %v4383 = vpop.f32.mrb[0].mxu0
    %v4384 = vadd.f32 %v4095, %v4383
    %v4385 = vpop.f32.mrb[0].mxu0
    %4386 = vmatprep.mubr.bf16.mxu0 %v3006
    %4387 = vmatmul.mubr.bf16.gmra.mrb[0].mxu0 %v3005
    %v4388 = vpop.f32.mrb[0].mxu0
    %v4389 = vadd.f32 %v4100, %v4388
    %v4390 = vpop.f32.mrb[0].mxu0
    %v4391 = vpop.f32.mrb[0].mxu0
    %v4392 = vadd.f32 %v4103, %v4391
    %v4393 = vpop.f32.mrb[0].mxu0
    %4394 = vmatprep.mubr.bf16.mxu0 %v3014
    %4395 = vmatmul.mubr.bf16.gmra.mrb[0].mxu0 %v3013
    %v4396 = vpop.f32.mrb[0].mxu0
    %v4397 = vadd.f32 %v4108, %v4396
    %v4398 = vpop.f32.mrb[0].mxu0
    %v4399 = vpop.f32.mrb[0].mxu0
    %v4400 = vadd.f32 %v4111, %v4399
    %v4401 = vpop.f32.mrb[0].mxu0
    %4402 = vmatprep.mubr.bf16.mxu0 %v3022
    %4403 = vmatmul.mubr.bf16.gmra.mrb[0].mxu0 %v3021
    %v4404 = vpop.f32.mrb[0].mxu0
    %v4405 = vadd.f32 %v4116, %v4404
    %v4406 = vpop.f32.mrb[0].mxu0
    %v4407 = vpop.f32.mrb[0].mxu0
    %v4408 = vadd.f32 %v4119, %v4407
    %v4409 = vpop.f32.mrb[0].mxu0
    %4410 = vmatprep.mubr.bf16.mxu0 %v3030
    %4411 = vmatmul.mubr.bf16.gmra.mrb[0].mxu0 %v3029
    %v4412 = vpop.f32.mrb[0].mxu0
    %v4413 = vadd.f32 %v4124, %v4412
    %v4414 = vpop.f32.mrb[0].mxu0
    %v4415 = vpop.f32.mrb[0].mxu0
    %v4416 = vadd.f32 %v4127, %v4415
    %v4417 = vpop.f32.mrb[0].mxu0
    %4418 = vmatprep.mubr.bf16.mxu0 %v3038
    %4419 = vmatmul.mubr.bf16.gmra.mrb[0].mxu0 %v3037
    %v4420 = vpop.f32.mrb[0].mxu0
    %v4421 = vadd.f32 %v4132, %v4420
    %v4422 = vpop.f32.mrb[0].mxu0
    %v4423 = vpop.f32.mrb[0].mxu0
    %v4424 = vadd.f32 %v4135, %v4423
    %v4425 = vpop.f32.mrb[0].mxu0
    %4426 = vmatprep.mubr.bf16.mxu0 %v3046
    %4427 = vmatmul.mubr.bf16.gmra.mrb[0].mxu0 %v3045
    %v4428 = vpop.f32.mrb[0].mxu0
    %v4429 = vadd.f32 %v4140, %v4428
    %v4430 = vpop.f32.mrb[0].mxu0
    %v4431 = vpop.f32.mrb[0].mxu0
    %v4432 = vadd.f32 %v4143, %v4431
    %v4433 = vpop.f32.mrb[0].mxu0
    %4434 = vmatprep.mubr.bf16.mxu0 %v3054
    %4435 = vmatmul.mubr.bf16.gmra.mrb[0].mxu0 %v3053
    %v4436 = vpop.f32.mrb[0].mxu0
    %v4437 = vadd.f32 %v4148, %v4436
    %v4438 = vpop.f32.mrb[0].mxu0
    %v4439 = vpop.f32.mrb[0].mxu0
    %v4440 = vadd.f32 %v4151, %v4439
    %v4441 = vpop.f32.mrb[0].mxu0
    %4442 = vmatprep.mubr.bf16.mxu0 %v3062
    %4443 = vmatmul.mubr.bf16.gmra.mrb[0].mxu0 %v3061
    %v4444 = vpop.f32.mrb[0].mxu0
    %v4445 = vadd.f32 %v4156, %v4444
    %v4446 = vpop.f32.mrb[0].mxu0
    %v4447 = vpop.f32.mrb[0].mxu0
    %v4448 = vadd.f32 %v4159, %v4447
    %v4449 = vpop.f32.mrb[0].mxu0
    %4450 = vmatprep.mubr.bf16.mxu0 %v3070
    %4451 = vmatmul.mubr.bf16.gmra.mrb[0].mxu0 %v3069
    %v4452 = vpop.f32.mrb[0].mxu0
    %v4453 = vadd.f32 %v4164, %v4452
    %v4454 = vpop.f32.mrb[0].mxu0
    %v4455 = vpop.f32.mrb[0].mxu0
    %v4456 = vadd.f32 %v4167, %v4455
    %v4457 = vpop.f32.mrb[0].mxu0
    %4458 = vmatprep.mubr.bf16.mxu0 %v3078
    %4459 = vmatmul.mubr.bf16.gmra.mrb[0].mxu0 %v3077
    %v4460 = vpop.f32.mrb[0].mxu0
    %v4461 = vadd.f32 %v4172, %v4460
    %v4462 = vpop.f32.mrb[0].mxu0
    %v4463 = vpop.f32.mrb[0].mxu0
    %v4464 = vadd.f32 %v4175, %v4463
    %v4465 = vpop.f32.mrb[0].mxu0
    %4466 = vmatprep.mubr.bf16.mxu0 %v3086
    %4467 = vmatmul.mubr.bf16.gmra.mrb[0].mxu0 %v3085
    %v4468 = vpop.f32.mrb[0].mxu0
    %v4469 = vadd.f32 %v4180, %v4468
    %v4470 = vpop.f32.mrb[0].mxu0
    %v4471 = vpop.f32.mrb[0].mxu0
    %v4472 = vadd.f32 %v4183, %v4471
    %v4473 = vpop.f32.mrb[0].mxu0
    %4474 = vmatprep.mubr.bf16.mxu0 %v3094
    %4475 = vmatmul.mubr.bf16.gmra.mrb[0].mxu0 %v3093
    %v4476 = vpop.f32.mrb[0].mxu0
    %v4477 = vadd.f32 %v4188, %v4476
    %v4478 = vpop.f32.mrb[0].mxu0
    %v4479 = vpop.f32.mrb[0].mxu0
    %v4480 = vadd.f32 %v4191, %v4479
    %v4481 = vpop.f32.mrb[0].mxu0
    %4482 = vmatprep.mubr.bf16.mxu0 %v3102
    %4483 = vmatmul.mubr.bf16.gmra.mrb[0].mxu0 %v3101
    %v4484 = vpop.f32.mrb[0].mxu0
    %v4485 = vadd.f32 %v4196, %v4484
    %v4486 = vpop.f32.mrb[0].mxu0
    %v4487 = vpop.f32.mrb[0].mxu0
    %v4488 = vadd.f32 %v4199, %v4487
    %v4489 = vpop.f32.mrb[0].mxu0
    %4490 = vmatprep.mubr.bf16.mxu0 %v3110
    %4491 = vmatmul.mubr.bf16.gmra.mrb[0].mxu0 %v3109
    %v4492 = vpop.f32.mrb[0].mxu0
    %v4493 = vadd.f32 %v4204, %v4492
    %v4494 = vpop.f32.mrb[0].mxu0
    %v4495 = vpop.f32.mrb[0].mxu0
    %v4496 = vadd.f32 %v4207, %v4495
    %v4497 = vpop.f32.mrb[0].mxu0
    %4498 = vmatprep.mubr.bf16.mxu0 %v3118
    %4499 = vmatmul.mubr.bf16.gmra.mrb[0].mxu0 %v3117
    %v4500 = vpop.f32.mrb[0].mxu0
    %v4501 = vadd.f32 %v4212, %v4500
    %v4502 = vpop.f32.mrb[0].mxu0
    %v4503 = vpop.f32.mrb[0].mxu0
    %v4504 = vadd.f32 %v4215, %v4503
    %v4505 = vpop.f32.mrb[0].mxu0
    %4506 = vdwg.mxu0
    %4507 = vmatprep.subr.bf16.mxu0 0
    %4508 = vmatpush1.bf16.msra.mxu0 %v3560
    %4509 = vmatprep.subr.bf16.mxu0 0
    %4510 = vmatpush1.bf16.msra.mxu0 %v3561
    %4511 = vmatprep.subr.bf16.mxu0 0
    %4512 = vmatpush1.bf16.msra.mxu0 %v3562
    %4513 = vmatprep.subr.bf16.mxu0 0
    %4514 = vmatpush1.bf16.msra.mxu0 %v3563
    %4515 = vmatprep.subr.bf16.mxu0 0
    %4516 = vmatpush1.bf16.msra.mxu0 %v3564
    %4517 = vmatprep.subr.bf16.mxu0 0
    %4518 = vmatpush1.bf16.msra.mxu0 %v3565
    %4519 = vmatprep.subr.bf16.mxu0 0
    %4520 = vmatpush1.bf16.msra.mxu0 %v3566
    %4521 = vmatprep.subr.bf16.mxu0 0
    %4522 = vmatpush1.bf16.msra.mxu0 %v3567
    %4523 = vmatprep.subr.bf16.mxu0 0
    %4524 = vmatpush1.bf16.msra.mxu0 %v3568
    %4525 = vmatprep.subr.bf16.mxu0 0
    %4526 = vmatpush1.bf16.msra.mxu0 %v3569
    %4527 = vmatprep.subr.bf16.mxu0 0
    %4528 = vmatpush1.bf16.msra.mxu0 %v3570
    %4529 = vmatprep.subr.bf16.mxu0 0
    %4530 = vmatpush1.bf16.msra.mxu0 %v3571
    %4531 = vmatprep.subr.bf16.mxu0 0
    %4532 = vmatpush1.bf16.msra.mxu0 %v3572
    %4533 = vmatprep.subr.bf16.mxu0 0
    %4534 = vmatpush1.bf16.msra.mxu0 %v3573
    %4535 = vmatprep.subr.bf16.mxu0 0
    %4536 = vmatpush1.bf16.msra.mxu0 %v3574
    %4537 = vmatprep.subr.bf16.mxu0 0
    %4538 = vmatpush1.bf16.msra.mxu0 %v3575
    %4539 = vmatprep.mubr.bf16.mxu0 %v2872
    %4540 = vmatmul.mubr.bf16.gmra.mrb[0].mxu0 %v2871
    %v4541 = vpop.f32.mrb[0].mxu0
    %v4542 = vadd.f32 %v4253, %v4541
    %v4543 = vpop.f32.mrb[0].mxu0
    %v4544 = vpop.f32.mrb[0].mxu0
    %v4545 = vadd.f32 %v4256, %v4544
    %v4546 = vpop.f32.mrb[0].mxu0
    %4547 = vmatprep.mubr.bf16.mxu0 %v2880
    %4548 = vmatmul.mubr.bf16.gmra.mrb[0].mxu0 %v2879
    %v4549 = vpop.f32.mrb[0].mxu0
    %v4550 = vadd.f32 %v4261, %v4549
    %v4551 = vpop.f32.mrb[0].mxu0
    %v4552 = vpop.f32.mrb[0].mxu0
    %v4553 = vadd.f32 %v4264, %v4552
    %v4554 = vpop.f32.mrb[0].mxu0
    %4555 = vmatprep.mubr.bf16.mxu0 %v2888
    %4556 = vmatmul.mubr.bf16.gmra.mrb[0].mxu0 %v2887
    %v4557 = vpop.f32.mrb[0].mxu0
    %v4558 = vadd.f32 %v4269, %v4557
    %v4559 = vpop.f32.mrb[0].mxu0
    %v4560 = vpop.f32.mrb[0].mxu0
    %v4561 = vadd.f32 %v4272, %v4560
    %v4562 = vpop.f32.mrb[0].mxu0
    %4563 = vmatprep.mubr.bf16.mxu0 %v2896
    %4564 = vmatmul.mubr.bf16.gmra.mrb[0].mxu0 %v2895
    %v4565 = vpop.f32.mrb[0].mxu0
    %v4566 = vadd.f32 %v4277, %v4565
    %v4567 = vpop.f32.mrb[0].mxu0
    %v4568 = vpop.f32.mrb[0].mxu0
    %v4569 = vadd.f32 %v4280, %v4568
    %v4570 = vpop.f32.mrb[0].mxu0
    %4571 = vmatprep.mubr.bf16.mxu0 %v2904
    %4572 = vmatmul.mubr.bf16.gmra.mrb[0].mxu0 %v2903
    %v4573 = vpop.f32.mrb[0].mxu0
    %v4574 = vadd.f32 %v4285, %v4573
    %v4575 = vpop.f32.mrb[0].mxu0
    %v4576 = vpop.f32.mrb[0].mxu0
    %v4577 = vadd.f32 %v4288, %v4576
    %v4578 = vpop.f32.mrb[0].mxu0
    %4579 = vmatprep.mubr.bf16.mxu0 %v2912
    %4580 = vmatmul.mubr.bf16.gmra.mrb[0].mxu0 %v2911
    %v4581 = vpop.f32.mrb[0].mxu0
    %v4582 = vadd.f32 %v4293, %v4581
    %v4583 = vpop.f32.mrb[0].mxu0
    %v4584 = vpop.f32.mrb[0].mxu0
    %v4585 = vadd.f32 %v4296, %v4584
    %v4586 = vpop.f32.mrb[0].mxu0
    %4587 = vmatprep.mubr.bf16.mxu0 %v2920
    %4588 = vmatmul.mubr.bf16.gmra.mrb[0].mxu0 %v2919
    %v4589 = vpop.f32.mrb[0].mxu0
    %v4590 = vadd.f32 %v4301, %v4589
    %v4591 = vpop.f32.mrb[0].mxu0
    %v4592 = vpop.f32.mrb[0].mxu0
    %v4593 = vadd.f32 %v4304, %v4592
    %v4594 = vpop.f32.mrb[0].mxu0
    %4595 = vmatprep.mubr.bf16.mxu0 %v2928
    %4596 = vmatmul.mubr.bf16.gmra.mrb[0].mxu0 %v2927
    %v4597 = vpop.f32.mrb[0].mxu0
    %v4598 = vadd.f32 %v4309, %v4597
    %v4599 = vpop.f32.mrb[0].mxu0
    %v4600 = vpop.f32.mrb[0].mxu0
    %v4601 = vadd.f32 %v4312, %v4600
    %v4602 = vpop.f32.mrb[0].mxu0
    %4603 = vmatprep.mubr.bf16.mxu0 %v2936
    %4604 = vmatmul.mubr.bf16.gmra.mrb[0].mxu0 %v2935
    %v4605 = vpop.f32.mrb[0].mxu0
    %v4606 = vadd.f32 %v4317, %v4605
    %v4607 = vpop.f32.mrb[0].mxu0
    %v4608 = vpop.f32.mrb[0].mxu0
    %v4609 = vadd.f32 %v4320, %v4608
    %v4610 = vpop.f32.mrb[0].mxu0
    %4611 = vmatprep.mubr.bf16.mxu0 %v2944
    %4612 = vmatmul.mubr.bf16.gmra.mrb[0].mxu0 %v2943
    %v4613 = vpop.f32.mrb[0].mxu0
    %v4614 = vadd.f32 %v4325, %v4613
    %v4615 = vpop.f32.mrb[0].mxu0
    %v4616 = vpop.f32.mrb[0].mxu0
    %v4617 = vadd.f32 %v4328, %v4616
    %v4618 = vpop.f32.mrb[0].mxu0
    %4619 = vmatprep.mubr.bf16.mxu0 %v2952
    %4620 = vmatmul.mubr.bf16.gmra.mrb[0].mxu0 %v2951
    %v4621 = vpop.f32.mrb[0].mxu0
    %v4622 = vadd.f32 %v4333, %v4621
    %v4623 = vpop.f32.mrb[0].mxu0
    %v4624 = vpop.f32.mrb[0].mxu0
    %v4625 = vadd.f32 %v4336, %v4624
    %v4626 = vpop.f32.mrb[0].mxu0
    %4627 = vmatprep.mubr.bf16.mxu0 %v2960
    %4628 = vmatmul.mubr.bf16.gmra.mrb[0].mxu0 %v2959
    %v4629 = vpop.f32.mrb[0].mxu0
    %v4630 = vadd.f32 %v4341, %v4629
    %v4631 = vpop.f32.mrb[0].mxu0
    %v4632 = vpop.f32.mrb[0].mxu0
    %v4633 = vadd.f32 %v4344, %v4632
    %v4634 = vpop.f32.mrb[0].mxu0
    %4635 = vmatprep.mubr.bf16.mxu0 %v2968
    %4636 = vmatmul.mubr.bf16.gmra.mrb[0].mxu0 %v2967
    %v4637 = vpop.f32.mrb[0].mxu0
    %v4638 = vadd.f32 %v4349, %v4637
    %v4639 = vpop.f32.mrb[0].mxu0
    %v4640 = vpop.f32.mrb[0].mxu0
    %v4641 = vadd.f32 %v4352, %v4640
    %v4642 = vpop.f32.mrb[0].mxu0
    %4643 = vmatprep.mubr.bf16.mxu0 %v2976
    %4644 = vmatmul.mubr.bf16.gmra.mrb[0].mxu0 %v2975
    %v4645 = vpop.f32.mrb[0].mxu0
    %v4646 = vadd.f32 %v4357, %v4645
    %v4647 = vpop.f32.mrb[0].mxu0
    %v4648 = vpop.f32.mrb[0].mxu0
    %v4649 = vadd.f32 %v4360, %v4648
    %v4650 = vpop.f32.mrb[0].mxu0
    %4651 = vmatprep.mubr.bf16.mxu0 %v2984
    %4652 = vmatmul.mubr.bf16.gmra.mrb[0].mxu0 %v2983
    %v4653 = vpop.f32.mrb[0].mxu0
    %v4654 = vadd.f32 %v4365, %v4653
    %v4655 = vpop.f32.mrb[0].mxu0
    %v4656 = vpop.f32.mrb[0].mxu0
    %v4657 = vadd.f32 %v4368, %v4656
    %v4658 = vpop.f32.mrb[0].mxu0
    %4659 = vmatprep.mubr.bf16.mxu0 %v2992
    %4660 = vmatmul.mubr.bf16.gmra.mrb[0].mxu0 %v2991
    %v4661 = vpop.f32.mrb[0].mxu0
    %v4662 = vadd.f32 %v4373, %v4661
    %v4663 = vpop.f32.mrb[0].mxu0
    %v4664 = vpop.f32.mrb[0].mxu0
    %v4665 = vadd.f32 %v4376, %v4664
    %v4666 = vpop.f32.mrb[0].mxu0
    %4667 = vmatprep.mubr.bf16.mxu0 %v3000
    %4668 = vmatmul.mubr.bf16.gmra.mrb[0].mxu0 %v2999
    %v4669 = vpop.f32.mrb[0].mxu0
    %v4670 = vadd.f32 %v4381, %v4669
    %v4671 = vpop.f32.mrb[0].mxu0
    %v4672 = vpop.f32.mrb[0].mxu0
    %v4673 = vadd.f32 %v4384, %v4672
    %v4674 = vpop.f32.mrb[0].mxu0
    %4675 = vmatprep.mubr.bf16.mxu0 %v3008
    %4676 = vmatmul.mubr.bf16.gmra.mrb[0].mxu0 %v3007
    %v4677 = vpop.f32.mrb[0].mxu0
    %v4678 = vadd.f32 %v4389, %v4677
    %v4679 = vpop.f32.mrb[0].mxu0
    %v4680 = vpop.f32.mrb[0].mxu0
    %v4681 = vadd.f32 %v4392, %v4680
    %v4682 = vpop.f32.mrb[0].mxu0
    %4683 = vmatprep.mubr.bf16.mxu0 %v3016
    %4684 = vmatmul.mubr.bf16.gmra.mrb[0].mxu0 %v3015
    %v4685 = vpop.f32.mrb[0].mxu0
    %v4686 = vadd.f32 %v4397, %v4685
    %v4687 = vpop.f32.mrb[0].mxu0
    %v4688 = vpop.f32.mrb[0].mxu0
    %v4689 = vadd.f32 %v4400, %v4688
    %v4690 = vpop.f32.mrb[0].mxu0
    %4691 = vmatprep.mubr.bf16.mxu0 %v3024
    %4692 = vmatmul.mubr.bf16.gmra.mrb[0].mxu0 %v3023
    %v4693 = vpop.f32.mrb[0].mxu0
    %v4694 = vadd.f32 %v4405, %v4693
    %v4695 = vpop.f32.mrb[0].mxu0
    %v4696 = vpop.f32.mrb[0].mxu0
    %v4697 = vadd.f32 %v4408, %v4696
    %v4698 = vpop.f32.mrb[0].mxu0
    %4699 = vmatprep.mubr.bf16.mxu0 %v3032
    %4700 = vmatmul.mubr.bf16.gmra.mrb[0].mxu0 %v3031
    %v4701 = vpop.f32.mrb[0].mxu0
    %v4702 = vadd.f32 %v4413, %v4701
    %v4703 = vpop.f32.mrb[0].mxu0
    %v4704 = vpop.f32.mrb[0].mxu0
    %v4705 = vadd.f32 %v4416, %v4704
    %v4706 = vpop.f32.mrb[0].mxu0
    %4707 = vmatprep.mubr.bf16.mxu0 %v3040
    %4708 = vmatmul.mubr.bf16.gmra.mrb[0].mxu0 %v3039
    %v4709 = vpop.f32.mrb[0].mxu0
    %v4710 = vadd.f32 %v4421, %v4709
    %v4711 = vpop.f32.mrb[0].mxu0
    %v4712 = vpop.f32.mrb[0].mxu0
    %v4713 = vadd.f32 %v4424, %v4712
    %v4714 = vpop.f32.mrb[0].mxu0
    %4715 = vmatprep.mubr.bf16.mxu0 %v3048
    %4716 = vmatmul.mubr.bf16.gmra.mrb[0].mxu0 %v3047
    %v4717 = vpop.f32.mrb[0].mxu0
    %v4718 = vadd.f32 %v4429, %v4717
    %v4719 = vpop.f32.mrb[0].mxu0
    %v4720 = vpop.f32.mrb[0].mxu0
    %v4721 = vadd.f32 %v4432, %v4720
    %v4722 = vpop.f32.mrb[0].mxu0
    %4723 = vmatprep.mubr.bf16.mxu0 %v3056
    %4724 = vmatmul.mubr.bf16.gmra.mrb[0].mxu0 %v3055
    %v4725 = vpop.f32.mrb[0].mxu0
    %v4726 = vadd.f32 %v4437, %v4725
    %v4727 = vpop.f32.mrb[0].mxu0
    %v4728 = vpop.f32.mrb[0].mxu0
    %v4729 = vadd.f32 %v4440, %v4728
    %v4730 = vpop.f32.mrb[0].mxu0
    %4731 = vmatprep.mubr.bf16.mxu0 %v3064
    %4732 = vmatmul.mubr.bf16.gmra.mrb[0].mxu0 %v3063
    %v4733 = vpop.f32.mrb[0].mxu0
    %v4734 = vadd.f32 %v4445, %v4733
    %v4735 = vpop.f32.mrb[0].mxu0
    %v4736 = vpop.f32.mrb[0].mxu0
    %v4737 = vadd.f32 %v4448, %v4736
    %v4738 = vpop.f32.mrb[0].mxu0
    %4739 = vmatprep.mubr.bf16.mxu0 %v3072
    %4740 = vmatmul.mubr.bf16.gmra.mrb[0].mxu0 %v3071
    %v4741 = vpop.f32.mrb[0].mxu0
    %v4742 = vadd.f32 %v4453, %v4741
    %v4743 = vpop.f32.mrb[0].mxu0
    %v4744 = vpop.f32.mrb[0].mxu0
    %v4745 = vadd.f32 %v4456, %v4744
    %v4746 = vpop.f32.mrb[0].mxu0
    %4747 = vmatprep.mubr.bf16.mxu0 %v3080
    %4748 = vmatmul.mubr.bf16.gmra.mrb[0].mxu0 %v3079
    %v4749 = vpop.f32.mrb[0].mxu0
    %v4750 = vadd.f32 %v4461, %v4749
    %v4751 = vpop.f32.mrb[0].mxu0
    %v4752 = vpop.f32.mrb[0].mxu0
    %v4753 = vadd.f32 %v4464, %v4752
    %v4754 = vpop.f32.mrb[0].mxu0
    %4755 = vmatprep.mubr.bf16.mxu0 %v3088
    %4756 = vmatmul.mubr.bf16.gmra.mrb[0].mxu0 %v3087
    %v4757 = vpop.f32.mrb[0].mxu0
    %v4758 = vadd.f32 %v4469, %v4757
    %v4759 = vpop.f32.mrb[0].mxu0
    %v4760 = vpop.f32.mrb[0].mxu0
    %v4761 = vadd.f32 %v4472, %v4760
    %v4762 = vpop.f32.mrb[0].mxu0
    %4763 = vmatprep.mubr.bf16.mxu0 %v3096
    %4764 = vmatmul.mubr.bf16.gmra.mrb[0].mxu0 %v3095
    %v4765 = vpop.f32.mrb[0].mxu0
    %v4766 = vadd.f32 %v4477, %v4765
    %v4767 = vpop.f32.mrb[0].mxu0
    %v4768 = vpop.f32.mrb[0].mxu0
    %v4769 = vadd.f32 %v4480, %v4768
    %v4770 = vpop.f32.mrb[0].mxu0
    %4771 = vmatprep.mubr.bf16.mxu0 %v3104
    %4772 = vmatmul.mubr.bf16.gmra.mrb[0].mxu0 %v3103
    %v4773 = vpop.f32.mrb[0].mxu0
    %v4774 = vadd.f32 %v4485, %v4773
    %v4775 = vpop.f32.mrb[0].mxu0
    %v4776 = vpop.f32.mrb[0].mxu0
    %v4777 = vadd.f32 %v4488, %v4776
    %v4778 = vpop.f32.mrb[0].mxu0
    %4779 = vmatprep.mubr.bf16.mxu0 %v3112
    %4780 = vmatmul.mubr.bf16.gmra.mrb[0].mxu0 %v3111
    %v4781 = vpop.f32.mrb[0].mxu0
    %v4782 = vadd.f32 %v4493, %v4781
    %v4783 = vpop.f32.mrb[0].mxu0
    %v4784 = vpop.f32.mrb[0].mxu0
    %v4785 = vadd.f32 %v4496, %v4784
    %v4786 = vpop.f32.mrb[0].mxu0
    %4787 = vmatprep.mubr.bf16.mxu0 %v3120
    %4788 = vmatmul.mubr.bf16.gmra.mrb[0].mxu0 %v3119
    %v4789 = vpop.f32.mrb[0].mxu0
    %v4790 = vadd.f32 %v4501, %v4789
    %v4791 = vpop.f32.mrb[0].mxu0
    %v4792 = vpop.f32.mrb[0].mxu0
    %v4793 = vadd.f32 %v4504, %v4792
    %v4794 = vpop.f32.mrb[0].mxu0
    %4795 = vdwg.mxu0
    %4796 = vst [vmem:[#allocation5] sm:$0xff] %v4542
    %4797 = vst [vmem:[#allocation5 + $0x8] sm:$0xff] %v4545
    %4798 = vst [vmem:[#allocation5 + $0x10] sm:$0xff] %v4550
    %4799 = vst [vmem:[#allocation5 + $0x18] sm:$0xff] %v4553
    %4800 = vst [vmem:[#allocation5 + $0x20] sm:$0xff] %v4558
    %4801 = vst [vmem:[#allocation5 + $0x28] sm:$0xff] %v4561
    %4802 = vst [vmem:[#allocation5 + $0x30] sm:$0xff] %v4566
    %4803 = vst [vmem:[#allocation5 + $0x38] sm:$0xff] %v4569
    %4804 = vst [vmem:[#allocation5 + $0x40] sm:$0xff] %v4574
    %4805 = vst [vmem:[#allocation5 + $0x48] sm:$0xff] %v4577
    %4806 = vst [vmem:[#allocation5 + $0x50] sm:$0xff] %v4582
    %4807 = vst [vmem:[#allocation5 + $0x58] sm:$0xff] %v4585
    %4808 = vst [vmem:[#allocation5 + $0x60] sm:$0xff] %v4590
    %4809 = vst [vmem:[#allocation5 + $0x68] sm:$0xff] %v4593
    %4810 = vst [vmem:[#allocation5 + $0x70] sm:$0xff] %v4598
    %4811 = vst [vmem:[#allocation5 + $0x78] sm:$0xff] %v4601
    %4812 = vst [vmem:[#allocation5 + $0x80] sm:$0xff] %v4606
    %4813 = vst [vmem:[#allocation5 + $0x88] sm:$0xff] %v4609
    %4814 = vst [vmem:[#allocation5 + $0x90] sm:$0xff] %v4614
    %4815 = vst [vmem:[#allocation5 + $0x98] sm:$0xff] %v4617
    %4816 = vst [vmem:[#allocation5 + $0xa0] sm:$0xff] %v4622
    %4817 = vst [vmem:[#allocation5 + $0xa8] sm:$0xff] %v4625
    %4818 = vst [vmem:[#allocation5 + $0xb0] sm:$0xff] %v4630
    %4819 = vst [vmem:[#allocation5 + $0xb8] sm:$0xff] %v4633
    %4820 = vst [vmem:[#allocation5 + $0xc0] sm:$0xff] %v4638
    %4821 = vst [vmem:[#allocation5 + $0xc8] sm:$0xff] %v4641
    %4822 = vst [vmem:[#allocation5 + $0xd0] sm:$0xff] %v4646
    %4823 = vst [vmem:[#allocation5 + $0xd8] sm:$0xff] %v4649
    %4824 = vst [vmem:[#allocation5 + $0xe0] sm:$0xff] %v4654
    %4825 = vst [vmem:[#allocation5 + $0xe8] sm:$0xff] %v4657
    %4826 = vst [vmem:[#allocation5 + $0xf0] sm:$0xff] %v4662
    %4827 = vst [vmem:[#allocation5 + $0xf8] sm:$0xff] %v4665
    %4828 = vst [vmem:[#allocation5 + $0x100] sm:$0xff] %v4670
    %4829 = vst [vmem:[#allocation5 + $0x108] sm:$0xff] %v4673
    %4830 = vst [vmem:[#allocation5 + $0x110] sm:$0xff] %v4678
    %4831 = vst [vmem:[#allocation5 + $0x118] sm:$0xff] %v4681
    %4832 = vst [vmem:[#allocation5 + $0x120] sm:$0xff] %v4686
    %4833 = vst [vmem:[#allocation5 + $0x128] sm:$0xff] %v4689
    %4834 = vst [vmem:[#allocation5 + $0x130] sm:$0xff] %v4694
    %4835 = vst [vmem:[#allocation5 + $0x138] sm:$0xff] %v4697
    %4836 = vst [vmem:[#allocation5 + $0x140] sm:$0xff] %v4702
    %4837 = vst [vmem:[#allocation5 + $0x148] sm:$0xff] %v4705
    %4838 = vst [vmem:[#allocation5 + $0x150] sm:$0xff] %v4710
    %4839 = vst [vmem:[#allocation5 + $0x158] sm:$0xff] %v4713
    %4840 = vst [vmem:[#allocation5 + $0x160] sm:$0xff] %v4718
    %4841 = vst [vmem:[#allocation5 + $0x168] sm:$0xff] %v4721
    %4842 = vst [vmem:[#allocation5 + $0x170] sm:$0xff] %v4726
    %4843 = vst [vmem:[#allocation5 + $0x178] sm:$0xff] %v4729
    %4844 = vst [vmem:[#allocation5 + $0x180] sm:$0xff] %v4734
    %4845 = vst [vmem:[#allocation5 + $0x188] sm:$0xff] %v4737
    %4846 = vst [vmem:[#allocation5 + $0x190] sm:$0xff] %v4742
    %4847 = vst [vmem:[#allocation5 + $0x198] sm:$0xff] %v4745
    %4848 = vst [vmem:[#allocation5 + $0x1a0] sm:$0xff] %v4750
    %4849 = vst [vmem:[#allocation5 + $0x1a8] sm:$0xff] %v4753
    %4850 = vst [vmem:[#allocation5 + $0x1b0] sm:$0xff] %v4758
    %4851 = vst [vmem:[#allocation5 + $0x1b8] sm:$0xff] %v4761
    %4852 = vst [vmem:[#allocation5 + $0x1c0] sm:$0xff] %v4766
    %4853 = vst [vmem:[#allocation5 + $0x1c8] sm:$0xff] %v4769
    %4854 = vst [vmem:[#allocation5 + $0x1d0] sm:$0xff] %v4774
    %4855 = vst [vmem:[#allocation5 + $0x1d8] sm:$0xff] %v4777
    %4856 = vst [vmem:[#allocation5 + $0x1e0] sm:$0xff] %v4782
    %4857 = vst [vmem:[#allocation5 + $0x1e8] sm:$0xff] %v4785
    %4858 = vst [vmem:[#allocation5 + $0x1f0] sm:$0xff] %v4790
    %4859 = vst [vmem:[#allocation5 + $0x1f8] sm:$0xff] %v4793
    // Predicated region
    $region30: #{tpu_custom_call.1} parent=1 // pred_check
      _
    $region31: #{tpu_custom_call.1} parent=1 // pred_check_branch
      %4861 = sbr.rel (0) target = $region33
    $region32: #{tpu_custom_call.1} parent=1 // pred_region
      %s4863 = ssub.s32 8192, 8192
      %4864 = vsyncadd [#allocation4], %s4863
      %s4865 = sshll.u32 [#allocation5], 4
      %s4866 = int_to_ptr.vmem [resolvable:$true] %s4865
      %4871 = dma.vmem_to_hbm [thread:$0]  %s4866, 8192, %s6, [#allocation4], 128, 128, 8
    $region33: #{tpu_custom_call.1} parent=1 // pred_fallthru
      _
    // Predicated region
    $region34: #{tpu_custom_call.1} parent=1 // pred_check
      _
    $region35: #{tpu_custom_call.1} parent=1 // pred_check_branch
      %4873 = sbr.rel (0) target = $region37
    $region36: #{tpu_custom_call.1} parent=1 // pred_region
      %4874 = dma.done [#allocation4], 8192
    $region37: #{tpu_custom_call.1} parent=1 // pred_fallthru
      _
    %4875 = vsyncpa [#allocation3], 1
    %4876 = vsyncpa [#allocation4], 1

</llo_original>
